<compile_context>
chip_gen: v7x
topology: tpu7x:2x2x1
jax: 0.10.0
libtpu: 0.0.40
codegen_flags: <defaults>
</compile_context>

<pallas_src>
import numpy as np
import jax
import jax.numpy as jnp
from jax import lax
from jax.experimental import pallas as pl
from jax.experimental.pallas import tpu as pltpu

LANE = 128
_CIN = (3, 11, 12, 13)
_COUT = (11, 12, 13, 14)

# ---- weight/bias slab row layout (f32, 128 lanes, cout zero-padded) ---------
_W1_ROWS = 4 * _CIN[0]                      # rows 0..11 : layer-1 im2col weight
_BIAS_ROW0 = _W1_ROWS                       # rows 12..15: biases b1..b4
_TAP_ROWS = 16                              # 8-aligned rows per (layer, tap) block
_TAP_BASE = {2: 16, 3: 16 + 4 * _TAP_ROWS, 4: 16 + 8 * _TAP_ROWS}
_SLAB_ROWS = _TAP_BASE[4] + 4 * _TAP_ROWS   # 208 rows -> 104 KiB


def _round_up(x, m):
    return (x + m - 1) // m * m


def _spatial_chain(h, w):
    sizes = [(h, w)]
    for _ in range(4):
        hh, ww = sizes[-1]
        sizes.append((hh // 2 + 1, ww // 2 + 1))   # k=2, s=2, p=1
    return sizes


def _meta(n, h, w):
    """Static per-layer metadata: spatial sizes, row counts, index-table cols."""
    sizes = _spatial_chain(h, w)
    m = [n * hh * ww for hh, ww in sizes]
    m_pad = [m[0]] + [_round_up(v, 8) for v in m[1:]]
    col0, c = {}, 0
    for l in (2, 3, 4):                     # each layer's dst block starts 128-aligned
        col0[l] = c
        c += _round_up(m_pad[l - 1], LANE)
    return sizes, m, m_pad, col0, c


# ---------------------------------------------------------------------------
# Fused kernel: 4x (k=2, s=2, p=1) conv + hardswish epilogue, all in VMEM.
# ---------------------------------------------------------------------------
def _make_fused_kernel(m_pad, col0):
    f32 = jnp.float32

    def kernel(p1_ref, wb_ref, idx_ref, o_ref, act1_ref):
        # ---- layer 1: pre-built im2col patches @ flattened weight + bias ----
        w1 = wb_ref[0:_W1_ROWS, :]                               # (12, 128)
        a1 = jnp.dot(p1_ref[...], w1, preferred_element_type=f32)
        act1_ref[...] = a1 + wb_ref[_BIAS_ROW0:_BIAS_ROW0 + 1, :]

        # ---- layers 2..4: gather matrices generated in-kernel from iota -----
        def conv_k2s2(act, l):
            m_in, m_out = act.shape[0], m_pad[l]
            base, c0 = _TAP_BASE[l], col0[l]
            out_ids = lax.broadcasted_iota(jnp.int32, (m_out, m_in), 0)
            acc = None
            for t in range(4):                                   # static unroll
                dst_t = idx_ref[t:t + 1, c0:c0 + m_in]           # (1, m_in) int32
                g_t = (out_ids == dst_t).astype(f32)             # one-hot gather
                taps = jnp.dot(g_t, act, preferred_element_type=f32)   # (m_out, 128)
                w_t = wb_ref[base + _TAP_ROWS * t: base + _TAP_ROWS * (t + 1), :]
                c = jnp.dot(taps[:, :_TAP_ROWS], w_t, preferred_element_type=f32)
                acc = c if acc is None else acc + c
            return acc + wb_ref[_BIAS_ROW0 + l - 1:_BIAS_ROW0 + l, :]

        act2 = conv_k2s2(act1_ref[...], 2)      # (128, 128) SSA
        act3 = conv_k2s2(act2, 3)               # (56, 128)  SSA
        v1 = conv_k2s2(act3, 4)                 # (24, 128)

        # ---- fused epilogue: v1 * clamp(v1 + 3, 0, 6) / 6 --------------------
        o_ref[...] = v1 * jnp.clip(v1 + 3.0, 0.0, 6.0) * (1.0 / 6.0)

    return kernel


# ---------------------------------------------------------------------------
# Wrapper-side constant preparation (weight slab, dst index tables).
# ---------------------------------------------------------------------------
def _im2col_l1(x_nhwc):
    """k=2, s=2, p=1 im2col of the raw input; columns ordered (kh, kw, cin)."""
    n, h, w, c = x_nhwc.shape
    ho, wo = h // 2 + 1, w // 2 + 1
    xp = jnp.pad(x_nhwc, ((0, 0), (1, 1), (1, 1), (0, 0)))
    cols = []
    for kh in range(2):
        for kw in range(2):
            cols.append(xp[:, kh:kh + 2 * ho:2, kw:kw + 2 * wo:2, :])
    patches = jnp.concatenate(cols, axis=-1)                 # (n, ho, wo, 4*c)
    return patches.reshape(n * ho * wo, 4 * c)


def _build_dst_table(n, hin, win, m_in_pad):
    """dst[t, r_in] = output row fed by input row r_in at tap t, or -1."""
    ho, wo = hin // 2 + 1, win // 2 + 1
    dst = np.full((4, m_in_pad), -1, np.int32)
    for kh in range(2):
        for kw in range(2):
            t = kh * 2 + kw
            for b in range(n):
                for oh in range(ho):
                    ih = 2 * oh - 1 + kh
                    if ih < 0 or ih >= hin:
                        continue
                    for ow in range(wo):
                        iw = 2 * ow - 1 + kw
                        if iw < 0 or iw >= win:
                            continue
                        dst[t, (b * hin + ih) * win + iw] = (b * ho + oh) * wo + ow
    return dst


def _build_weight_slab(torch_params):
    """Pack all conv weights + biases into one lane-dense (208, 128) f32 slab."""
    slab = np.zeros((_SLAB_ROWS, LANE), np.float32)
    w1 = np.asarray(torch_params[0][0])                      # (11, 3, 2, 2) OIHW
    slab[0:_W1_ROWS, 0:_COUT[0]] = np.transpose(w1, (2, 3, 1, 0)).reshape(_W1_ROWS, _COUT[0])
    for i in range(4):
        b = np.asarray(torch_params[i][1])
        slab[_BIAS_ROW0 + i, 0:_COUT[i]] = b
    for l in (2, 3, 4):
        w = np.asarray(torch_params[l - 1][0])
        cin, cout = _CIN[l - 1], _COUT[l - 1]
        wt = np.transpose(w, (2, 3, 1, 0)).reshape(4, cin, cout)   # tap = kh*2+kw
        base = _TAP_BASE[l]
        for t in range(4):
            slab[base + _TAP_ROWS * t: base + _TAP_ROWS * t + cin, 0:cout] = wt[t]
    return slab


def init_torch_like_params(key):
    """PyTorch Conv2d default init (U[-1/sqrt(fan_in), +1/sqrt(fan_in)]), OIHW."""
    params = []
    for cin, cout in zip(_CIN, _COUT):
        key, kw_key, kb_key = jax.random.split(key, 3)
        bound = 1.0 / float(np.sqrt(cin * 2 * 2))
        w = jax.random.uniform(kw_key, (cout, cin, 2, 2), jnp.float32,
                               minval=-bound, maxval=bound)
        b = jax.random.uniform(kb_key, (cout,), jnp.float32,
                               minval=-bound, maxval=bound)
        params.append((w, b))
    return params


def prepare_params(torch_params, n, h, w):
    sizes, m, m_pad, col0, idx_cols = _meta(n, h, w)
    idx = np.full((4, idx_cols), -1, np.int32)
    for l in (2, 3, 4):
        hin, win = sizes[l - 1]
        idx[:, col0[l]:col0[l] + m_pad[l - 1]] = _build_dst_table(n, hin, win, m_pad[l - 1])
    return {'wb': jnp.asarray(_build_weight_slab(torch_params)),
            'idx': jnp.asarray(idx)}


# ---------------------------------------------------------------------------
# Forward pass (single pallas_call, 3 operands).
# ---------------------------------------------------------------------------
def model_forward(x_nchw, prep):
    n, _, h, w = x_nchw.shape
    sizes, m, m_pad, col0, idx_cols = _meta(n, h, w)

    # layer-1 im2col on the raw input (450 x 12); row-pad only, no lane padding
    x_nhwc = jnp.transpose(x_nchw, (0, 2, 3, 1))
    p1 = _im2col_l1(x_nhwc)
    p1 = jnp.pad(p1, ((0, m_pad[1] - m[1]), (0, 0)))

    # advisory cost estimate for the XLA scheduler
    flops = 2 * m_pad[1] * p1.shape[1] * LANE
    for l in (2, 3, 4):
        flops += 4 * 2 * (m_pad[l] * m_pad[l - 1] * LANE + m_pad[l] * _TAP_ROWS * LANE)
    bytes_accessed = 4 * (p1.size + _SLAB_ROWS * LANE + 4 * idx_cols + m_pad[4] * LANE)

    out2d = pl.pallas_call(
        _make_fused_kernel(m_pad, col0),
        out_shape=jax.ShapeDtypeStruct((m_pad[4], LANE), jnp.float32),
        scratch_shapes=[pltpu.VMEM((m_pad[1], LANE), jnp.float32)],   # act1 only
        cost_estimate=pl.CostEstimate(flops=flops, transcendentals=0,
                                      bytes_accessed=bytes_accessed),
    )(p1, prep['wb'], prep['idx'])

    ho, wo = sizes[4]
    out = out2d[:m[4], :_COUT[3]].reshape(n, ho, wo, _COUT[3])
    return jnp.transpose(out, (0, 3, 1, 2))                  # NHWC -> NCHW

# TODO(synk): at larger batch/H/W, add a grid over the output-row axis (and
# "parallel" dimension_semantics for v7x's two TensorCores); unnecessary here.


# ---------------------------------------------------------------------------
# Pure-JAX reference (matches the PyTorch module semantics).
# ---------------------------------------------------------------------------
def reference_forward(x_nchw, torch_params):
    x = x_nchw
    for w, b in torch_params:
        x = jax.lax.conv_general_dilated(
            x, w, window_strides=(2, 2), padding=((1, 1), (1, 1)),
            dimension_numbers=('NCHW', 'OIHW', 'NCHW'),
            precision=jax.lax.Precision.HIGHEST)
        x = x + b.reshape(1, -1, 1, 1)
    return x * jnp.clip(x + 3.0, 0.0, 6.0) / 6.0


if __name__ == "__main__":
    key = jax.random.PRNGKey(0)
    kx, kp = jax.random.split(key)

    x1 = jax.random.normal(kx, (2, 3, 28, 28), jnp.float32)  # torch.randn(2,3,28,28)
    torch_params = init_torch_like_params(kp)
    prep = prepare_params(torch_params, n=2, h=28, w=28)

    out = jax.jit(model_forward)(x1, prep)
    out = jax.block_until_ready(out)

    assert out.shape == (2, 14, 3, 3), out.shape

    ref = reference_forward(x1, torch_params)
    max_err = float(jnp.max(jnp.abs(out - ref)))
    assert max_err < 5e-3, f"mismatch vs reference: max abs err = {max_err}"

    print("KERNEL_OK")
</pallas_src>

<mosaic_0001>
module attributes {stable_mosaic.version = 11 : i64} {
  func.func @kernel(%arg0: memref<456x12xf32, #tpu.memory_space<vmem>>, %arg1: memref<208x128xf32, #tpu.memory_space<vmem>>, %arg2: memref<4x768xi32, #tpu.memory_space<vmem>>, %arg3: memref<24x128xf32, #tpu.memory_space<vmem>>, %arg4: memref<456x128xf32, #tpu.memory_space<vmem>>) attributes {dimension_semantics = [], scalar_prefetch = 0 : i64, scratch_operands = 1 : i64, tpu.core_type = #tpu.core_type<tc>} {
    %c0 = arith.constant 0 : index
    %c0_0 = arith.constant 0 : index
    %0 = vector.load %arg1[%c0, %c0_0] : memref<208x128xf32, #tpu.memory_space<vmem>>, vector<12x128xf32>
    %c0_1 = arith.constant 0 : index
    %c0_2 = arith.constant 0 : index
    %1 = vector.load %arg0[%c0_1, %c0_2] : memref<456x12xf32, #tpu.memory_space<vmem>>, vector<456x12xf32>
    %cst = arith.constant dense<0.000000e+00> : vector<456x128xf32>
    %2 = tpu.matmul %1, %0, %cst {dimension_numbers = #tpu.dot_dimension_numbers<[1], [0], [0], [1], [0, 0, 1, 1], [], []>} : vector<456x12xf32>, vector<12x128xf32>, vector<456x128xf32> -> vector<456x128xf32>
    %c12 = arith.constant 12 : index
    %c0_3 = arith.constant 0 : index
    %3 = vector.load %arg1[%c12, %c0_3] : memref<208x128xf32, #tpu.memory_space<vmem>>, vector<1x128xf32>
    %4 = vector.broadcast %3 : vector<1x128xf32> to vector<456x128xf32>
    %5 = arith.addf %2, %4 : vector<456x128xf32>
    %c0_4 = arith.constant 0 : index
    %c0_5 = arith.constant 0 : index
    %6 = vector.load %arg4[%c0_4, %c0_5] : memref<456x128xf32, #tpu.memory_space<vmem>>, vector<456x128xf32>
    tpu.vector_store %arg4[%c0_4, %c0_5], %5 {strides = array<i32>} : memref<456x128xf32, #tpu.memory_space<vmem>>, vector<456x128xf32>,
    %c0_6 = arith.constant 0 : index
    %c0_7 = arith.constant 0 : index
    %7 = vector.load %arg4[%c0_6, %c0_7] : memref<456x128xf32, #tpu.memory_space<vmem>>, vector<456x128xf32>
    %8 = tpu.iota {dimensions = array<i32: 0>} : vector<128x456xi32>
    %c0_8 = arith.constant 0 : index
    %c0_9 = arith.constant 0 : index
    %9 = vector.load %arg2[%c0_8, %c0_9] : memref<4x768xi32, #tpu.memory_space<vmem>>, vector<1x456xi32>
    %10 = vector.broadcast %9 : vector<1x456xi32> to vector<128x456xi32>
    %11 = arith.cmpi eq, %8, %10 : vector<128x456xi32>
    %12 = arith.extui %11 : vector<128x456xi1> to vector<128x456xi32>
    %13 = arith.sitofp %12 : vector<128x456xi32> to vector<128x456xf32>
    %cst_10 = arith.constant dense<0.000000e+00> : vector<128x128xf32>
    %14 = tpu.matmul %13, %7, %cst_10 {dimension_numbers = #tpu.dot_dimension_numbers<[1], [0], [0], [1], [0, 0, 1, 1], [], []>} : vector<128x456xf32>, vector<456x128xf32>, vector<128x128xf32> -> vector<128x128xf32>
    %c16 = arith.constant 16 : index
    %c0_11 = arith.constant 0 : index
    %15 = vector.load %arg1[%c16, %c0_11] : memref<208x128xf32, #tpu.memory_space<vmem>>, vector<16x128xf32>
    %16 = vector.extract_strided_slice %14 {offsets = [0, 0], sizes = [128, 16], strides = [1, 1]} : vector<128x128xf32> to vector<128x16xf32>
    %cst_12 = arith.constant dense<0.000000e+00> : vector<128x128xf32>
    %17 = tpu.matmul %16, %15, %cst_12 {dimension_numbers = #tpu.dot_dimension_numbers<[1], [0], [0], [1], [0, 0, 1, 1], [], []>} : vector<128x16xf32>, vector<16x128xf32>, vector<128x128xf32> -> vector<128x128xf32>
    %c1 = arith.constant 1 : index
    %c0_13 = arith.constant 0 : index
    %18 = vector.load %arg2[%c1, %c0_13] : memref<4x768xi32, #tpu.memory_space<vmem>>, vector<1x456xi32>
    %19 = vector.broadcast %18 : vector<1x456xi32> to vector<128x456xi32>
    %20 = arith.cmpi eq, %8, %19 : vector<128x456xi32>
    %21 = arith.extui %20 : vector<128x456xi1> to vector<128x456xi32>
    %22 = arith.sitofp %21 : vector<128x456xi32> to vector<128x456xf32>
    %cst_14 = arith.constant dense<0.000000e+00> : vector<128x128xf32>
    %23 = tpu.matmul %22, %7, %cst_14 {dimension_numbers = #tpu.dot_dimension_numbers<[1], [0], [0], [1], [0, 0, 1, 1], [], []>} : vector<128x456xf32>, vector<456x128xf32>, vector<128x128xf32> -> vector<128x128xf32>
    %c32 = arith.constant 32 : index
    %c0_15 = arith.constant 0 : index
    %24 = vector.load %arg1[%c32, %c0_15] : memref<208x128xf32, #tpu.memory_space<vmem>>, vector<16x128xf32>
    %25 = vector.extract_strided_slice %23 {offsets = [0, 0], sizes = [128, 16], strides = [1, 1]} : vector<128x128xf32> to vector<128x16xf32>
    %cst_16 = arith.constant dense<0.000000e+00> : vector<128x128xf32>
    %26 = tpu.matmul %25, %24, %cst_16 {dimension_numbers = #tpu.dot_dimension_numbers<[1], [0], [0], [1], [0, 0, 1, 1], [], []>} : vector<128x16xf32>, vector<16x128xf32>, vector<128x128xf32> -> vector<128x128xf32>
    %27 = arith.addf %17, %26 : vector<128x128xf32>
    %c2 = arith.constant 2 : index
    %c0_17 = arith.constant 0 : index
    %28 = vector.load %arg2[%c2, %c0_17] : memref<4x768xi32, #tpu.memory_space<vmem>>, vector<1x456xi32>
    %29 = vector.broadcast %28 : vector<1x456xi32> to vector<128x456xi32>
    %30 = arith.cmpi eq, %8, %29 : vector<128x456xi32>
    %31 = arith.extui %30 : vector<128x456xi1> to vector<128x456xi32>
    %32 = arith.sitofp %31 : vector<128x456xi32> to vector<128x456xf32>
    %cst_18 = arith.constant dense<0.000000e+00> : vector<128x128xf32>
    %33 = tpu.matmul %32, %7, %cst_18 {dimension_numbers = #tpu.dot_dimension_numbers<[1], [0], [0], [1], [0, 0, 1, 1], [], []>} : vector<128x456xf32>, vector<456x128xf32>, vector<128x128xf32> -> vector<128x128xf32>
    %c48 = arith.constant 48 : index
    %c0_19 = arith.constant 0 : index
    %34 = vector.load %arg1[%c48, %c0_19] : memref<208x128xf32, #tpu.memory_space<vmem>>, vector<16x128xf32>
    %35 = vector.extract_strided_slice %33 {offsets = [0, 0], sizes = [128, 16], strides = [1, 1]} : vector<128x128xf32> to vector<128x16xf32>
    %cst_20 = arith.constant dense<0.000000e+00> : vector<128x128xf32>
    %36 = tpu.matmul %35, %34, %cst_20 {dimension_numbers = #tpu.dot_dimension_numbers<[1], [0], [0], [1], [0, 0, 1, 1], [], []>} : vector<128x16xf32>, vector<16x128xf32>, vector<128x128xf32> -> vector<128x128xf32>
    %37 = arith.addf %27, %36 : vector<128x128xf32>
    %c3 = arith.constant 3 : index
    %c0_21 = arith.constant 0 : index
    %38 = vector.load %arg2[%c3, %c0_21] : memref<4x768xi32, #tpu.memory_space<vmem>>, vector<1x456xi32>
    %39 = vector.broadcast %38 : vector<1x456xi32> to vector<128x456xi32>
    %40 = arith.cmpi eq, %8, %39 : vector<128x456xi32>
    %41 = arith.extui %40 : vector<128x456xi1> to vector<128x456xi32>
    %42 = arith.sitofp %41 : vector<128x456xi32> to vector<128x456xf32>
    %cst_22 = arith.constant dense<0.000000e+00> : vector<128x128xf32>
    %43 = tpu.matmul %42, %7, %cst_22 {dimension_numbers = #tpu.dot_dimension_numbers<[1], [0], [0], [1], [0, 0, 1, 1], [], []>} : vector<128x456xf32>, vector<456x128xf32>, vector<128x128xf32> -> vector<128x128xf32>
    %c64 = arith.constant 64 : index
    %c0_23 = arith.constant 0 : index
    %44 = vector.load %arg1[%c64, %c0_23] : memref<208x128xf32, #tpu.memory_space<vmem>>, vector<16x128xf32>
    %45 = vector.extract_strided_slice %43 {offsets = [0, 0], sizes = [128, 16], strides = [1, 1]} : vector<128x128xf32> to vector<128x16xf32>
    %cst_24 = arith.constant dense<0.000000e+00> : vector<128x128xf32>
    %46 = tpu.matmul %45, %44, %cst_24 {dimension_numbers = #tpu.dot_dimension_numbers<[1], [0], [0], [1], [0, 0, 1, 1], [], []>} : vector<128x16xf32>, vector<16x128xf32>, vector<128x128xf32> -> vector<128x128xf32>
    %47 = arith.addf %37, %46 : vector<128x128xf32>
    %c13 = arith.constant 13 : index
    %c0_25 = arith.constant 0 : index
    %48 = vector.load %arg1[%c13, %c0_25] : memref<208x128xf32, #tpu.memory_space<vmem>>, vector<1x128xf32>
    %49 = vector.broadcast %48 : vector<1x128xf32> to vector<128x128xf32>
    %50 = arith.addf %47, %49 : vector<128x128xf32>
    %51 = tpu.iota {dimensions = array<i32: 0>} : vector<56x128xi32>
    %c0_26 = arith.constant 0 : index
    %c512 = arith.constant 512 : index
    %52 = vector.load %arg2[%c0_26, %c512] : memref<4x768xi32, #tpu.memory_space<vmem>>, vector<1x128xi32>
    %53 = vector.broadcast %52 : vector<1x128xi32> to vector<56x128xi32>
    %54 = arith.cmpi eq, %51, %53 : vector<56x128xi32>
    %55 = arith.extui %54 : vector<56x128xi1> to vector<56x128xi32>
    %56 = arith.sitofp %55 : vector<56x128xi32> to vector<56x128xf32>
    %cst_27 = arith.constant dense<0.000000e+00> : vector<56x128xf32>
    %57 = tpu.matmul %56, %50, %cst_27 {dimension_numbers = #tpu.dot_dimension_numbers<[1], [0], [0], [1], [0, 0, 1, 1], [], []>} : vector<56x128xf32>, vector<128x128xf32>, vector<56x128xf32> -> vector<56x128xf32>
    %c80 = arith.constant 80 : index
    %c0_28 = arith.constant 0 : index
    %58 = vector.load %arg1[%c80, %c0_28] : memref<208x128xf32, #tpu.memory_space<vmem>>, vector<16x128xf32>
    %59 = vector.extract_strided_slice %57 {offsets = [0, 0], sizes = [56, 16], strides = [1, 1]} : vector<56x128xf32> to vector<56x16xf32>
    %cst_29 = arith.constant dense<0.000000e+00> : vector<56x128xf32>
    %60 = tpu.matmul %59, %58, %cst_29 {dimension_numbers = #tpu.dot_dimension_numbers<[1], [0], [0], [1], [0, 0, 1, 1], [], []>} : vector<56x16xf32>, vector<16x128xf32>, vector<56x128xf32> -> vector<56x128xf32>
    %c1_30 = arith.constant 1 : index
    %c512_31 = arith.constant 512 : index
    %61 = vector.load %arg2[%c1_30, %c512_31] : memref<4x768xi32, #tpu.memory_space<vmem>>, vector<1x128xi32>
    %62 = vector.broadcast %61 : vector<1x128xi32> to vector<56x128xi32>
    %63 = arith.cmpi eq, %51, %62 : vector<56x128xi32>
    %64 = arith.extui %63 : vector<56x128xi1> to vector<56x128xi32>
    %65 = arith.sitofp %64 : vector<56x128xi32> to vector<56x128xf32>
    %cst_32 = arith.constant dense<0.000000e+00> : vector<56x128xf32>
    %66 = tpu.matmul %65, %50, %cst_32 {dimension_numbers = #tpu.dot_dimension_numbers<[1], [0], [0], [1], [0, 0, 1, 1], [], []>} : vector<56x128xf32>, vector<128x128xf32>, vector<56x128xf32> -> vector<56x128xf32>
    %c96 = arith.constant 96 : index
    %c0_33 = arith.constant 0 : index
    %67 = vector.load %arg1[%c96, %c0_33] : memref<208x128xf32, #tpu.memory_space<vmem>>, vector<16x128xf32>
    %68 = vector.extract_strided_slice %66 {offsets = [0, 0], sizes = [56, 16], strides = [1, 1]} : vector<56x128xf32> to vector<56x16xf32>
    %cst_34 = arith.constant dense<0.000000e+00> : vector<56x128xf32>
    %69 = tpu.matmul %68, %67, %cst_34 {dimension_numbers = #tpu.dot_dimension_numbers<[1], [0], [0], [1], [0, 0, 1, 1], [], []>} : vector<56x16xf32>, vector<16x128xf32>, vector<56x128xf32> -> vector<56x128xf32>
    %70 = arith.addf %60, %69 : vector<56x128xf32>
    %c2_35 = arith.constant 2 : index
    %c512_36 = arith.constant 512 : index
    %71 = vector.load %arg2[%c2_35, %c512_36] : memref<4x768xi32, #tpu.memory_space<vmem>>, vector<1x128xi32>
    %72 = vector.broadcast %71 : vector<1x128xi32> to vector<56x128xi32>
    %73 = arith.cmpi eq, %51, %72 : vector<56x128xi32>
    %74 = arith.extui %73 : vector<56x128xi1> to vector<56x128xi32>
    %75 = arith.sitofp %74 : vector<56x128xi32> to vector<56x128xf32>
    %cst_37 = arith.constant dense<0.000000e+00> : vector<56x128xf32>
    %76 = tpu.matmul %75, %50, %cst_37 {dimension_numbers = #tpu.dot_dimension_numbers<[1], [0], [0], [1], [0, 0, 1, 1], [], []>} : vector<56x128xf32>, vector<128x128xf32>, vector<56x128xf32> -> vector<56x128xf32>
    %c112 = arith.constant 112 : index
    %c0_38 = arith.constant 0 : index
    %77 = vector.load %arg1[%c112, %c0_38] : memref<208x128xf32, #tpu.memory_space<vmem>>, vector<16x128xf32>
    %78 = vector.extract_strided_slice %76 {offsets = [0, 0], sizes = [56, 16], strides = [1, 1]} : vector<56x128xf32> to vector<56x16xf32>
    %cst_39 = arith.constant dense<0.000000e+00> : vector<56x128xf32>
    %79 = tpu.matmul %78, %77, %cst_39 {dimension_numbers = #tpu.dot_dimension_numbers<[1], [0], [0], [1], [0, 0, 1, 1], [], []>} : vector<56x16xf32>, vector<16x128xf32>, vector<56x128xf32> -> vector<56x128xf32>
    %80 = arith.addf %70, %79 : vector<56x128xf32>
    %c3_40 = arith.constant 3 : index
    %c512_41 = arith.constant 512 : index
    %81 = vector.load %arg2[%c3_40, %c512_41] : memref<4x768xi32, #tpu.memory_space<vmem>>, vector<1x128xi32>
    %82 = vector.broadcast %81 : vector<1x128xi32> to vector<56x128xi32>
    %83 = arith.cmpi eq, %51, %82 : vector<56x128xi32>
    %84 = arith.extui %83 : vector<56x128xi1> to vector<56x128xi32>
    %85 = arith.sitofp %84 : vector<56x128xi32> to vector<56x128xf32>
    %cst_42 = arith.constant dense<0.000000e+00> : vector<56x128xf32>
    %86 = tpu.matmul %85, %50, %cst_42 {dimension_numbers = #tpu.dot_dimension_numbers<[1], [0], [0], [1], [0, 0, 1, 1], [], []>} : vector<56x128xf32>, vector<128x128xf32>, vector<56x128xf32> -> vector<56x128xf32>
    %c128 = arith.constant 128 : index
    %c0_43 = arith.constant 0 : index
    %87 = vector.load %arg1[%c128, %c0_43] : memref<208x128xf32, #tpu.memory_space<vmem>>, vector<16x128xf32>
    %88 = vector.extract_strided_slice %86 {offsets = [0, 0], sizes = [56, 16], strides = [1, 1]} : vector<56x128xf32> to vector<56x16xf32>
    %cst_44 = arith.constant dense<0.000000e+00> : vector<56x128xf32>
    %89 = tpu.matmul %88, %87, %cst_44 {dimension_numbers = #tpu.dot_dimension_numbers<[1], [0], [0], [1], [0, 0, 1, 1], [], []>} : vector<56x16xf32>, vector<16x128xf32>, vector<56x128xf32> -> vector<56x128xf32>
    %90 = arith.addf %80, %89 : vector<56x128xf32>
    %c14 = arith.constant 14 : index
    %c0_45 = arith.constant 0 : index
    %91 = vector.load %arg1[%c14, %c0_45] : memref<208x128xf32, #tpu.memory_space<vmem>>, vector<1x128xf32>
    %92 = vector.broadcast %91 : vector<1x128xf32> to vector<56x128xf32>
    %93 = arith.addf %90, %92 : vector<56x128xf32>
    %94 = tpu.iota {dimensions = array<i32: 0>} : vector<24x56xi32>
    %c0_46 = arith.constant 0 : index
    %c640 = arith.constant 640 : index
    %95 = vector.load %arg2[%c0_46, %c640] : memref<4x768xi32, #tpu.memory_space<vmem>>, vector<1x56xi32>
    %96 = vector.broadcast %95 : vector<1x56xi32> to vector<24x56xi32>
    %97 = arith.cmpi eq, %94, %96 : vector<24x56xi32>
    %98 = arith.extui %97 : vector<24x56xi1> to vector<24x56xi32>
    %99 = arith.sitofp %98 : vector<24x56xi32> to vector<24x56xf32>
    %cst_47 = arith.constant dense<0.000000e+00> : vector<24x128xf32>
    %100 = tpu.matmul %99, %93, %cst_47 {dimension_numbers = #tpu.dot_dimension_numbers<[1], [0], [0], [1], [0, 0, 1, 1], [], []>} : vector<24x56xf32>, vector<56x128xf32>, vector<24x128xf32> -> vector<24x128xf32>
    %c144 = arith.constant 144 : index
    %c0_48 = arith.constant 0 : index
    %101 = vector.load %arg1[%c144, %c0_48] : memref<208x128xf32, #tpu.memory_space<vmem>>, vector<16x128xf32>
    %102 = vector.extract_strided_slice %100 {offsets = [0, 0], sizes = [24, 16], strides = [1, 1]} : vector<24x128xf32> to vector<24x16xf32>
    %cst_49 = arith.constant dense<0.000000e+00> : vector<24x128xf32>
    %103 = tpu.matmul %102, %101, %cst_49 {dimension_numbers = #tpu.dot_dimension_numbers<[1], [0], [0], [1], [0, 0, 1, 1], [], []>} : vector<24x16xf32>, vector<16x128xf32>, vector<24x128xf32> -> vector<24x128xf32>
    %c1_50 = arith.constant 1 : index
    %c640_51 = arith.constant 640 : index
    %104 = vector.load %arg2[%c1_50, %c640_51] : memref<4x768xi32, #tpu.memory_space<vmem>>, vector<1x56xi32>
    %105 = vector.broadcast %104 : vector<1x56xi32> to vector<24x56xi32>
    %106 = arith.cmpi eq, %94, %105 : vector<24x56xi32>
    %107 = arith.extui %106 : vector<24x56xi1> to vector<24x56xi32>
    %108 = arith.sitofp %107 : vector<24x56xi32> to vector<24x56xf32>
    %cst_52 = arith.constant dense<0.000000e+00> : vector<24x128xf32>
    %109 = tpu.matmul %108, %93, %cst_52 {dimension_numbers = #tpu.dot_dimension_numbers<[1], [0], [0], [1], [0, 0, 1, 1], [], []>} : vector<24x56xf32>, vector<56x128xf32>, vector<24x128xf32> -> vector<24x128xf32>
    %c160 = arith.constant 160 : index
    %c0_53 = arith.constant 0 : index
    %110 = vector.load %arg1[%c160, %c0_53] : memref<208x128xf32, #tpu.memory_space<vmem>>, vector<16x128xf32>
    %111 = vector.extract_strided_slice %109 {offsets = [0, 0], sizes = [24, 16], strides = [1, 1]} : vector<24x128xf32> to vector<24x16xf32>
    %cst_54 = arith.constant dense<0.000000e+00> : vector<24x128xf32>
    %112 = tpu.matmul %111, %110, %cst_54 {dimension_numbers = #tpu.dot_dimension_numbers<[1], [0], [0], [1], [0, 0, 1, 1], [], []>} : vector<24x16xf32>, vector<16x128xf32>, vector<24x128xf32> -> vector<24x128xf32>
    %113 = arith.addf %103, %112 : vector<24x128xf32>
    %c2_55 = arith.constant 2 : index
    %c640_56 = arith.constant 640 : index
    %114 = vector.load %arg2[%c2_55, %c640_56] : memref<4x768xi32, #tpu.memory_space<vmem>>, vector<1x56xi32>
    %115 = vector.broadcast %114 : vector<1x56xi32> to vector<24x56xi32>
    %116 = arith.cmpi eq, %94, %115 : vector<24x56xi32>
    %117 = arith.extui %116 : vector<24x56xi1> to vector<24x56xi32>
    %118 = arith.sitofp %117 : vector<24x56xi32> to vector<24x56xf32>
    %cst_57 = arith.constant dense<0.000000e+00> : vector<24x128xf32>
    %119 = tpu.matmul %118, %93, %cst_57 {dimension_numbers = #tpu.dot_dimension_numbers<[1], [0], [0], [1], [0, 0, 1, 1], [], []>} : vector<24x56xf32>, vector<56x128xf32>, vector<24x128xf32> -> vector<24x128xf32>
    %c176 = arith.constant 176 : index
    %c0_58 = arith.constant 0 : index
    %120 = vector.load %arg1[%c176, %c0_58] : memref<208x128xf32, #tpu.memory_space<vmem>>, vector<16x128xf32>
    %121 = vector.extract_strided_slice %119 {offsets = [0, 0], sizes = [24, 16], strides = [1, 1]} : vector<24x128xf32> to vector<24x16xf32>
    %cst_59 = arith.constant dense<0.000000e+00> : vector<24x128xf32>
    %122 = tpu.matmul %121, %120, %cst_59 {dimension_numbers = #tpu.dot_dimension_numbers<[1], [0], [0], [1], [0, 0, 1, 1], [], []>} : vector<24x16xf32>, vector<16x128xf32>, vector<24x128xf32> -> vector<24x128xf32>
    %123 = arith.addf %113, %122 : vector<24x128xf32>
    %c3_60 = arith.constant 3 : index
    %c640_61 = arith.constant 640 : index
    %124 = vector.load %arg2[%c3_60, %c640_61] : memref<4x768xi32, #tpu.memory_space<vmem>>, vector<1x56xi32>
    %125 = vector.broadcast %124 : vector<1x56xi32> to vector<24x56xi32>
    %126 = arith.cmpi eq, %94, %125 : vector<24x56xi32>
    %127 = arith.extui %126 : vector<24x56xi1> to vector<24x56xi32>
    %128 = arith.sitofp %127 : vector<24x56xi32> to vector<24x56xf32>
    %cst_62 = arith.constant dense<0.000000e+00> : vector<24x128xf32>
    %129 = tpu.matmul %128, %93, %cst_62 {dimension_numbers = #tpu.dot_dimension_numbers<[1], [0], [0], [1], [0, 0, 1, 1], [], []>} : vector<24x56xf32>, vector<56x128xf32>, vector<24x128xf32> -> vector<24x128xf32>
    %c192 = arith.constant 192 : index
    %c0_63 = arith.constant 0 : index
    %130 = vector.load %arg1[%c192, %c0_63] : memref<208x128xf32, #tpu.memory_space<vmem>>, vector<16x128xf32>
    %131 = vector.extract_strided_slice %129 {offsets = [0, 0], sizes = [24, 16], strides = [1, 1]} : vector<24x128xf32> to vector<24x16xf32>
    %cst_64 = arith.constant dense<0.000000e+00> : vector<24x128xf32>
    %132 = tpu.matmul %131, %130, %cst_64 {dimension_numbers = #tpu.dot_dimension_numbers<[1], [0], [0], [1], [0, 0, 1, 1], [], []>} : vector<24x16xf32>, vector<16x128xf32>, vector<24x128xf32> -> vector<24x128xf32>
    %133 = arith.addf %123, %132 : vector<24x128xf32>
    %c15 = arith.constant 15 : index
    %c0_65 = arith.constant 0 : index
    %134 = vector.load %arg1[%c15, %c0_65] : memref<208x128xf32, #tpu.memory_space<vmem>>, vector<1x128xf32>
    %135 = vector.broadcast %134 : vector<1x128xf32> to vector<24x128xf32>
    %136 = arith.addf %133, %135 : vector<24x128xf32>
    %cst_66 = arith.constant 3.000000e+00 : f32
    %137 = vector.broadcast %cst_66 : f32 to vector<24x128xf32>
    %138 = arith.addf %136, %137 : vector<24x128xf32>
    %cst_67 = arith.constant 0.000000e+00 : f32
    %cst_68 = arith.constant 6.000000e+00 : f32
    %139 = vector.broadcast %cst_67 : f32 to vector<24x128xf32>
    %140 = arith.maximumf %139, %138 : vector<24x128xf32>
    %141 = vector.broadcast %cst_68 : f32 to vector<24x128xf32>
    %142 = arith.minimumf %141, %140 : vector<24x128xf32>
    %143 = arith.mulf %136, %142 : vector<24x128xf32>
    %cst_69 = arith.constant 0.166666672 : f32
    %144 = vector.broadcast %cst_69 : f32 to vector<24x128xf32>
    %145 = arith.mulf %143, %144 : vector<24x128xf32>
    %c0_70 = arith.constant 0 : index
    %c0_71 = arith.constant 0 : index
    %146 = vector.load %arg3[%c0_70, %c0_71] : memref<24x128xf32, #tpu.memory_space<vmem>>, vector<24x128xf32>
    tpu.vector_store %arg3[%c0_70, %c0_71], %145 {strides = array<i32>} : memref<24x128xf32, #tpu.memory_space<vmem>>, vector<24x128xf32>,
    return
  }
}

</mosaic_0001>

<llo_original>
// kernel: model_forward.1
$region0: #{model_forward.1}
  #allocation0 [shape = 'u32[]', space=smem, size = 0x4, offset = 0x4, fixed_abs, tag = 'smem constant byte address 0x4 - core index']
  #allocation1 [shape = 'u32[144,128]{1,0:T(1,128)}', space=vmem, size = 0x12000, scoped, tag = 'internal scratch']
  #allocation2 [shape = 'f32[456,128]{1,0:T(8,128)}', space=vmem, size = 0x39000, scoped, tag = 'scratch operand']
  %s0 = inlined_call_operand.vmem [shape: f32[456,12], index: 0, kind: input, shape index: {}]
  %s1 = inlined_call_operand.vmem [shape: f32[208,128], index: 1, kind: input, shape index: {}]
  %s2 = inlined_call_operand.vmem [shape: s32[4,768], index: 2, kind: input, shape index: {}]
  %s3 = inlined_call_operand.vmem [shape: f32[24,128], index: 3, kind: output, shape index: {}]
  %s4 = sld [smem:[#allocation0]]
  $region22: #{model_forward.1} parent=0
    _
  %s6 = ssub.s32 1, %s4
  %s7 = scalar_select 0, %s6, %s4
  // Predicated region
  $region2: #{model_forward.1} parent=0 // pred_check
    _
  $region3: #{model_forward.1} parent=0 // pred_check_branch
    %9 = sbr.rel (0) target = $region5
  $region4: #{model_forward.1} parent=0 // pred_region
    _
  $region5: #{model_forward.1} parent=0 // pred_fallthru
    _
  // Predicated region
  $region6: #{model_forward.1} parent=0 // pred_check
    _
  $region7: #{model_forward.1} parent=0 // pred_check_branch
    %11 = sbr.rel (0) target = $region9
  $region8: #{model_forward.1} parent=0 // pred_region
    _
  $region9: #{model_forward.1} parent=0 // pred_fallthru
    _
  // Predicated region
  $region10: #{model_forward.1} parent=0 // pred_check
    _
  $region11: #{model_forward.1} parent=0 // pred_check_branch
    %13 = sbr.rel (0) target = $region13
  $region12: #{model_forward.1} parent=0 // pred_region
    _
  $region13: #{model_forward.1} parent=0 // pred_fallthru
    _
  %v14 = vld [vmem:[%s1] sm:$0xff]
  %v15 = vld [vmem:[%s1 + $0x8] sm:$0xf]
  %v16 = vld [vmem:[%s0] sm:$0xff]
  %v17 = vld [vmem:[%s0 + $0x8] sm:$0xff]
  %v18 = vld [vmem:[%s0 + $0x10] sm:$0xff]
  %v19 = vld [vmem:[%s0 + $0x18] sm:$0xff]
  %v20 = vld [vmem:[%s0 + $0x20] sm:$0xff]
  %v21 = vld [vmem:[%s0 + $0x28] sm:$0xff]
  %v22 = vld [vmem:[%s0 + $0x30] sm:$0xff]
  %v23 = vld [vmem:[%s0 + $0x38] sm:$0xff]
  %v24 = vld [vmem:[%s0 + $0x40] sm:$0xff]
  %v25 = vld [vmem:[%s0 + $0x48] sm:$0xff]
  %v26 = vld [vmem:[%s0 + $0x50] sm:$0xff]
  %v27 = vld [vmem:[%s0 + $0x58] sm:$0xff]
  %v28 = vld [vmem:[%s0 + $0x60] sm:$0xff]
  %v29 = vld [vmem:[%s0 + $0x68] sm:$0xff]
  %v30 = vld [vmem:[%s0 + $0x70] sm:$0xff]
  %v31 = vld [vmem:[%s0 + $0x78] sm:$0xff]
  %v32 = vld [vmem:[%s0 + $0x80] sm:$0xff]
  %v33 = vld [vmem:[%s0 + $0x88] sm:$0xff]
  %v34 = vld [vmem:[%s0 + $0x90] sm:$0xff]
  %v35 = vld [vmem:[%s0 + $0x98] sm:$0xff]
  %v36 = vld [vmem:[%s0 + $0xa0] sm:$0xff]
  %v37 = vld [vmem:[%s0 + $0xa8] sm:$0xff]
  %v38 = vld [vmem:[%s0 + $0xb0] sm:$0xff]
  %v39 = vld [vmem:[%s0 + $0xb8] sm:$0xff]
  %v40 = vld [vmem:[%s0 + $0xc0] sm:$0xff]
  %v41 = vld [vmem:[%s0 + $0xc8] sm:$0xff]
  %v42 = vld [vmem:[%s0 + $0xd0] sm:$0xff]
  %v43 = vld [vmem:[%s0 + $0xd8] sm:$0xff]
  %v44 = vld [vmem:[%s0 + $0xe0] sm:$0xff]
  %v45 = vld [vmem:[%s0 + $0xe8] sm:$0xff]
  %v46 = vld [vmem:[%s0 + $0xf0] sm:$0xff]
  %v47 = vld [vmem:[%s0 + $0xf8] sm:$0xff]
  %v48 = vld [vmem:[%s0 + $0x100] sm:$0xff]
  %v49 = vld [vmem:[%s0 + $0x108] sm:$0xff]
  %v50 = vld [vmem:[%s0 + $0x110] sm:$0xff]
  %v51 = vld [vmem:[%s0 + $0x118] sm:$0xff]
  %v52 = vld [vmem:[%s0 + $0x120] sm:$0xff]
  %v53 = vld [vmem:[%s0 + $0x128] sm:$0xff]
  %v54 = vld [vmem:[%s0 + $0x130] sm:$0xff]
  %v55 = vld [vmem:[%s0 + $0x138] sm:$0xff]
  %v56 = vld [vmem:[%s0 + $0x140] sm:$0xff]
  %v57 = vld [vmem:[%s0 + $0x148] sm:$0xff]
  %v58 = vld [vmem:[%s0 + $0x150] sm:$0xff]
  %v59 = vld [vmem:[%s0 + $0x158] sm:$0xff]
  %v60 = vld [vmem:[%s0 + $0x160] sm:$0xff]
  %v61 = vld [vmem:[%s0 + $0x168] sm:$0xff]
  %v62 = vld [vmem:[%s0 + $0x170] sm:$0xff]
  %v63 = vld [vmem:[%s0 + $0x178] sm:$0xff]
  %v64 = vld [vmem:[%s0 + $0x180] sm:$0xff]
  %v65 = vld [vmem:[%s0 + $0x188] sm:$0xff]
  %v66 = vld [vmem:[%s0 + $0x190] sm:$0xff]
  %v67 = vld [vmem:[%s0 + $0x198] sm:$0xff]
  %v68 = vld [vmem:[%s0 + $0x1a0] sm:$0xff]
  %v69 = vld [vmem:[%s0 + $0x1a8] sm:$0xff]
  %v70 = vld [vmem:[%s0 + $0x1b0] sm:$0xff]
  %v71 = vld [vmem:[%s0 + $0x1b8] sm:$0xff]
  %v72 = vld [vmem:[%s0 + $0x1c0] sm:$0xff]
  %v73 = vld [vmem:[%s1 + $0xc] sm:$0x1]
  %v74 = vlaneseq
  %v75 = vshrl.u32 %v74, 7
  %v76 = vsub.s32 0, %v75
  %v77 = vrot.slane %v73, %v76
  %vm78 = vcmask 97280
  %v80 = vsel %vm78, %v16, 0
  %v83 = vsel %vm78, %v17, 0
  %v86 = vsel %vm78, %v18, 0
  %v89 = vsel %vm78, %v19, 0
  %v92 = vsel %vm78, %v20, 0
  %v95 = vsel %vm78, %v21, 0
  %v98 = vsel %vm78, %v22, 0
  %v101 = vsel %vm78, %v23, 0
  %v104 = vsel %vm78, %v24, 0
  %v107 = vsel %vm78, %v25, 0
  %v110 = vsel %vm78, %v26, 0
  %v113 = vsel %vm78, %v27, 0
  %v116 = vsel %vm78, %v28, 0
  %v119 = vsel %vm78, %v29, 0
  %v122 = vsel %vm78, %v30, 0
  %v125 = vsel %vm78, %v31, 0
  %v128 = vsel %vm78, %v32, 0
  %v131 = vsel %vm78, %v33, 0
  %v134 = vsel %vm78, %v34, 0
  %v137 = vsel %vm78, %v35, 0
  %v140 = vsel %vm78, %v36, 0
  %v143 = vsel %vm78, %v37, 0
  %v146 = vsel %vm78, %v38, 0
  %v149 = vsel %vm78, %v39, 0
  %v152 = vsel %vm78, %v40, 0
  %v155 = vsel %vm78, %v41, 0
  %v158 = vsel %vm78, %v42, 0
  %v161 = vsel %vm78, %v43, 0
  %v164 = vsel %vm78, %v44, 0
  %v167 = vsel %vm78, %v45, 0
  %v170 = vsel %vm78, %v46, 0
  %v173 = vsel %vm78, %v47, 0
  %v176 = vsel %vm78, %v48, 0
  %v179 = vsel %vm78, %v49, 0
  %v182 = vsel %vm78, %v50, 0
  %v185 = vsel %vm78, %v51, 0
  %v188 = vsel %vm78, %v52, 0
  %v191 = vsel %vm78, %v53, 0
  %v194 = vsel %vm78, %v54, 0
  %v197 = vsel %vm78, %v55, 0
  %v200 = vsel %vm78, %v56, 0
  %v203 = vsel %vm78, %v57, 0
  %v206 = vsel %vm78, %v58, 0
  %v209 = vsel %vm78, %v59, 0
  %v212 = vsel %vm78, %v60, 0
  %v215 = vsel %vm78, %v61, 0
  %v218 = vsel %vm78, %v62, 0
  %v221 = vsel %vm78, %v63, 0
  %v224 = vsel %vm78, %v64, 0
  %v227 = vsel %vm78, %v65, 0
  %v230 = vsel %vm78, %v66, 0
  %v233 = vsel %vm78, %v67, 0
  %v236 = vsel %vm78, %v68, 0
  %v239 = vsel %vm78, %v69, 0
  %v242 = vsel %vm78, %v70, 0
  %v245 = vsel %vm78, %v71, 0
  %v248 = vsel %vm78, %v72, 0
  %vm250 = vcmask 1043456
  %v252 = vsel %vm250, %v15, 0
  %254 = vmatprep.subr.mxu0 0.0
  %255 = vmatpush1.msra.mxu0 %v14
  %256 = vmatprep.subr.mxu0 0.0
  %257 = vmatpush1.msra.mxu0 %v252
  %258 = vmatprep.subr.mxu0 0.0
  %259 = vmatpush1.msra.mxu0 0.0
  %260 = vmatprep.subr.mxu0 0.0
  %261 = vmatpush1.msra.mxu0 0.0
  %262 = vmatprep.subr.mxu0 0.0
  %263 = vmatpush1.msra.mxu0 0.0
  %264 = vmatprep.subr.mxu0 0.0
  %265 = vmatpush1.msra.mxu0 0.0
  %266 = vmatprep.subr.mxu0 0.0
  %267 = vmatpush1.msra.mxu0 0.0
  %268 = vmatprep.subr.mxu0 0.0
  %269 = vmatpush1.msra.mxu0 0.0
  %270 = vmatprep.subr.mxu0 0.0
  %271 = vmatpush1.msra.mxu0 0.0
  %272 = vmatprep.subr.mxu0 0.0
  %273 = vmatpush1.msra.mxu0 0.0
  %274 = vmatprep.subr.mxu0 0.0
  %275 = vmatpush1.msra.mxu0 0.0
  %276 = vmatprep.subr.mxu0 0.0
  %277 = vmatpush1.msra.mxu0 0.0
  %278 = vmatprep.subr.mxu0 0.0
  %279 = vmatpush1.msra.mxu0 0.0
  %280 = vmatprep.subr.mxu0 0.0
  %281 = vmatpush1.msra.mxu0 0.0
  %282 = vmatprep.subr.mxu0 0.0
  %283 = vmatpush1.msra.mxu0 0.0
  %284 = vmatprep.subr.mxu0 0.0
  %285 = vmatpush1.msra.mxu0 0.0
  %286 = vmatprep.subr.mxu0 0.0
  %287 = vmatpush1.msra.mxu0 0.0
  %288 = vmatprep.subr.mxu0 0.0
  %289 = vmatpush1.msra.mxu0 0.0
  %290 = vmatprep.subr.mxu0 0.0
  %291 = vmatpush1.msra.mxu0 0.0
  %292 = vmatprep.subr.mxu0 0.0
  %293 = vmatpush1.msra.mxu0 0.0
  %294 = vmatprep.subr.mxu0 0.0
  %295 = vmatpush1.msra.mxu0 0.0
  %296 = vmatprep.subr.mxu0 0.0
  %297 = vmatpush1.msra.mxu0 0.0
  %298 = vmatprep.subr.mxu0 0.0
  %299 = vmatpush1.msra.mxu0 0.0
  %300 = vmatprep.subr.mxu0 0.0
  %301 = vmatpush1.msra.mxu0 0.0
  %302 = vmatprep.subr.mxu0 0.0
  %303 = vmatpush1.msra.mxu0 0.0
  %304 = vmatprep.subr.mxu0 0.0
  %305 = vmatpush1.msra.mxu0 0.0
  %306 = vmatprep.subr.mxu0 0.0
  %307 = vmatpush1.msra.mxu0 0.0
  %308 = vmatprep.subr.mxu0 0.0
  %309 = vmatpush1.msra.mxu0 0.0
  %310 = vmatprep.subr.mxu0 0.0
  %311 = vmatpush1.msra.mxu0 0.0
  %312 = vmatprep.subr.mxu0 0.0
  %313 = vmatpush1.msra.mxu0 0.0
  %314 = vmatprep.subr.mxu0 0.0
  %315 = vmatpush1.msra.mxu0 0.0
  %316 = vmatprep.subr.mxu0 0.0
  %317 = vmatpush1.msra.mxu0 0.0
  %318 = vmatprep.mubr.f32.mxu0 0.0
  %319 = vmatmul.mubr.f32.gmra.mrb[0].mxu0 %v80
  %v320 = vpop.f32.mrb[0].mxu0
  %v321 = vadd.f32 %v77, %v320
  %v322 = vpop.f32.mrb[0].mxu0
  %323 = vmatprep.mubr.f32.mxu0 0.0
  %324 = vmatmul.mubr.f32.gmra.mrb[0].mxu0 %v83
  %v325 = vpop.f32.mrb[0].mxu0
  %v326 = vadd.f32 %v77, %v325
  %v327 = vpop.f32.mrb[0].mxu0
  %328 = vmatprep.mubr.f32.mxu0 0.0
  %329 = vmatmul.mubr.f32.gmra.mrb[0].mxu0 %v86
  %v330 = vpop.f32.mrb[0].mxu0
  %v331 = vadd.f32 %v77, %v330
  %v332 = vpop.f32.mrb[0].mxu0
  %333 = vmatprep.mubr.f32.mxu0 0.0
  %334 = vmatmul.mubr.f32.gmra.mrb[0].mxu0 %v89
  %v335 = vpop.f32.mrb[0].mxu0
  %v336 = vadd.f32 %v77, %v335
  %v337 = vpop.f32.mrb[0].mxu0
  %338 = vmatprep.mubr.f32.mxu0 0.0
  %339 = vmatmul.mubr.f32.gmra.mrb[0].mxu0 %v92
  %v340 = vpop.f32.mrb[0].mxu0
  %v341 = vadd.f32 %v77, %v340
  %v342 = vpop.f32.mrb[0].mxu0
  %343 = vmatprep.mubr.f32.mxu0 0.0
  %344 = vmatmul.mubr.f32.gmra.mrb[0].mxu0 %v95
  %v345 = vpop.f32.mrb[0].mxu0
  %v346 = vadd.f32 %v77, %v345
  %v347 = vpop.f32.mrb[0].mxu0
  %348 = vmatprep.mubr.f32.mxu0 0.0
  %349 = vmatmul.mubr.f32.gmra.mrb[0].mxu0 %v98
  %v350 = vpop.f32.mrb[0].mxu0
  %v351 = vadd.f32 %v77, %v350
  %v352 = vpop.f32.mrb[0].mxu0
  %353 = vmatprep.mubr.f32.mxu0 0.0
  %354 = vmatmul.mubr.f32.gmra.mrb[0].mxu0 %v101
  %v355 = vpop.f32.mrb[0].mxu0
  %v356 = vadd.f32 %v77, %v355
  %v357 = vpop.f32.mrb[0].mxu0
  %358 = vmatprep.mubr.f32.mxu0 0.0
  %359 = vmatmul.mubr.f32.gmra.mrb[0].mxu0 %v104
  %v360 = vpop.f32.mrb[0].mxu0
  %v361 = vadd.f32 %v77, %v360
  %v362 = vpop.f32.mrb[0].mxu0
  %363 = vmatprep.mubr.f32.mxu0 0.0
  %364 = vmatmul.mubr.f32.gmra.mrb[0].mxu0 %v107
  %v365 = vpop.f32.mrb[0].mxu0
  %v366 = vadd.f32 %v77, %v365
  %v367 = vpop.f32.mrb[0].mxu0
  %368 = vmatprep.mubr.f32.mxu0 0.0
  %369 = vmatmul.mubr.f32.gmra.mrb[0].mxu0 %v110
  %v370 = vpop.f32.mrb[0].mxu0
  %v371 = vadd.f32 %v77, %v370
  %v372 = vpop.f32.mrb[0].mxu0
  %373 = vmatprep.mubr.f32.mxu0 0.0
  %374 = vmatmul.mubr.f32.gmra.mrb[0].mxu0 %v113
  %v375 = vpop.f32.mrb[0].mxu0
  %v376 = vadd.f32 %v77, %v375
  %v377 = vpop.f32.mrb[0].mxu0
  %378 = vmatprep.mubr.f32.mxu0 0.0
  %379 = vmatmul.mubr.f32.gmra.mrb[0].mxu0 %v116
  %v380 = vpop.f32.mrb[0].mxu0
  %v381 = vadd.f32 %v77, %v380
  %v382 = vpop.f32.mrb[0].mxu0
  %383 = vmatprep.mubr.f32.mxu0 0.0
  %384 = vmatmul.mubr.f32.gmra.mrb[0].mxu0 %v119
  %v385 = vpop.f32.mrb[0].mxu0
  %v386 = vadd.f32 %v77, %v385
  %v387 = vpop.f32.mrb[0].mxu0
  %388 = vmatprep.mubr.f32.mxu0 0.0
  %389 = vmatmul.mubr.f32.gmra.mrb[0].mxu0 %v122
  %v390 = vpop.f32.mrb[0].mxu0
  %v391 = vadd.f32 %v77, %v390
  %v392 = vpop.f32.mrb[0].mxu0
  %393 = vmatprep.mubr.f32.mxu0 0.0
  %394 = vmatmul.mubr.f32.gmra.mrb[0].mxu0 %v125
  %v395 = vpop.f32.mrb[0].mxu0
  %v396 = vadd.f32 %v77, %v395
  %v397 = vpop.f32.mrb[0].mxu0
  %398 = vmatprep.mubr.f32.mxu0 0.0
  %399 = vmatmul.mubr.f32.gmra.mrb[0].mxu0 %v128
  %v400 = vpop.f32.mrb[0].mxu0
  %v401 = vadd.f32 %v77, %v400
  %v402 = vpop.f32.mrb[0].mxu0
  %403 = vmatprep.mubr.f32.mxu0 0.0
  %404 = vmatmul.mubr.f32.gmra.mrb[0].mxu0 %v131
  %v405 = vpop.f32.mrb[0].mxu0
  %v406 = vadd.f32 %v77, %v405
  %v407 = vpop.f32.mrb[0].mxu0
  %408 = vmatprep.mubr.f32.mxu0 0.0
  %409 = vmatmul.mubr.f32.gmra.mrb[0].mxu0 %v134
  %v410 = vpop.f32.mrb[0].mxu0
  %v411 = vadd.f32 %v77, %v410
  %v412 = vpop.f32.mrb[0].mxu0
  %413 = vmatprep.mubr.f32.mxu0 0.0
  %414 = vmatmul.mubr.f32.gmra.mrb[0].mxu0 %v137
  %v415 = vpop.f32.mrb[0].mxu0
  %v416 = vadd.f32 %v77, %v415
  %v417 = vpop.f32.mrb[0].mxu0
  %418 = vmatprep.mubr.f32.mxu0 0.0
  %419 = vmatmul.mubr.f32.gmra.mrb[0].mxu0 %v140
  %v420 = vpop.f32.mrb[0].mxu0
  %v421 = vadd.f32 %v77, %v420
  %v422 = vpop.f32.mrb[0].mxu0
  %423 = vmatprep.mubr.f32.mxu0 0.0
  %424 = vmatmul.mubr.f32.gmra.mrb[0].mxu0 %v143
  %v425 = vpop.f32.mrb[0].mxu0
  %v426 = vadd.f32 %v77, %v425
  %v427 = vpop.f32.mrb[0].mxu0
  %428 = vmatprep.mubr.f32.mxu0 0.0
  %429 = vmatmul.mubr.f32.gmra.mrb[0].mxu0 %v146
  %v430 = vpop.f32.mrb[0].mxu0
  %v431 = vadd.f32 %v77, %v430
  %v432 = vpop.f32.mrb[0].mxu0
  %433 = vmatprep.mubr.f32.mxu0 0.0
  %434 = vmatmul.mubr.f32.gmra.mrb[0].mxu0 %v149
  %v435 = vpop.f32.mrb[0].mxu0
  %v436 = vadd.f32 %v77, %v435
  %v437 = vpop.f32.mrb[0].mxu0
  %438 = vmatprep.mubr.f32.mxu0 0.0
  %439 = vmatmul.mubr.f32.gmra.mrb[0].mxu0 %v152
  %v440 = vpop.f32.mrb[0].mxu0
  %v441 = vadd.f32 %v77, %v440
  %v442 = vpop.f32.mrb[0].mxu0
  %443 = vmatprep.mubr.f32.mxu0 0.0
  %444 = vmatmul.mubr.f32.gmra.mrb[0].mxu0 %v155
  %v445 = vpop.f32.mrb[0].mxu0
  %v446 = vadd.f32 %v77, %v445
  %v447 = vpop.f32.mrb[0].mxu0
  %448 = vmatprep.mubr.f32.mxu0 0.0
  %449 = vmatmul.mubr.f32.gmra.mrb[0].mxu0 %v158
  %v450 = vpop.f32.mrb[0].mxu0
  %v451 = vadd.f32 %v77, %v450
  %v452 = vpop.f32.mrb[0].mxu0
  %453 = vmatprep.mubr.f32.mxu0 0.0
  %454 = vmatmul.mubr.f32.gmra.mrb[0].mxu0 %v161
  %v455 = vpop.f32.mrb[0].mxu0
  %v456 = vadd.f32 %v77, %v455
  %v457 = vpop.f32.mrb[0].mxu0
  %458 = vmatprep.mubr.f32.mxu0 0.0
  %459 = vmatmul.mubr.f32.gmra.mrb[0].mxu0 %v164
  %v460 = vpop.f32.mrb[0].mxu0
  %v461 = vadd.f32 %v77, %v460
  %v462 = vpop.f32.mrb[0].mxu0
  %463 = vmatprep.mubr.f32.mxu0 0.0
  %464 = vmatmul.mubr.f32.gmra.mrb[0].mxu0 %v167
  %v465 = vpop.f32.mrb[0].mxu0
  %v466 = vadd.f32 %v77, %v465
  %v467 = vpop.f32.mrb[0].mxu0
  %468 = vmatprep.mubr.f32.mxu0 0.0
  %469 = vmatmul.mubr.f32.gmra.mrb[0].mxu0 %v170
  %v470 = vpop.f32.mrb[0].mxu0
  %v471 = vadd.f32 %v77, %v470
  %v472 = vpop.f32.mrb[0].mxu0
  %473 = vmatprep.mubr.f32.mxu0 0.0
  %474 = vmatmul.mubr.f32.gmra.mrb[0].mxu0 %v173
  %v475 = vpop.f32.mrb[0].mxu0
  %v476 = vadd.f32 %v77, %v475
  %v477 = vpop.f32.mrb[0].mxu0
  %478 = vmatprep.mubr.f32.mxu0 0.0
  %479 = vmatmul.mubr.f32.gmra.mrb[0].mxu0 %v176
  %v480 = vpop.f32.mrb[0].mxu0
  %v481 = vadd.f32 %v77, %v480
  %v482 = vpop.f32.mrb[0].mxu0
  %483 = vmatprep.mubr.f32.mxu0 0.0
  %484 = vmatmul.mubr.f32.gmra.mrb[0].mxu0 %v179
  %v485 = vpop.f32.mrb[0].mxu0
  %v486 = vadd.f32 %v77, %v485
  %v487 = vpop.f32.mrb[0].mxu0
  %488 = vmatprep.mubr.f32.mxu0 0.0
  %489 = vmatmul.mubr.f32.gmra.mrb[0].mxu0 %v182
  %v490 = vpop.f32.mrb[0].mxu0
  %v491 = vadd.f32 %v77, %v490
  %v492 = vpop.f32.mrb[0].mxu0
  %493 = vmatprep.mubr.f32.mxu0 0.0
  %494 = vmatmul.mubr.f32.gmra.mrb[0].mxu0 %v185
  %v495 = vpop.f32.mrb[0].mxu0
  %v496 = vadd.f32 %v77, %v495
  %v497 = vpop.f32.mrb[0].mxu0
  %498 = vmatprep.mubr.f32.mxu0 0.0
  %499 = vmatmul.mubr.f32.gmra.mrb[0].mxu0 %v188
  %v500 = vpop.f32.mrb[0].mxu0
  %v501 = vadd.f32 %v77, %v500
  %v502 = vpop.f32.mrb[0].mxu0
  %503 = vmatprep.mubr.f32.mxu0 0.0
  %504 = vmatmul.mubr.f32.gmra.mrb[0].mxu0 %v191
  %v505 = vpop.f32.mrb[0].mxu0
  %v506 = vadd.f32 %v77, %v505
  %v507 = vpop.f32.mrb[0].mxu0
  %508 = vmatprep.mubr.f32.mxu0 0.0
  %509 = vmatmul.mubr.f32.gmra.mrb[0].mxu0 %v194
  %v510 = vpop.f32.mrb[0].mxu0
  %v511 = vadd.f32 %v77, %v510
  %v512 = vpop.f32.mrb[0].mxu0
  %513 = vmatprep.mubr.f32.mxu0 0.0
  %514 = vmatmul.mubr.f32.gmra.mrb[0].mxu0 %v197
  %v515 = vpop.f32.mrb[0].mxu0
  %v516 = vadd.f32 %v77, %v515
  %v517 = vpop.f32.mrb[0].mxu0
  %518 = vmatprep.mubr.f32.mxu0 0.0
  %519 = vmatmul.mubr.f32.gmra.mrb[0].mxu0 %v200
  %v520 = vpop.f32.mrb[0].mxu0
  %v521 = vadd.f32 %v77, %v520
  %v522 = vpop.f32.mrb[0].mxu0
  %523 = vmatprep.mubr.f32.mxu0 0.0
  %524 = vmatmul.mubr.f32.gmra.mrb[0].mxu0 %v203
  %v525 = vpop.f32.mrb[0].mxu0
  %v526 = vadd.f32 %v77, %v525
  %v527 = vpop.f32.mrb[0].mxu0
  %528 = vmatprep.mubr.f32.mxu0 0.0
  %529 = vmatmul.mubr.f32.gmra.mrb[0].mxu0 %v206
  %v530 = vpop.f32.mrb[0].mxu0
  %v531 = vadd.f32 %v77, %v530
  %v532 = vpop.f32.mrb[0].mxu0
  %533 = vmatprep.mubr.f32.mxu0 0.0
  %534 = vmatmul.mubr.f32.gmra.mrb[0].mxu0 %v209
  %v535 = vpop.f32.mrb[0].mxu0
  %v536 = vadd.f32 %v77, %v535
  %v537 = vpop.f32.mrb[0].mxu0
  %538 = vmatprep.mubr.f32.mxu0 0.0
  %539 = vmatmul.mubr.f32.gmra.mrb[0].mxu0 %v212
  %v540 = vpop.f32.mrb[0].mxu0
  %v541 = vadd.f32 %v77, %v540
  %v542 = vpop.f32.mrb[0].mxu0
  %543 = vmatprep.mubr.f32.mxu0 0.0
  %544 = vmatmul.mubr.f32.gmra.mrb[0].mxu0 %v215
  %v545 = vpop.f32.mrb[0].mxu0
  %v546 = vadd.f32 %v77, %v545
  %v547 = vpop.f32.mrb[0].mxu0
  %548 = vmatprep.mubr.f32.mxu0 0.0
  %549 = vmatmul.mubr.f32.gmra.mrb[0].mxu0 %v218
  %v550 = vpop.f32.mrb[0].mxu0
  %v551 = vadd.f32 %v77, %v550
  %v552 = vpop.f32.mrb[0].mxu0
  %553 = vmatprep.mubr.f32.mxu0 0.0
  %554 = vmatmul.mubr.f32.gmra.mrb[0].mxu0 %v221
  %v555 = vpop.f32.mrb[0].mxu0
  %v556 = vadd.f32 %v77, %v555
  %v557 = vpop.f32.mrb[0].mxu0
  %558 = vmatprep.mubr.f32.mxu0 0.0
  %559 = vmatmul.mubr.f32.gmra.mrb[0].mxu0 %v224
  %v560 = vpop.f32.mrb[0].mxu0
  %v561 = vadd.f32 %v77, %v560
  %v562 = vpop.f32.mrb[0].mxu0
  %563 = vmatprep.mubr.f32.mxu0 0.0
  %564 = vmatmul.mubr.f32.gmra.mrb[0].mxu0 %v227
  %v565 = vpop.f32.mrb[0].mxu0
  %v566 = vadd.f32 %v77, %v565
  %v567 = vpop.f32.mrb[0].mxu0
  %568 = vmatprep.mubr.f32.mxu0 0.0
  %569 = vmatmul.mubr.f32.gmra.mrb[0].mxu0 %v230
  %v570 = vpop.f32.mrb[0].mxu0
  %v571 = vadd.f32 %v77, %v570
  %v572 = vpop.f32.mrb[0].mxu0
  %573 = vmatprep.mubr.f32.mxu0 0.0
  %574 = vmatmul.mubr.f32.gmra.mrb[0].mxu0 %v233
  %v575 = vpop.f32.mrb[0].mxu0
  %v576 = vadd.f32 %v77, %v575
  %v577 = vpop.f32.mrb[0].mxu0
  %578 = vmatprep.mubr.f32.mxu0 0.0
  %579 = vmatmul.mubr.f32.gmra.mrb[0].mxu0 %v236
  %v580 = vpop.f32.mrb[0].mxu0
  %v581 = vadd.f32 %v77, %v580
  %v582 = vpop.f32.mrb[0].mxu0
  %583 = vmatprep.mubr.f32.mxu0 0.0
  %584 = vmatmul.mubr.f32.gmra.mrb[0].mxu0 %v239
  %v585 = vpop.f32.mrb[0].mxu0
  %v586 = vadd.f32 %v77, %v585
  %v587 = vpop.f32.mrb[0].mxu0
  %588 = vmatprep.mubr.f32.mxu0 0.0
  %589 = vmatmul.mubr.f32.gmra.mrb[0].mxu0 %v242
  %v590 = vpop.f32.mrb[0].mxu0
  %v591 = vadd.f32 %v77, %v590
  %v592 = vpop.f32.mrb[0].mxu0
  %593 = vmatprep.mubr.f32.mxu0 0.0
  %594 = vmatmul.mubr.f32.gmra.mrb[0].mxu0 %v245
  %v595 = vpop.f32.mrb[0].mxu0
  %v596 = vadd.f32 %v77, %v595
  %v597 = vpop.f32.mrb[0].mxu0
  %598 = vmatprep.mubr.f32.mxu0 0.0
  %599 = vmatmul.mubr.f32.gmra.mrb[0].mxu0 %v248
  %v600 = vpop.f32.mrb[0].mxu0
  %v601 = vadd.f32 %v77, %v600
  %v602 = vpop.f32.mrb[0].mxu0
  %603 = vdwg.mxu0
  %604 = vst [vmem:[#allocation2] sm:$0xff] %v321
  %605 = vst [vmem:[#allocation2 + $0x8] sm:$0xff] %v326
  %606 = vst [vmem:[#allocation2 + $0x10] sm:$0xff] %v331
  %607 = vst [vmem:[#allocation2 + $0x18] sm:$0xff] %v336
  %608 = vst [vmem:[#allocation2 + $0x20] sm:$0xff] %v341
  %609 = vst [vmem:[#allocation2 + $0x28] sm:$0xff] %v346
  %610 = vst [vmem:[#allocation2 + $0x30] sm:$0xff] %v351
  %611 = vst [vmem:[#allocation2 + $0x38] sm:$0xff] %v356
  %612 = vst [vmem:[#allocation2 + $0x40] sm:$0xff] %v361
  %613 = vst [vmem:[#allocation2 + $0x48] sm:$0xff] %v366
  %614 = vst [vmem:[#allocation2 + $0x50] sm:$0xff] %v371
  %615 = vst [vmem:[#allocation2 + $0x58] sm:$0xff] %v376
  %616 = vst [vmem:[#allocation2 + $0x60] sm:$0xff] %v381
  %617 = vst [vmem:[#allocation2 + $0x68] sm:$0xff] %v386
  %618 = vst [vmem:[#allocation2 + $0x70] sm:$0xff] %v391
  %619 = vst [vmem:[#allocation2 + $0x78] sm:$0xff] %v396
  %620 = vst [vmem:[#allocation2 + $0x80] sm:$0xff] %v401
  %621 = vst [vmem:[#allocation2 + $0x88] sm:$0xff] %v406
  %622 = vst [vmem:[#allocation2 + $0x90] sm:$0xff] %v411
  %623 = vst [vmem:[#allocation2 + $0x98] sm:$0xff] %v416
  %624 = vst [vmem:[#allocation2 + $0xa0] sm:$0xff] %v421
  %625 = vst [vmem:[#allocation2 + $0xa8] sm:$0xff] %v426
  %626 = vst [vmem:[#allocation2 + $0xb0] sm:$0xff] %v431
  %627 = vst [vmem:[#allocation2 + $0xb8] sm:$0xff] %v436
  %628 = vst [vmem:[#allocation2 + $0xc0] sm:$0xff] %v441
  %629 = vst [vmem:[#allocation2 + $0xc8] sm:$0xff] %v446
  %630 = vst [vmem:[#allocation2 + $0xd0] sm:$0xff] %v451
  %631 = vst [vmem:[#allocation2 + $0xd8] sm:$0xff] %v456
  %632 = vst [vmem:[#allocation2 + $0xe0] sm:$0xff] %v461
  %633 = vst [vmem:[#allocation2 + $0xe8] sm:$0xff] %v466
  %634 = vst [vmem:[#allocation2 + $0xf0] sm:$0xff] %v471
  %635 = vst [vmem:[#allocation2 + $0xf8] sm:$0xff] %v476
  %636 = vst [vmem:[#allocation2 + $0x100] sm:$0xff] %v481
  %637 = vst [vmem:[#allocation2 + $0x108] sm:$0xff] %v486
  %638 = vst [vmem:[#allocation2 + $0x110] sm:$0xff] %v491
  %639 = vst [vmem:[#allocation2 + $0x118] sm:$0xff] %v496
  %640 = vst [vmem:[#allocation2 + $0x120] sm:$0xff] %v501
  %641 = vst [vmem:[#allocation2 + $0x128] sm:$0xff] %v506
  %642 = vst [vmem:[#allocation2 + $0x130] sm:$0xff] %v511
  %643 = vst [vmem:[#allocation2 + $0x138] sm:$0xff] %v516
  %644 = vst [vmem:[#allocation2 + $0x140] sm:$0xff] %v521
  %645 = vst [vmem:[#allocation2 + $0x148] sm:$0xff] %v526
  %646 = vst [vmem:[#allocation2 + $0x150] sm:$0xff] %v531
  %647 = vst [vmem:[#allocation2 + $0x158] sm:$0xff] %v536
  %648 = vst [vmem:[#allocation2 + $0x160] sm:$0xff] %v541
  %649 = vst [vmem:[#allocation2 + $0x168] sm:$0xff] %v546
  %650 = vst [vmem:[#allocation2 + $0x170] sm:$0xff] %v551
  %651 = vst [vmem:[#allocation2 + $0x178] sm:$0xff] %v556
  %652 = vst [vmem:[#allocation2 + $0x180] sm:$0xff] %v561
  %653 = vst [vmem:[#allocation2 + $0x188] sm:$0xff] %v566
  %654 = vst [vmem:[#allocation2 + $0x190] sm:$0xff] %v571
  %655 = vst [vmem:[#allocation2 + $0x198] sm:$0xff] %v576
  %656 = vst [vmem:[#allocation2 + $0x1a0] sm:$0xff] %v581
  %657 = vst [vmem:[#allocation2 + $0x1a8] sm:$0xff] %v586
  %658 = vst [vmem:[#allocation2 + $0x1b0] sm:$0xff] %v591
  %659 = vst [vmem:[#allocation2 + $0x1b8] sm:$0xff] %v596
  %660 = vst [vmem:[#allocation2 + $0x1c0] sm:$0xff] %v601
  %v661 = vld [vmem:[#allocation2] sm:$0xff]
  %v662 = vld [vmem:[#allocation2 + $0x8] sm:$0xff]
  %v663 = vld [vmem:[#allocation2 + $0x10] sm:$0xff]
  %v664 = vld [vmem:[#allocation2 + $0x18] sm:$0xff]
  %v665 = vld [vmem:[#allocation2 + $0x20] sm:$0xff]
  %v666 = vld [vmem:[#allocation2 + $0x28] sm:$0xff]
  %v667 = vld [vmem:[#allocation2 + $0x30] sm:$0xff]
  %v668 = vld [vmem:[#allocation2 + $0x38] sm:$0xff]
  %v669 = vld [vmem:[#allocation2 + $0x40] sm:$0xff]
  %v670 = vld [vmem:[#allocation2 + $0x48] sm:$0xff]
  %v671 = vld [vmem:[#allocation2 + $0x50] sm:$0xff]
  %v672 = vld [vmem:[#allocation2 + $0x58] sm:$0xff]
  %v673 = vld [vmem:[#allocation2 + $0x60] sm:$0xff]
  %v674 = vld [vmem:[#allocation2 + $0x68] sm:$0xff]
  %v675 = vld [vmem:[#allocation2 + $0x70] sm:$0xff]
  %v676 = vld [vmem:[#allocation2 + $0x78] sm:$0xff]
  %v677 = vld [vmem:[#allocation2 + $0x80] sm:$0xff]
  %v678 = vld [vmem:[#allocation2 + $0x88] sm:$0xff]
  %v679 = vld [vmem:[#allocation2 + $0x90] sm:$0xff]
  %v680 = vld [vmem:[#allocation2 + $0x98] sm:$0xff]
  %v681 = vld [vmem:[#allocation2 + $0xa0] sm:$0xff]
  %v682 = vld [vmem:[#allocation2 + $0xa8] sm:$0xff]
  %v683 = vld [vmem:[#allocation2 + $0xb0] sm:$0xff]
  %v684 = vld [vmem:[#allocation2 + $0xb8] sm:$0xff]
  %v685 = vld [vmem:[#allocation2 + $0xc0] sm:$0xff]
  %v686 = vld [vmem:[#allocation2 + $0xc8] sm:$0xff]
  %v687 = vld [vmem:[#allocation2 + $0xd0] sm:$0xff]
  %v688 = vld [vmem:[#allocation2 + $0xd8] sm:$0xff]
  %v689 = vld [vmem:[#allocation2 + $0xe0] sm:$0xff]
  %v690 = vld [vmem:[#allocation2 + $0xe8] sm:$0xff]
  %v691 = vld [vmem:[#allocation2 + $0xf0] sm:$0xff]
  %v692 = vld [vmem:[#allocation2 + $0xf8] sm:$0xff]
  %v693 = vld [vmem:[#allocation2 + $0x100] sm:$0xff]
  %v694 = vld [vmem:[#allocation2 + $0x108] sm:$0xff]
  %v695 = vld [vmem:[#allocation2 + $0x110] sm:$0xff]
  %v696 = vld [vmem:[#allocation2 + $0x118] sm:$0xff]
  %v697 = vld [vmem:[#allocation2 + $0x120] sm:$0xff]
  %v698 = vld [vmem:[#allocation2 + $0x128] sm:$0xff]
  %v699 = vld [vmem:[#allocation2 + $0x130] sm:$0xff]
  %v700 = vld [vmem:[#allocation2 + $0x138] sm:$0xff]
  %v701 = vld [vmem:[#allocation2 + $0x140] sm:$0xff]
  %v702 = vld [vmem:[#allocation2 + $0x148] sm:$0xff]
  %v703 = vld [vmem:[#allocation2 + $0x150] sm:$0xff]
  %v704 = vld [vmem:[#allocation2 + $0x158] sm:$0xff]
  %v705 = vld [vmem:[#allocation2 + $0x160] sm:$0xff]
  %v706 = vld [vmem:[#allocation2 + $0x168] sm:$0xff]
  %v707 = vld [vmem:[#allocation2 + $0x170] sm:$0xff]
  %v708 = vld [vmem:[#allocation2 + $0x178] sm:$0xff]
  %v709 = vld [vmem:[#allocation2 + $0x180] sm:$0xff]
  %v710 = vld [vmem:[#allocation2 + $0x188] sm:$0xff]
  %v711 = vld [vmem:[#allocation2 + $0x190] sm:$0xff]
  %v712 = vld [vmem:[#allocation2 + $0x198] sm:$0xff]
  %v713 = vld [vmem:[#allocation2 + $0x1a0] sm:$0xff]
  %v714 = vld [vmem:[#allocation2 + $0x1a8] sm:$0xff]
  %v715 = vld [vmem:[#allocation2 + $0x1b0] sm:$0xff]
  %v716 = vld [vmem:[#allocation2 + $0x1b8] sm:$0xff]
  %v717 = vld [vmem:[#allocation2 + $0x1c0] sm:$0xff]
  %v718 = vlaneseq
  %v719 = vshrl.u32 %v718, 7
  %v720 = vadd.s32 %v719, 8
  %v721 = vadd.s32 %v719, 16
  %v722 = vadd.s32 %v719, 24
  %v723 = vadd.s32 %v719, 32
  %v724 = vadd.s32 %v719, 40
  %v725 = vadd.s32 %v719, 48
  %v726 = vadd.s32 %v719, 56
  %v727 = vadd.s32 %v719, 64
  %v728 = vadd.s32 %v719, 72
  %v729 = vadd.s32 %v719, 80
  %v730 = vadd.s32 %v719, 88
  %v731 = vadd.s32 %v719, 96
  %v732 = vadd.s32 %v719, 104
  %v733 = vadd.s32 %v719, 112
  %v734 = vadd.s32 %v719, 120
  %v735 = vld [vmem:[%s2] ss:$4 sm:$0xf]
  %v736 = vlaneseq
  %v737 = vshrl.u32 %v736, 7
  %v738 = vsub.s32 0, %v737
  %v739 = vrot.slane %v735, %v738
  %v740 = vlaneseq
  %v741 = vshrl.u32 %v740, 7
  %v742 = vsub.s32 1, %v741
  %v743 = vrot.slane %v735, %v742
  %v744 = vlaneseq
  %v745 = vshrl.u32 %v744, 7
  %v746 = vsub.s32 2, %v745
  %v747 = vrot.slane %v735, %v746
  %v748 = vlaneseq
  %v749 = vshrl.u32 %v748, 7
  %v750 = vsub.s32 3, %v749
  %v751 = vrot.slane %v735, %v750
  %vm752 = vcmp.eq.s32.totalorder %v719, %v739
  %vm753 = vcmp.eq.s32.totalorder %v719, %v743
  %vm754 = vcmp.eq.s32.totalorder %v719, %v747
  %vm755 = vcmp.eq.s32.totalorder %v719, %v751
  %vm756 = vcmp.eq.s32.totalorder %v720, %v739
  %vm757 = vcmp.eq.s32.totalorder %v720, %v743
  %vm758 = vcmp.eq.s32.totalorder %v720, %v747
  %vm759 = vcmp.eq.s32.totalorder %v720, %v751
  %vm760 = vcmp.eq.s32.totalorder %v721, %v739
  %vm761 = vcmp.eq.s32.totalorder %v721, %v743
  %vm762 = vcmp.eq.s32.totalorder %v721, %v747
  %vm763 = vcmp.eq.s32.totalorder %v721, %v751
  %vm764 = vcmp.eq.s32.totalorder %v722, %v739
  %vm765 = vcmp.eq.s32.totalorder %v722, %v743
  %vm766 = vcmp.eq.s32.totalorder %v722, %v747
  %vm767 = vcmp.eq.s32.totalorder %v722, %v751
  %vm768 = vcmp.eq.s32.totalorder %v723, %v739
  %vm769 = vcmp.eq.s32.totalorder %v723, %v743
  %vm770 = vcmp.eq.s32.totalorder %v723, %v747
  %vm771 = vcmp.eq.s32.totalorder %v723, %v751
  %vm772 = vcmp.eq.s32.totalorder %v724, %v739
  %vm773 = vcmp.eq.s32.totalorder %v724, %v743
  %vm774 = vcmp.eq.s32.totalorder %v724, %v747
  %vm775 = vcmp.eq.s32.totalorder %v724, %v751
  %vm776 = vcmp.eq.s32.totalorder %v725, %v739
  %vm777 = vcmp.eq.s32.totalorder %v725, %v743
  %vm778 = vcmp.eq.s32.totalorder %v725, %v747
  %vm779 = vcmp.eq.s32.totalorder %v725, %v751
  %vm780 = vcmp.eq.s32.totalorder %v726, %v739
  %vm781 = vcmp.eq.s32.totalorder %v726, %v743
  %vm782 = vcmp.eq.s32.totalorder %v726, %v747
  %vm783 = vcmp.eq.s32.totalorder %v726, %v751
  %vm784 = vcmp.eq.s32.totalorder %v727, %v739
  %vm785 = vcmp.eq.s32.totalorder %v727, %v743
  %vm786 = vcmp.eq.s32.totalorder %v727, %v747
  %vm787 = vcmp.eq.s32.totalorder %v727, %v751
  %vm788 = vcmp.eq.s32.totalorder %v728, %v739
  %vm789 = vcmp.eq.s32.totalorder %v728, %v743
  %vm790 = vcmp.eq.s32.totalorder %v728, %v747
  %vm791 = vcmp.eq.s32.totalorder %v728, %v751
  %vm792 = vcmp.eq.s32.totalorder %v729, %v739
  %vm793 = vcmp.eq.s32.totalorder %v729, %v743
  %vm794 = vcmp.eq.s32.totalorder %v729, %v747
  %vm795 = vcmp.eq.s32.totalorder %v729, %v751
  %vm796 = vcmp.eq.s32.totalorder %v730, %v739
  %vm797 = vcmp.eq.s32.totalorder %v730, %v743
  %vm798 = vcmp.eq.s32.totalorder %v730, %v747
  %vm799 = vcmp.eq.s32.totalorder %v730, %v751
  %vm800 = vcmp.eq.s32.totalorder %v731, %v739
  %vm801 = vcmp.eq.s32.totalorder %v731, %v743
  %vm802 = vcmp.eq.s32.totalorder %v731, %v747
  %vm803 = vcmp.eq.s32.totalorder %v731, %v751
  %vm804 = vcmp.eq.s32.totalorder %v732, %v739
  %vm805 = vcmp.eq.s32.totalorder %v732, %v743
  %vm806 = vcmp.eq.s32.totalorder %v732, %v747
  %vm807 = vcmp.eq.s32.totalorder %v732, %v751
  %vm808 = vcmp.eq.s32.totalorder %v733, %v739
  %vm809 = vcmp.eq.s32.totalorder %v733, %v743
  %vm810 = vcmp.eq.s32.totalorder %v733, %v747
  %vm811 = vcmp.eq.s32.totalorder %v733, %v751
  %vm812 = vcmp.eq.s32.totalorder %v734, %v739
  %vm813 = vcmp.eq.s32.totalorder %v734, %v743
  %vm814 = vcmp.eq.s32.totalorder %v734, %v747
  %vm815 = vcmp.eq.s32.totalorder %v734, %v751
  %v816 = vsel %vm752, 1, 0
  %v817 = vsel %vm753, 1, 0
  %v818 = vsel %vm754, 1, 0
  %v819 = vsel %vm755, 1, 0
  %v820 = vsel %vm756, 1, 0
  %v821 = vsel %vm757, 1, 0
  %v822 = vsel %vm758, 1, 0
  %v823 = vsel %vm759, 1, 0
  %v824 = vsel %vm760, 1, 0
  %v825 = vsel %vm761, 1, 0
  %v826 = vsel %vm762, 1, 0
  %v827 = vsel %vm763, 1, 0
  %v828 = vsel %vm764, 1, 0
  %v829 = vsel %vm765, 1, 0
  %v830 = vsel %vm766, 1, 0
  %v831 = vsel %vm767, 1, 0
  %v832 = vsel %vm768, 1, 0
  %v833 = vsel %vm769, 1, 0
  %v834 = vsel %vm770, 1, 0
  %v835 = vsel %vm771, 1, 0
  %v836 = vsel %vm772, 1, 0
  %v837 = vsel %vm773, 1, 0
  %v838 = vsel %vm774, 1, 0
  %v839 = vsel %vm775, 1, 0
  %v840 = vsel %vm776, 1, 0
  %v841 = vsel %vm777, 1, 0
  %v842 = vsel %vm778, 1, 0
  %v843 = vsel %vm779, 1, 0
  %v844 = vsel %vm780, 1, 0
  %v845 = vsel %vm781, 1, 0
  %v846 = vsel %vm782, 1, 0
  %v847 = vsel %vm783, 1, 0
  %v848 = vsel %vm784, 1, 0
  %v849 = vsel %vm785, 1, 0
  %v850 = vsel %vm786, 1, 0
  %v851 = vsel %vm787, 1, 0
  %v852 = vsel %vm788, 1, 0
  %v853 = vsel %vm789, 1, 0
  %v854 = vsel %vm790, 1, 0
  %v855 = vsel %vm791, 1, 0
  %v856 = vsel %vm792, 1, 0
  %v857 = vsel %vm793, 1, 0
  %v858 = vsel %vm794, 1, 0
  %v859 = vsel %vm795, 1, 0
  %v860 = vsel %vm796, 1, 0
  %v861 = vsel %vm797, 1, 0
  %v862 = vsel %vm798, 1, 0
  %v863 = vsel %vm799, 1, 0
  %v864 = vsel %vm800, 1, 0
  %v865 = vsel %vm801, 1, 0
  %v866 = vsel %vm802, 1, 0
  %v867 = vsel %vm803, 1, 0
  %v868 = vsel %vm804, 1, 0
  %v869 = vsel %vm805, 1, 0
  %v870 = vsel %vm806, 1, 0
  %v871 = vsel %vm807, 1, 0
  %v872 = vsel %vm808, 1, 0
  %v873 = vsel %vm809, 1, 0
  %v874 = vsel %vm810, 1, 0
  %v875 = vsel %vm811, 1, 0
  %v876 = vsel %vm812, 1, 0
  %v877 = vsel %vm813, 1, 0
  %v878 = vsel %vm814, 1, 0
  %v879 = vsel %vm815, 1, 0
  %v880 = vcvt.s32.f32 %v816
  %v881 = vcvt.s32.f32 %v817
  %v882 = vcvt.s32.f32 %v818
  %v883 = vcvt.s32.f32 %v819
  %v884 = vcvt.s32.f32 %v820
  %v885 = vcvt.s32.f32 %v821
  %v886 = vcvt.s32.f32 %v822
  %v887 = vcvt.s32.f32 %v823
  %v888 = vcvt.s32.f32 %v824
  %v889 = vcvt.s32.f32 %v825
  %v890 = vcvt.s32.f32 %v826
  %v891 = vcvt.s32.f32 %v827
  %v892 = vcvt.s32.f32 %v828
  %v893 = vcvt.s32.f32 %v829
  %v894 = vcvt.s32.f32 %v830
  %v895 = vcvt.s32.f32 %v831
  %v896 = vcvt.s32.f32 %v832
  %v897 = vcvt.s32.f32 %v833
  %v898 = vcvt.s32.f32 %v834
  %v899 = vcvt.s32.f32 %v835
  %v900 = vcvt.s32.f32 %v836
  %v901 = vcvt.s32.f32 %v837
  %v902 = vcvt.s32.f32 %v838
  %v903 = vcvt.s32.f32 %v839
  %v904 = vcvt.s32.f32 %v840
  %v905 = vcvt.s32.f32 %v841
  %v906 = vcvt.s32.f32 %v842
  %v907 = vcvt.s32.f32 %v843
  %v908 = vcvt.s32.f32 %v844
  %v909 = vcvt.s32.f32 %v845
  %v910 = vcvt.s32.f32 %v846
  %v911 = vcvt.s32.f32 %v847
  %v912 = vcvt.s32.f32 %v848
  %v913 = vcvt.s32.f32 %v849
  %v914 = vcvt.s32.f32 %v850
  %v915 = vcvt.s32.f32 %v851
  %v916 = vcvt.s32.f32 %v852
  %v917 = vcvt.s32.f32 %v853
  %v918 = vcvt.s32.f32 %v854
  %v919 = vcvt.s32.f32 %v855
  %v920 = vcvt.s32.f32 %v856
  %v921 = vcvt.s32.f32 %v857
  %v922 = vcvt.s32.f32 %v858
  %v923 = vcvt.s32.f32 %v859
  %v924 = vcvt.s32.f32 %v860
  %v925 = vcvt.s32.f32 %v861
  %v926 = vcvt.s32.f32 %v862
  %v927 = vcvt.s32.f32 %v863
  %v928 = vcvt.s32.f32 %v864
  %v929 = vcvt.s32.f32 %v865
  %v930 = vcvt.s32.f32 %v866
  %v931 = vcvt.s32.f32 %v867
  %v932 = vcvt.s32.f32 %v868
  %v933 = vcvt.s32.f32 %v869
  %v934 = vcvt.s32.f32 %v870
  %v935 = vcvt.s32.f32 %v871
  %v936 = vcvt.s32.f32 %v872
  %v937 = vcvt.s32.f32 %v873
  %v938 = vcvt.s32.f32 %v874
  %v939 = vcvt.s32.f32 %v875
  %v940 = vcvt.s32.f32 %v876
  %v941 = vcvt.s32.f32 %v877
  %v942 = vcvt.s32.f32 %v878
  %v943 = vcvt.s32.f32 %v879
  %vm944 = vcmask 588800
  %v946 = vsel %vm944, %v883, 0
  %v949 = vsel %vm944, %v887, 0
  %v952 = vsel %vm944, %v891, 0
  %v955 = vsel %vm944, %v895, 0
  %v958 = vsel %vm944, %v899, 0
  %v961 = vsel %vm944, %v903, 0
  %v964 = vsel %vm944, %v907, 0
  %v967 = vsel %vm944, %v911, 0
  %v970 = vsel %vm944, %v915, 0
  %v973 = vsel %vm944, %v919, 0
  %v976 = vsel %vm944, %v923, 0
  %v979 = vsel %vm944, %v927, 0
  %v982 = vsel %vm944, %v931, 0
  %v985 = vsel %vm944, %v935, 0
  %v988 = vsel %vm944, %v939, 0
  %v991 = vsel %vm944, %v943, 0
  %993 = vmatprep.subr.mxu0 0.0
  %994 = vmatpush1.msra.mxu0 %v661
  %995 = vmatprep.subr.mxu0 0.0
  %996 = vmatpush1.msra.mxu0 %v662
  %997 = vmatprep.subr.mxu0 0.0
  %998 = vmatpush1.msra.mxu0 %v663
  %999 = vmatprep.subr.mxu0 0.0
  %1000 = vmatpush1.msra.mxu0 %v664
  %1001 = vmatprep.subr.mxu0 0.0
  %1002 = vmatpush1.msra.mxu0 %v665
  %1003 = vmatprep.subr.mxu0 0.0
  %1004 = vmatpush1.msra.mxu0 %v666
  %1005 = vmatprep.subr.mxu0 0.0
  %1006 = vmatpush1.msra.mxu0 %v667
  %1007 = vmatprep.subr.mxu0 0.0
  %1008 = vmatpush1.msra.mxu0 %v668
  %1009 = vmatprep.subr.mxu0 0.0
  %1010 = vmatpush1.msra.mxu0 %v669
  %1011 = vmatprep.subr.mxu0 0.0
  %1012 = vmatpush1.msra.mxu0 %v670
  %1013 = vmatprep.subr.mxu0 0.0
  %1014 = vmatpush1.msra.mxu0 %v671
  %1015 = vmatprep.subr.mxu0 0.0
  %1016 = vmatpush1.msra.mxu0 %v672
  %1017 = vmatprep.subr.mxu0 0.0
  %1018 = vmatpush1.msra.mxu0 %v673
  %1019 = vmatprep.subr.mxu0 0.0
  %1020 = vmatpush1.msra.mxu0 %v674
  %1021 = vmatprep.subr.mxu0 0.0
  %1022 = vmatpush1.msra.mxu0 %v675
  %1023 = vmatprep.subr.mxu0 0.0
  %1024 = vmatpush1.msra.mxu0 %v676
  %1025 = vmatprep.subr.mxu0 0.0
  %1026 = vmatpush1.msra.mxu0 %v677
  %1027 = vmatprep.subr.mxu0 0.0
  %1028 = vmatpush1.msra.mxu0 %v678
  %1029 = vmatprep.subr.mxu0 0.0
  %1030 = vmatpush1.msra.mxu0 %v679
  %1031 = vmatprep.subr.mxu0 0.0
  %1032 = vmatpush1.msra.mxu0 %v680
  %1033 = vmatprep.subr.mxu0 0.0
  %1034 = vmatpush1.msra.mxu0 %v681
  %1035 = vmatprep.subr.mxu0 0.0
  %1036 = vmatpush1.msra.mxu0 %v682
  %1037 = vmatprep.subr.mxu0 0.0
  %1038 = vmatpush1.msra.mxu0 %v683
  %1039 = vmatprep.subr.mxu0 0.0
  %1040 = vmatpush1.msra.mxu0 %v684
  %1041 = vmatprep.subr.mxu0 0.0
  %1042 = vmatpush1.msra.mxu0 %v685
  %1043 = vmatprep.subr.mxu0 0.0
  %1044 = vmatpush1.msra.mxu0 %v686
  %1045 = vmatprep.subr.mxu0 0.0
  %1046 = vmatpush1.msra.mxu0 %v687
  %1047 = vmatprep.subr.mxu0 0.0
  %1048 = vmatpush1.msra.mxu0 %v688
  %1049 = vmatprep.subr.mxu0 0.0
  %1050 = vmatpush1.msra.mxu0 %v689
  %1051 = vmatprep.subr.mxu0 0.0
  %1052 = vmatpush1.msra.mxu0 %v690
  %1053 = vmatprep.subr.mxu0 0.0
  %1054 = vmatpush1.msra.mxu0 %v691
  %1055 = vmatprep.subr.mxu0 0.0
  %1056 = vmatpush1.msra.mxu0 %v692
  %1057 = vmatprep.mubr.f32.mxu0 %v881
  %1058 = vmatmul.mubr.f32.gmra.mrb[0].mxu0 %v880
  %v1059 = vpop.f32.mrb[0].mxu0
  %v1060 = vadd.f32 0.0, %v1059
  %v1061 = vpop.f32.mrb[0].mxu0
  %1062 = vmatprep.mubr.f32.mxu0 %v885
  %1063 = vmatmul.mubr.f32.gmra.mrb[0].mxu0 %v884
  %v1064 = vpop.f32.mrb[0].mxu0
  %v1065 = vadd.f32 0.0, %v1064
  %v1066 = vpop.f32.mrb[0].mxu0
  %1067 = vmatprep.mubr.f32.mxu0 %v889
  %1068 = vmatmul.mubr.f32.gmra.mrb[0].mxu0 %v888
  %v1069 = vpop.f32.mrb[0].mxu0
  %v1070 = vadd.f32 0.0, %v1069
  %v1071 = vpop.f32.mrb[0].mxu0
  %1072 = vmatprep.mubr.f32.mxu0 %v893
  %1073 = vmatmul.mubr.f32.gmra.mrb[0].mxu0 %v892
  %v1074 = vpop.f32.mrb[0].mxu0
  %v1075 = vadd.f32 0.0, %v1074
  %v1076 = vpop.f32.mrb[0].mxu0
  %1077 = vmatprep.mubr.f32.mxu0 %v897
  %1078 = vmatmul.mubr.f32.gmra.mrb[0].mxu0 %v896
  %v1079 = vpop.f32.mrb[0].mxu0
  %v1080 = vadd.f32 0.0, %v1079
  %v1081 = vpop.f32.mrb[0].mxu0
  %1082 = vmatprep.mubr.f32.mxu0 %v901
  %1083 = vmatmul.mubr.f32.gmra.mrb[0].mxu0 %v900
  %v1084 = vpop.f32.mrb[0].mxu0
  %v1085 = vadd.f32 0.0, %v1084
  %v1086 = vpop.f32.mrb[0].mxu0
  %1087 = vmatprep.mubr.f32.mxu0 %v905
  %1088 = vmatmul.mubr.f32.gmra.mrb[0].mxu0 %v904
  %v1089 = vpop.f32.mrb[0].mxu0
  %v1090 = vadd.f32 0.0, %v1089
  %v1091 = vpop.f32.mrb[0].mxu0
  %1092 = vmatprep.mubr.f32.mxu0 %v909
  %1093 = vmatmul.mubr.f32.gmra.mrb[0].mxu0 %v908
  %v1094 = vpop.f32.mrb[0].mxu0
  %v1095 = vadd.f32 0.0, %v1094
  %v1096 = vpop.f32.mrb[0].mxu0
  %1097 = vmatprep.mubr.f32.mxu0 %v913
  %1098 = vmatmul.mubr.f32.gmra.mrb[0].mxu0 %v912
  %v1099 = vpop.f32.mrb[0].mxu0
  %v1100 = vadd.f32 0.0, %v1099
  %v1101 = vpop.f32.mrb[0].mxu0
  %1102 = vmatprep.mubr.f32.mxu0 %v917
  %1103 = vmatmul.mubr.f32.gmra.mrb[0].mxu0 %v916
  %v1104 = vpop.f32.mrb[0].mxu0
  %v1105 = vadd.f32 0.0, %v1104
  %v1106 = vpop.f32.mrb[0].mxu0
  %1107 = vmatprep.mubr.f32.mxu0 %v921
  %1108 = vmatmul.mubr.f32.gmra.mrb[0].mxu0 %v920
  %v1109 = vpop.f32.mrb[0].mxu0
  %v1110 = vadd.f32 0.0, %v1109
  %v1111 = vpop.f32.mrb[0].mxu0
  %1112 = vmatprep.mubr.f32.mxu0 %v925
  %1113 = vmatmul.mubr.f32.gmra.mrb[0].mxu0 %v924
  %v1114 = vpop.f32.mrb[0].mxu0
  %v1115 = vadd.f32 0.0, %v1114
  %v1116 = vpop.f32.mrb[0].mxu0
  %1117 = vmatprep.mubr.f32.mxu0 %v929
  %1118 = vmatmul.mubr.f32.gmra.mrb[0].mxu0 %v928
  %v1119 = vpop.f32.mrb[0].mxu0
  %v1120 = vadd.f32 0.0, %v1119
  %v1121 = vpop.f32.mrb[0].mxu0
  %1122 = vmatprep.mubr.f32.mxu0 %v933
  %1123 = vmatmul.mubr.f32.gmra.mrb[0].mxu0 %v932
  %v1124 = vpop.f32.mrb[0].mxu0
  %v1125 = vadd.f32 0.0, %v1124
  %v1126 = vpop.f32.mrb[0].mxu0
  %1127 = vmatprep.mubr.f32.mxu0 %v937
  %1128 = vmatmul.mubr.f32.gmra.mrb[0].mxu0 %v936
  %v1129 = vpop.f32.mrb[0].mxu0
  %v1130 = vadd.f32 0.0, %v1129
  %v1131 = vpop.f32.mrb[0].mxu0
  %1132 = vmatprep.mubr.f32.mxu0 %v941
  %1133 = vmatmul.mubr.f32.gmra.mrb[0].mxu0 %v940
  %v1134 = vpop.f32.mrb[0].mxu0
  %v1135 = vadd.f32 0.0, %v1134
  %v1136 = vpop.f32.mrb[0].mxu0
  %1137 = vdwg.mxu0
  %1138 = vmatprep.subr.mxu0 0.0
  %1139 = vmatpush1.msra.mxu0 %v693
  %1140 = vmatprep.subr.mxu0 0.0
  %1141 = vmatpush1.msra.mxu0 %v694
  %1142 = vmatprep.subr.mxu0 0.0
  %1143 = vmatpush1.msra.mxu0 %v695
  %1144 = vmatprep.subr.mxu0 0.0
  %1145 = vmatpush1.msra.mxu0 %v696
  %1146 = vmatprep.subr.mxu0 0.0
  %1147 = vmatpush1.msra.mxu0 %v697
  %1148 = vmatprep.subr.mxu0 0.0
  %1149 = vmatpush1.msra.mxu0 %v698
  %1150 = vmatprep.subr.mxu0 0.0
  %1151 = vmatpush1.msra.mxu0 %v699
  %1152 = vmatprep.subr.mxu0 0.0
  %1153 = vmatpush1.msra.mxu0 %v700
  %1154 = vmatprep.subr.mxu0 0.0
  %1155 = vmatpush1.msra.mxu0 %v701
  %1156 = vmatprep.subr.mxu0 0.0
  %1157 = vmatpush1.msra.mxu0 %v702
  %1158 = vmatprep.subr.mxu0 0.0
  %1159 = vmatpush1.msra.mxu0 %v703
  %1160 = vmatprep.subr.mxu0 0.0
  %1161 = vmatpush1.msra.mxu0 %v704
  %1162 = vmatprep.subr.mxu0 0.0
  %1163 = vmatpush1.msra.mxu0 %v705
  %1164 = vmatprep.subr.mxu0 0.0
  %1165 = vmatpush1.msra.mxu0 %v706
  %1166 = vmatprep.subr.mxu0 0.0
  %1167 = vmatpush1.msra.mxu0 %v707
  %1168 = vmatprep.subr.mxu0 0.0
  %1169 = vmatpush1.msra.mxu0 %v708
  %1170 = vmatprep.subr.mxu0 0.0
  %1171 = vmatpush1.msra.mxu0 %v709
  %1172 = vmatprep.subr.mxu0 0.0
  %1173 = vmatpush1.msra.mxu0 %v710
  %1174 = vmatprep.subr.mxu0 0.0
  %1175 = vmatpush1.msra.mxu0 %v711
  %1176 = vmatprep.subr.mxu0 0.0
  %1177 = vmatpush1.msra.mxu0 %v712
  %1178 = vmatprep.subr.mxu0 0.0
  %1179 = vmatpush1.msra.mxu0 %v713
  %1180 = vmatprep.subr.mxu0 0.0
  %1181 = vmatpush1.msra.mxu0 %v714
  %1182 = vmatprep.subr.mxu0 0.0
  %1183 = vmatpush1.msra.mxu0 %v715
  %1184 = vmatprep.subr.mxu0 0.0
  %1185 = vmatpush1.msra.mxu0 %v716
  %1186 = vmatprep.subr.mxu0 0.0
  %1187 = vmatpush1.msra.mxu0 %v717
  %1188 = vmatprep.subr.mxu0 0.0
  %1189 = vmatpush1.msra.mxu0 0.0
  %1190 = vmatprep.subr.mxu0 0.0
  %1191 = vmatpush1.msra.mxu0 0.0
  %1192 = vmatprep.subr.mxu0 0.0
  %1193 = vmatpush1.msra.mxu0 0.0
  %1194 = vmatprep.subr.mxu0 0.0
  %1195 = vmatpush1.msra.mxu0 0.0
  %1196 = vmatprep.subr.mxu0 0.0
  %1197 = vmatpush1.msra.mxu0 0.0
  %1198 = vmatprep.subr.mxu0 0.0
  %1199 = vmatpush1.msra.mxu0 0.0
  %1200 = vmatprep.subr.mxu0 0.0
  %1201 = vmatpush1.msra.mxu0 0.0
  %1202 = vmatprep.mubr.f32.mxu0 %v946
  %1203 = vmatmul.mubr.f32.gmra.mrb[0].mxu0 %v882
  %v1204 = vpop.f32.mrb[0].mxu0
  %v1205 = vadd.f32 %v1060, %v1204
  %v1206 = vpop.f32.mrb[0].mxu0
  %1207 = vmatprep.mubr.f32.mxu0 %v949
  %1208 = vmatmul.mubr.f32.gmra.mrb[0].mxu0 %v886
  %v1209 = vpop.f32.mrb[0].mxu0
  %v1210 = vadd.f32 %v1065, %v1209
  %v1211 = vpop.f32.mrb[0].mxu0
  %1212 = vmatprep.mubr.f32.mxu0 %v952
  %1213 = vmatmul.mubr.f32.gmra.mrb[0].mxu0 %v890
  %v1214 = vpop.f32.mrb[0].mxu0
  %v1215 = vadd.f32 %v1070, %v1214
  %v1216 = vpop.f32.mrb[0].mxu0
  %1217 = vmatprep.mubr.f32.mxu0 %v955
  %1218 = vmatmul.mubr.f32.gmra.mrb[0].mxu0 %v894
  %v1219 = vpop.f32.mrb[0].mxu0
  %v1220 = vadd.f32 %v1075, %v1219
  %v1221 = vpop.f32.mrb[0].mxu0
  %1222 = vmatprep.mubr.f32.mxu0 %v958
  %1223 = vmatmul.mubr.f32.gmra.mrb[0].mxu0 %v898
  %v1224 = vpop.f32.mrb[0].mxu0
  %v1225 = vadd.f32 %v1080, %v1224
  %v1226 = vpop.f32.mrb[0].mxu0
  %1227 = vmatprep.mubr.f32.mxu0 %v961
  %1228 = vmatmul.mubr.f32.gmra.mrb[0].mxu0 %v902
  %v1229 = vpop.f32.mrb[0].mxu0
  %v1230 = vadd.f32 %v1085, %v1229
  %v1231 = vpop.f32.mrb[0].mxu0
  %1232 = vmatprep.mubr.f32.mxu0 %v964
  %1233 = vmatmul.mubr.f32.gmra.mrb[0].mxu0 %v906
  %v1234 = vpop.f32.mrb[0].mxu0
  %v1235 = vadd.f32 %v1090, %v1234
  %v1236 = vpop.f32.mrb[0].mxu0
  %1237 = vmatprep.mubr.f32.mxu0 %v967
  %1238 = vmatmul.mubr.f32.gmra.mrb[0].mxu0 %v910
  %v1239 = vpop.f32.mrb[0].mxu0
  %v1240 = vadd.f32 %v1095, %v1239
  %v1241 = vpop.f32.mrb[0].mxu0
  %1242 = vmatprep.mubr.f32.mxu0 %v970
  %1243 = vmatmul.mubr.f32.gmra.mrb[0].mxu0 %v914
  %v1244 = vpop.f32.mrb[0].mxu0
  %v1245 = vadd.f32 %v1100, %v1244
  %v1246 = vpop.f32.mrb[0].mxu0
  %1247 = vmatprep.mubr.f32.mxu0 %v973
  %1248 = vmatmul.mubr.f32.gmra.mrb[0].mxu0 %v918
  %v1249 = vpop.f32.mrb[0].mxu0
  %v1250 = vadd.f32 %v1105, %v1249
  %v1251 = vpop.f32.mrb[0].mxu0
  %1252 = vmatprep.mubr.f32.mxu0 %v976
  %1253 = vmatmul.mubr.f32.gmra.mrb[0].mxu0 %v922
  %v1254 = vpop.f32.mrb[0].mxu0
  %v1255 = vadd.f32 %v1110, %v1254
  %v1256 = vpop.f32.mrb[0].mxu0
  %1257 = vmatprep.mubr.f32.mxu0 %v979
  %1258 = vmatmul.mubr.f32.gmra.mrb[0].mxu0 %v926
  %v1259 = vpop.f32.mrb[0].mxu0
  %v1260 = vadd.f32 %v1115, %v1259
  %v1261 = vpop.f32.mrb[0].mxu0
  %1262 = vmatprep.mubr.f32.mxu0 %v982
  %1263 = vmatmul.mubr.f32.gmra.mrb[0].mxu0 %v930
  %v1264 = vpop.f32.mrb[0].mxu0
  %v1265 = vadd.f32 %v1120, %v1264
  %v1266 = vpop.f32.mrb[0].mxu0
  %1267 = vmatprep.mubr.f32.mxu0 %v985
  %1268 = vmatmul.mubr.f32.gmra.mrb[0].mxu0 %v934
  %v1269 = vpop.f32.mrb[0].mxu0
  %v1270 = vadd.f32 %v1125, %v1269
  %v1271 = vpop.f32.mrb[0].mxu0
  %1272 = vmatprep.mubr.f32.mxu0 %v988
  %1273 = vmatmul.mubr.f32.gmra.mrb[0].mxu0 %v938
  %v1274 = vpop.f32.mrb[0].mxu0
  %v1275 = vadd.f32 %v1130, %v1274
  %v1276 = vpop.f32.mrb[0].mxu0
  %1277 = vmatprep.mubr.f32.mxu0 %v991
  %1278 = vmatmul.mubr.f32.gmra.mrb[0].mxu0 %v942
  %v1279 = vpop.f32.mrb[0].mxu0
  %v1280 = vadd.f32 %v1135, %v1279
  %v1281 = vpop.f32.mrb[0].mxu0
  %1282 = vdwg.mxu0
  %v1283 = vld [vmem:[%s1 + $0x10] sm:$0xff]
  %v1284 = vld [vmem:[%s1 + $0x18] sm:$0xff]
  %s1285 = scalar_lea.vmem %s2, 1
  %v1286 = vld [vmem:[%s1285] ss:$4 sm:$0xf]
  %v1287 = vlaneseq
  %v1288 = vshrl.u32 %v1287, 7
  %v1289 = vsub.s32 0, %v1288
  %v1290 = vrot.slane %v1286, %v1289
  %v1291 = vlaneseq
  %v1292 = vshrl.u32 %v1291, 7
  %v1293 = vsub.s32 1, %v1292
  %v1294 = vrot.slane %v1286, %v1293
  %v1295 = vlaneseq
  %v1296 = vshrl.u32 %v1295, 7
  %v1297 = vsub.s32 2, %v1296
  %v1298 = vrot.slane %v1286, %v1297
  %v1299 = vlaneseq
  %v1300 = vshrl.u32 %v1299, 7
  %v1301 = vsub.s32 3, %v1300
  %v1302 = vrot.slane %v1286, %v1301
  %vm1303 = vcmp.eq.s32.totalorder %v719, %v1290
  %vm1304 = vcmp.eq.s32.totalorder %v719, %v1294
  %vm1305 = vcmp.eq.s32.totalorder %v719, %v1298
  %vm1306 = vcmp.eq.s32.totalorder %v719, %v1302
  %vm1307 = vcmp.eq.s32.totalorder %v720, %v1290
  %vm1308 = vcmp.eq.s32.totalorder %v720, %v1294
  %vm1309 = vcmp.eq.s32.totalorder %v720, %v1298
  %vm1310 = vcmp.eq.s32.totalorder %v720, %v1302
  %vm1311 = vcmp.eq.s32.totalorder %v721, %v1290
  %vm1312 = vcmp.eq.s32.totalorder %v721, %v1294
  %vm1313 = vcmp.eq.s32.totalorder %v721, %v1298
  %vm1314 = vcmp.eq.s32.totalorder %v721, %v1302
  %vm1315 = vcmp.eq.s32.totalorder %v722, %v1290
  %vm1316 = vcmp.eq.s32.totalorder %v722, %v1294
  %vm1317 = vcmp.eq.s32.totalorder %v722, %v1298
  %vm1318 = vcmp.eq.s32.totalorder %v722, %v1302
  %vm1319 = vcmp.eq.s32.totalorder %v723, %v1290
  %vm1320 = vcmp.eq.s32.totalorder %v723, %v1294
  %vm1321 = vcmp.eq.s32.totalorder %v723, %v1298
  %vm1322 = vcmp.eq.s32.totalorder %v723, %v1302
  %vm1323 = vcmp.eq.s32.totalorder %v724, %v1290
  %vm1324 = vcmp.eq.s32.totalorder %v724, %v1294
  %vm1325 = vcmp.eq.s32.totalorder %v724, %v1298
  %vm1326 = vcmp.eq.s32.totalorder %v724, %v1302
  %vm1327 = vcmp.eq.s32.totalorder %v725, %v1290
  %vm1328 = vcmp.eq.s32.totalorder %v725, %v1294
  %vm1329 = vcmp.eq.s32.totalorder %v725, %v1298
  %vm1330 = vcmp.eq.s32.totalorder %v725, %v1302
  %vm1331 = vcmp.eq.s32.totalorder %v726, %v1290
  %vm1332 = vcmp.eq.s32.totalorder %v726, %v1294
  %vm1333 = vcmp.eq.s32.totalorder %v726, %v1298
  %vm1334 = vcmp.eq.s32.totalorder %v726, %v1302
  %vm1335 = vcmp.eq.s32.totalorder %v727, %v1290
  %vm1336 = vcmp.eq.s32.totalorder %v727, %v1294
  %vm1337 = vcmp.eq.s32.totalorder %v727, %v1298
  %vm1338 = vcmp.eq.s32.totalorder %v727, %v1302
  %vm1339 = vcmp.eq.s32.totalorder %v728, %v1290
  %vm1340 = vcmp.eq.s32.totalorder %v728, %v1294
  %vm1341 = vcmp.eq.s32.totalorder %v728, %v1298
  %vm1342 = vcmp.eq.s32.totalorder %v728, %v1302
  %vm1343 = vcmp.eq.s32.totalorder %v729, %v1290
  %vm1344 = vcmp.eq.s32.totalorder %v729, %v1294
  %vm1345 = vcmp.eq.s32.totalorder %v729, %v1298
  %vm1346 = vcmp.eq.s32.totalorder %v729, %v1302
  %vm1347 = vcmp.eq.s32.totalorder %v730, %v1290
  %vm1348 = vcmp.eq.s32.totalorder %v730, %v1294
  %vm1349 = vcmp.eq.s32.totalorder %v730, %v1298
  %vm1350 = vcmp.eq.s32.totalorder %v730, %v1302
  %vm1351 = vcmp.eq.s32.totalorder %v731, %v1290
  %vm1352 = vcmp.eq.s32.totalorder %v731, %v1294
  %vm1353 = vcmp.eq.s32.totalorder %v731, %v1298
  %vm1354 = vcmp.eq.s32.totalorder %v731, %v1302
  %vm1355 = vcmp.eq.s32.totalorder %v732, %v1290
  %vm1356 = vcmp.eq.s32.totalorder %v732, %v1294
  %vm1357 = vcmp.eq.s32.totalorder %v732, %v1298
  %vm1358 = vcmp.eq.s32.totalorder %v732, %v1302
  %vm1359 = vcmp.eq.s32.totalorder %v733, %v1290
  %vm1360 = vcmp.eq.s32.totalorder %v733, %v1294
  %vm1361 = vcmp.eq.s32.totalorder %v733, %v1298
  %vm1362 = vcmp.eq.s32.totalorder %v733, %v1302
  %vm1363 = vcmp.eq.s32.totalorder %v734, %v1290
  %vm1364 = vcmp.eq.s32.totalorder %v734, %v1294
  %vm1365 = vcmp.eq.s32.totalorder %v734, %v1298
  %vm1366 = vcmp.eq.s32.totalorder %v734, %v1302
  %v1367 = vsel %vm1303, 1, 0
  %v1368 = vsel %vm1304, 1, 0
  %v1369 = vsel %vm1305, 1, 0
  %v1370 = vsel %vm1306, 1, 0
  %v1371 = vsel %vm1307, 1, 0
  %v1372 = vsel %vm1308, 1, 0
  %v1373 = vsel %vm1309, 1, 0
  %v1374 = vsel %vm1310, 1, 0
  %v1375 = vsel %vm1311, 1, 0
  %v1376 = vsel %vm1312, 1, 0
  %v1377 = vsel %vm1313, 1, 0
  %v1378 = vsel %vm1314, 1, 0
  %v1379 = vsel %vm1315, 1, 0
  %v1380 = vsel %vm1316, 1, 0
  %v1381 = vsel %vm1317, 1, 0
  %v1382 = vsel %vm1318, 1, 0
  %v1383 = vsel %vm1319, 1, 0
  %v1384 = vsel %vm1320, 1, 0
  %v1385 = vsel %vm1321, 1, 0
  %v1386 = vsel %vm1322, 1, 0
  %v1387 = vsel %vm1323, 1, 0
  %v1388 = vsel %vm1324, 1, 0
  %v1389 = vsel %vm1325, 1, 0
  %v1390 = vsel %vm1326, 1, 0
  %v1391 = vsel %vm1327, 1, 0
  %v1392 = vsel %vm1328, 1, 0
  %v1393 = vsel %vm1329, 1, 0
  %v1394 = vsel %vm1330, 1, 0
  %v1395 = vsel %vm1331, 1, 0
  %v1396 = vsel %vm1332, 1, 0
  %v1397 = vsel %vm1333, 1, 0
  %v1398 = vsel %vm1334, 1, 0
  %v1399 = vsel %vm1335, 1, 0
  %v1400 = vsel %vm1336, 1, 0
  %v1401 = vsel %vm1337, 1, 0
  %v1402 = vsel %vm1338, 1, 0
  %v1403 = vsel %vm1339, 1, 0
  %v1404 = vsel %vm1340, 1, 0
  %v1405 = vsel %vm1341, 1, 0
  %v1406 = vsel %vm1342, 1, 0
  %v1407 = vsel %vm1343, 1, 0
  %v1408 = vsel %vm1344, 1, 0
  %v1409 = vsel %vm1345, 1, 0
  %v1410 = vsel %vm1346, 1, 0
  %v1411 = vsel %vm1347, 1, 0
  %v1412 = vsel %vm1348, 1, 0
  %v1413 = vsel %vm1349, 1, 0
  %v1414 = vsel %vm1350, 1, 0
  %v1415 = vsel %vm1351, 1, 0
  %v1416 = vsel %vm1352, 1, 0
  %v1417 = vsel %vm1353, 1, 0
  %v1418 = vsel %vm1354, 1, 0
  %v1419 = vsel %vm1355, 1, 0
  %v1420 = vsel %vm1356, 1, 0
  %v1421 = vsel %vm1357, 1, 0
  %v1422 = vsel %vm1358, 1, 0
  %v1423 = vsel %vm1359, 1, 0
  %v1424 = vsel %vm1360, 1, 0
  %v1425 = vsel %vm1361, 1, 0
  %v1426 = vsel %vm1362, 1, 0
  %v1427 = vsel %vm1363, 1, 0
  %v1428 = vsel %vm1364, 1, 0
  %v1429 = vsel %vm1365, 1, 0
  %v1430 = vsel %vm1366, 1, 0
  %v1431 = vcvt.s32.f32 %v1367
  %v1432 = vcvt.s32.f32 %v1368
  %v1433 = vcvt.s32.f32 %v1369
  %v1434 = vcvt.s32.f32 %v1370
  %v1435 = vcvt.s32.f32 %v1371
  %v1436 = vcvt.s32.f32 %v1372
  %v1437 = vcvt.s32.f32 %v1373
  %v1438 = vcvt.s32.f32 %v1374
  %v1439 = vcvt.s32.f32 %v1375
  %v1440 = vcvt.s32.f32 %v1376
  %v1441 = vcvt.s32.f32 %v1377
  %v1442 = vcvt.s32.f32 %v1378
  %v1443 = vcvt.s32.f32 %v1379
  %v1444 = vcvt.s32.f32 %v1380
  %v1445 = vcvt.s32.f32 %v1381
  %v1446 = vcvt.s32.f32 %v1382
  %v1447 = vcvt.s32.f32 %v1383
  %v1448 = vcvt.s32.f32 %v1384
  %v1449 = vcvt.s32.f32 %v1385
  %v1450 = vcvt.s32.f32 %v1386
  %v1451 = vcvt.s32.f32 %v1387
  %v1452 = vcvt.s32.f32 %v1388
  %v1453 = vcvt.s32.f32 %v1389
  %v1454 = vcvt.s32.f32 %v1390
  %v1455 = vcvt.s32.f32 %v1391
  %v1456 = vcvt.s32.f32 %v1392
  %v1457 = vcvt.s32.f32 %v1393
  %v1458 = vcvt.s32.f32 %v1394
  %v1459 = vcvt.s32.f32 %v1395
  %v1460 = vcvt.s32.f32 %v1396
  %v1461 = vcvt.s32.f32 %v1397
  %v1462 = vcvt.s32.f32 %v1398
  %v1463 = vcvt.s32.f32 %v1399
  %v1464 = vcvt.s32.f32 %v1400
  %v1465 = vcvt.s32.f32 %v1401
  %v1466 = vcvt.s32.f32 %v1402
  %v1467 = vcvt.s32.f32 %v1403
  %v1468 = vcvt.s32.f32 %v1404
  %v1469 = vcvt.s32.f32 %v1405
  %v1470 = vcvt.s32.f32 %v1406
  %v1471 = vcvt.s32.f32 %v1407
  %v1472 = vcvt.s32.f32 %v1408
  %v1473 = vcvt.s32.f32 %v1409
  %v1474 = vcvt.s32.f32 %v1410
  %v1475 = vcvt.s32.f32 %v1411
  %v1476 = vcvt.s32.f32 %v1412
  %v1477 = vcvt.s32.f32 %v1413
  %v1478 = vcvt.s32.f32 %v1414
  %v1479 = vcvt.s32.f32 %v1415
  %v1480 = vcvt.s32.f32 %v1416
  %v1481 = vcvt.s32.f32 %v1417
  %v1482 = vcvt.s32.f32 %v1418
  %v1483 = vcvt.s32.f32 %v1419
  %v1484 = vcvt.s32.f32 %v1420
  %v1485 = vcvt.s32.f32 %v1421
  %v1486 = vcvt.s32.f32 %v1422
  %v1487 = vcvt.s32.f32 %v1423
  %v1488 = vcvt.s32.f32 %v1424
  %v1489 = vcvt.s32.f32 %v1425
  %v1490 = vcvt.s32.f32 %v1426
  %v1491 = vcvt.s32.f32 %v1427
  %v1492 = vcvt.s32.f32 %v1428
  %v1493 = vcvt.s32.f32 %v1429
  %v1494 = vcvt.s32.f32 %v1430
  %v1496 = vsel %vm944, %v1434, 0
  %v1499 = vsel %vm944, %v1438, 0
  %v1502 = vsel %vm944, %v1442, 0
  %v1505 = vsel %vm944, %v1446, 0
  %v1508 = vsel %vm944, %v1450, 0
  %v1511 = vsel %vm944, %v1454, 0
  %v1514 = vsel %vm944, %v1458, 0
  %v1517 = vsel %vm944, %v1462, 0
  %v1520 = vsel %vm944, %v1466, 0
  %v1523 = vsel %vm944, %v1470, 0
  %v1526 = vsel %vm944, %v1474, 0
  %v1529 = vsel %vm944, %v1478, 0
  %v1532 = vsel %vm944, %v1482, 0
  %v1535 = vsel %vm944, %v1486, 0
  %v1538 = vsel %vm944, %v1490, 0
  %v1541 = vsel %vm944, %v1494, 0
  %1543 = vmatprep.subr.mxu0 0.0
  %1544 = vmatpush1.msra.mxu0 %v661
  %1545 = vmatprep.subr.mxu0 0.0
  %1546 = vmatpush1.msra.mxu0 %v662
  %1547 = vmatprep.subr.mxu0 0.0
  %1548 = vmatpush1.msra.mxu0 %v663
  %1549 = vmatprep.subr.mxu0 0.0
  %1550 = vmatpush1.msra.mxu0 %v664
  %1551 = vmatprep.subr.mxu0 0.0
  %1552 = vmatpush1.msra.mxu0 %v665
  %1553 = vmatprep.subr.mxu0 0.0
  %1554 = vmatpush1.msra.mxu0 %v666
  %1555 = vmatprep.subr.mxu0 0.0
  %1556 = vmatpush1.msra.mxu0 %v667
  %1557 = vmatprep.subr.mxu0 0.0
  %1558 = vmatpush1.msra.mxu0 %v668
  %1559 = vmatprep.subr.mxu0 0.0
  %1560 = vmatpush1.msra.mxu0 %v669
  %1561 = vmatprep.subr.mxu0 0.0
  %1562 = vmatpush1.msra.mxu0 %v670
  %1563 = vmatprep.subr.mxu0 0.0
  %1564 = vmatpush1.msra.mxu0 %v671
  %1565 = vmatprep.subr.mxu0 0.0
  %1566 = vmatpush1.msra.mxu0 %v672
  %1567 = vmatprep.subr.mxu0 0.0
  %1568 = vmatpush1.msra.mxu0 %v673
  %1569 = vmatprep.subr.mxu0 0.0
  %1570 = vmatpush1.msra.mxu0 %v674
  %1571 = vmatprep.subr.mxu0 0.0
  %1572 = vmatpush1.msra.mxu0 %v675
  %1573 = vmatprep.subr.mxu0 0.0
  %1574 = vmatpush1.msra.mxu0 %v676
  %1575 = vmatprep.subr.mxu0 0.0
  %1576 = vmatpush1.msra.mxu0 %v677
  %1577 = vmatprep.subr.mxu0 0.0
  %1578 = vmatpush1.msra.mxu0 %v678
  %1579 = vmatprep.subr.mxu0 0.0
  %1580 = vmatpush1.msra.mxu0 %v679
  %1581 = vmatprep.subr.mxu0 0.0
  %1582 = vmatpush1.msra.mxu0 %v680
  %1583 = vmatprep.subr.mxu0 0.0
  %1584 = vmatpush1.msra.mxu0 %v681
  %1585 = vmatprep.subr.mxu0 0.0
  %1586 = vmatpush1.msra.mxu0 %v682
  %1587 = vmatprep.subr.mxu0 0.0
  %1588 = vmatpush1.msra.mxu0 %v683
  %1589 = vmatprep.subr.mxu0 0.0
  %1590 = vmatpush1.msra.mxu0 %v684
  %1591 = vmatprep.subr.mxu0 0.0
  %1592 = vmatpush1.msra.mxu0 %v685
  %1593 = vmatprep.subr.mxu0 0.0
  %1594 = vmatpush1.msra.mxu0 %v686
  %1595 = vmatprep.subr.mxu0 0.0
  %1596 = vmatpush1.msra.mxu0 %v687
  %1597 = vmatprep.subr.mxu0 0.0
  %1598 = vmatpush1.msra.mxu0 %v688
  %1599 = vmatprep.subr.mxu0 0.0
  %1600 = vmatpush1.msra.mxu0 %v689
  %1601 = vmatprep.subr.mxu0 0.0
  %1602 = vmatpush1.msra.mxu0 %v690
  %1603 = vmatprep.subr.mxu0 0.0
  %1604 = vmatpush1.msra.mxu0 %v691
  %1605 = vmatprep.subr.mxu0 0.0
  %1606 = vmatpush1.msra.mxu0 %v692
  %1607 = vmatprep.mubr.f32.mxu0 %v1432
  %1608 = vmatmul.mubr.f32.gmra.mrb[0].mxu0 %v1431
  %v1609 = vpop.f32.mrb[0].mxu0
  %v1610 = vadd.f32 0.0, %v1609
  %v1611 = vpop.f32.mrb[0].mxu0
  %1612 = vmatprep.mubr.f32.mxu0 %v1436
  %1613 = vmatmul.mubr.f32.gmra.mrb[0].mxu0 %v1435
  %v1614 = vpop.f32.mrb[0].mxu0
  %v1615 = vadd.f32 0.0, %v1614
  %v1616 = vpop.f32.mrb[0].mxu0
  %1617 = vmatprep.mubr.f32.mxu0 %v1440
  %1618 = vmatmul.mubr.f32.gmra.mrb[0].mxu0 %v1439
  %v1619 = vpop.f32.mrb[0].mxu0
  %v1620 = vadd.f32 0.0, %v1619
  %v1621 = vpop.f32.mrb[0].mxu0
  %1622 = vmatprep.mubr.f32.mxu0 %v1444
  %1623 = vmatmul.mubr.f32.gmra.mrb[0].mxu0 %v1443
  %v1624 = vpop.f32.mrb[0].mxu0
  %v1625 = vadd.f32 0.0, %v1624
  %v1626 = vpop.f32.mrb[0].mxu0
  %1627 = vmatprep.mubr.f32.mxu0 %v1448
  %1628 = vmatmul.mubr.f32.gmra.mrb[0].mxu0 %v1447
  %v1629 = vpop.f32.mrb[0].mxu0
  %v1630 = vadd.f32 0.0, %v1629
  %v1631 = vpop.f32.mrb[0].mxu0
  %1632 = vmatprep.mubr.f32.mxu0 %v1452
  %1633 = vmatmul.mubr.f32.gmra.mrb[0].mxu0 %v1451
  %v1634 = vpop.f32.mrb[0].mxu0
  %v1635 = vadd.f32 0.0, %v1634
  %v1636 = vpop.f32.mrb[0].mxu0
  %1637 = vmatprep.mubr.f32.mxu0 %v1456
  %1638 = vmatmul.mubr.f32.gmra.mrb[0].mxu0 %v1455
  %v1639 = vpop.f32.mrb[0].mxu0
  %v1640 = vadd.f32 0.0, %v1639
  %v1641 = vpop.f32.mrb[0].mxu0
  %1642 = vmatprep.mubr.f32.mxu0 %v1460
  %1643 = vmatmul.mubr.f32.gmra.mrb[0].mxu0 %v1459
  %v1644 = vpop.f32.mrb[0].mxu0
  %v1645 = vadd.f32 0.0, %v1644
  %v1646 = vpop.f32.mrb[0].mxu0
  %1647 = vmatprep.mubr.f32.mxu0 %v1464
  %1648 = vmatmul.mubr.f32.gmra.mrb[0].mxu0 %v1463
  %v1649 = vpop.f32.mrb[0].mxu0
  %v1650 = vadd.f32 0.0, %v1649
  %v1651 = vpop.f32.mrb[0].mxu0
  %1652 = vmatprep.mubr.f32.mxu0 %v1468
  %1653 = vmatmul.mubr.f32.gmra.mrb[0].mxu0 %v1467
  %v1654 = vpop.f32.mrb[0].mxu0
  %v1655 = vadd.f32 0.0, %v1654
  %v1656 = vpop.f32.mrb[0].mxu0
  %1657 = vmatprep.mubr.f32.mxu0 %v1472
  %1658 = vmatmul.mubr.f32.gmra.mrb[0].mxu0 %v1471
  %v1659 = vpop.f32.mrb[0].mxu0
  %v1660 = vadd.f32 0.0, %v1659
  %v1661 = vpop.f32.mrb[0].mxu0
  %1662 = vmatprep.mubr.f32.mxu0 %v1476
  %1663 = vmatmul.mubr.f32.gmra.mrb[0].mxu0 %v1475
  %v1664 = vpop.f32.mrb[0].mxu0
  %v1665 = vadd.f32 0.0, %v1664
  %v1666 = vpop.f32.mrb[0].mxu0
  %1667 = vmatprep.mubr.f32.mxu0 %v1480
  %1668 = vmatmul.mubr.f32.gmra.mrb[0].mxu0 %v1479
  %v1669 = vpop.f32.mrb[0].mxu0
  %v1670 = vadd.f32 0.0, %v1669
  %v1671 = vpop.f32.mrb[0].mxu0
  %1672 = vmatprep.mubr.f32.mxu0 %v1484
  %1673 = vmatmul.mubr.f32.gmra.mrb[0].mxu0 %v1483
  %v1674 = vpop.f32.mrb[0].mxu0
  %v1675 = vadd.f32 0.0, %v1674
  %v1676 = vpop.f32.mrb[0].mxu0
  %1677 = vmatprep.mubr.f32.mxu0 %v1488
  %1678 = vmatmul.mubr.f32.gmra.mrb[0].mxu0 %v1487
  %v1679 = vpop.f32.mrb[0].mxu0
  %v1680 = vadd.f32 0.0, %v1679
  %v1681 = vpop.f32.mrb[0].mxu0
  %1682 = vmatprep.mubr.f32.mxu0 %v1492
  %1683 = vmatmul.mubr.f32.gmra.mrb[0].mxu0 %v1491
  %v1684 = vpop.f32.mrb[0].mxu0
  %v1685 = vadd.f32 0.0, %v1684
  %v1686 = vpop.f32.mrb[0].mxu0
  %1687 = vdwg.mxu0
  %1688 = vmatprep.subr.mxu0 0.0
  %1689 = vmatpush1.msra.mxu0 %v693
  %1690 = vmatprep.subr.mxu0 0.0
  %1691 = vmatpush1.msra.mxu0 %v694
  %1692 = vmatprep.subr.mxu0 0.0
  %1693 = vmatpush1.msra.mxu0 %v695
  %1694 = vmatprep.subr.mxu0 0.0
  %1695 = vmatpush1.msra.mxu0 %v696
  %1696 = vmatprep.subr.mxu0 0.0
  %1697 = vmatpush1.msra.mxu0 %v697
  %1698 = vmatprep.subr.mxu0 0.0
  %1699 = vmatpush1.msra.mxu0 %v698
  %1700 = vmatprep.subr.mxu0 0.0
  %1701 = vmatpush1.msra.mxu0 %v699
  %1702 = vmatprep.subr.mxu0 0.0
  %1703 = vmatpush1.msra.mxu0 %v700
  %1704 = vmatprep.subr.mxu0 0.0
  %1705 = vmatpush1.msra.mxu0 %v701
  %1706 = vmatprep.subr.mxu0 0.0
  %1707 = vmatpush1.msra.mxu0 %v702
  %1708 = vmatprep.subr.mxu0 0.0
  %1709 = vmatpush1.msra.mxu0 %v703
  %1710 = vmatprep.subr.mxu0 0.0
  %1711 = vmatpush1.msra.mxu0 %v704
  %1712 = vmatprep.subr.mxu0 0.0
  %1713 = vmatpush1.msra.mxu0 %v705
  %1714 = vmatprep.subr.mxu0 0.0
  %1715 = vmatpush1.msra.mxu0 %v706
  %1716 = vmatprep.subr.mxu0 0.0
  %1717 = vmatpush1.msra.mxu0 %v707
  %1718 = vmatprep.subr.mxu0 0.0
  %1719 = vmatpush1.msra.mxu0 %v708
  %1720 = vmatprep.subr.mxu0 0.0
  %1721 = vmatpush1.msra.mxu0 %v709
  %1722 = vmatprep.subr.mxu0 0.0
  %1723 = vmatpush1.msra.mxu0 %v710
  %1724 = vmatprep.subr.mxu0 0.0
  %1725 = vmatpush1.msra.mxu0 %v711
  %1726 = vmatprep.subr.mxu0 0.0
  %1727 = vmatpush1.msra.mxu0 %v712
  %1728 = vmatprep.subr.mxu0 0.0
  %1729 = vmatpush1.msra.mxu0 %v713
  %1730 = vmatprep.subr.mxu0 0.0
  %1731 = vmatpush1.msra.mxu0 %v714
  %1732 = vmatprep.subr.mxu0 0.0
  %1733 = vmatpush1.msra.mxu0 %v715
  %1734 = vmatprep.subr.mxu0 0.0
  %1735 = vmatpush1.msra.mxu0 %v716
  %1736 = vmatprep.subr.mxu0 0.0
  %1737 = vmatpush1.msra.mxu0 %v717
  %1738 = vmatprep.subr.mxu0 0.0
  %1739 = vmatpush1.msra.mxu0 0.0
  %1740 = vmatprep.subr.mxu0 0.0
  %1741 = vmatpush1.msra.mxu0 0.0
  %1742 = vmatprep.subr.mxu0 0.0
  %1743 = vmatpush1.msra.mxu0 0.0
  %1744 = vmatprep.subr.mxu0 0.0
  %1745 = vmatpush1.msra.mxu0 0.0
  %1746 = vmatprep.subr.mxu0 0.0
  %1747 = vmatpush1.msra.mxu0 0.0
  %1748 = vmatprep.subr.mxu0 0.0
  %1749 = vmatpush1.msra.mxu0 0.0
  %1750 = vmatprep.subr.mxu0 0.0
  %1751 = vmatpush1.msra.mxu0 0.0
  %1752 = vmatprep.mubr.f32.mxu0 %v1496
  %1753 = vmatmul.mubr.f32.gmra.mrb[0].mxu0 %v1433
  %v1754 = vpop.f32.mrb[0].mxu0
  %v1755 = vadd.f32 %v1610, %v1754
  %v1756 = vpop.f32.mrb[0].mxu0
  %1757 = vmatprep.mubr.f32.mxu0 %v1499
  %1758 = vmatmul.mubr.f32.gmra.mrb[0].mxu0 %v1437
  %v1759 = vpop.f32.mrb[0].mxu0
  %v1760 = vadd.f32 %v1615, %v1759
  %v1761 = vpop.f32.mrb[0].mxu0
  %1762 = vmatprep.mubr.f32.mxu0 %v1502
  %1763 = vmatmul.mubr.f32.gmra.mrb[0].mxu0 %v1441
  %v1764 = vpop.f32.mrb[0].mxu0
  %v1765 = vadd.f32 %v1620, %v1764
  %v1766 = vpop.f32.mrb[0].mxu0
  %1767 = vmatprep.mubr.f32.mxu0 %v1505
  %1768 = vmatmul.mubr.f32.gmra.mrb[0].mxu0 %v1445
  %v1769 = vpop.f32.mrb[0].mxu0
  %v1770 = vadd.f32 %v1625, %v1769
  %v1771 = vpop.f32.mrb[0].mxu0
  %1772 = vmatprep.mubr.f32.mxu0 %v1508
  %1773 = vmatmul.mubr.f32.gmra.mrb[0].mxu0 %v1449
  %v1774 = vpop.f32.mrb[0].mxu0
  %v1775 = vadd.f32 %v1630, %v1774
  %v1776 = vpop.f32.mrb[0].mxu0
  %1777 = vmatprep.mubr.f32.mxu0 %v1511
  %1778 = vmatmul.mubr.f32.gmra.mrb[0].mxu0 %v1453
  %v1779 = vpop.f32.mrb[0].mxu0
  %v1780 = vadd.f32 %v1635, %v1779
  %v1781 = vpop.f32.mrb[0].mxu0
  %1782 = vmatprep.mubr.f32.mxu0 %v1514
  %1783 = vmatmul.mubr.f32.gmra.mrb[0].mxu0 %v1457
  %v1784 = vpop.f32.mrb[0].mxu0
  %v1785 = vadd.f32 %v1640, %v1784
  %v1786 = vpop.f32.mrb[0].mxu0
  %1787 = vmatprep.mubr.f32.mxu0 %v1517
  %1788 = vmatmul.mubr.f32.gmra.mrb[0].mxu0 %v1461
  %v1789 = vpop.f32.mrb[0].mxu0
  %v1790 = vadd.f32 %v1645, %v1789
  %v1791 = vpop.f32.mrb[0].mxu0
  %1792 = vmatprep.mubr.f32.mxu0 %v1520
  %1793 = vmatmul.mubr.f32.gmra.mrb[0].mxu0 %v1465
  %v1794 = vpop.f32.mrb[0].mxu0
  %v1795 = vadd.f32 %v1650, %v1794
  %v1796 = vpop.f32.mrb[0].mxu0
  %1797 = vmatprep.mubr.f32.mxu0 %v1523
  %1798 = vmatmul.mubr.f32.gmra.mrb[0].mxu0 %v1469
  %v1799 = vpop.f32.mrb[0].mxu0
  %v1800 = vadd.f32 %v1655, %v1799
  %v1801 = vpop.f32.mrb[0].mxu0
  %1802 = vmatprep.mubr.f32.mxu0 %v1526
  %1803 = vmatmul.mubr.f32.gmra.mrb[0].mxu0 %v1473
  %v1804 = vpop.f32.mrb[0].mxu0
  %v1805 = vadd.f32 %v1660, %v1804
  %v1806 = vpop.f32.mrb[0].mxu0
  %1807 = vmatprep.mubr.f32.mxu0 %v1529
  %1808 = vmatmul.mubr.f32.gmra.mrb[0].mxu0 %v1477
  %v1809 = vpop.f32.mrb[0].mxu0
  %v1810 = vadd.f32 %v1665, %v1809
  %v1811 = vpop.f32.mrb[0].mxu0
  %1812 = vmatprep.mubr.f32.mxu0 %v1532
  %1813 = vmatmul.mubr.f32.gmra.mrb[0].mxu0 %v1481
  %v1814 = vpop.f32.mrb[0].mxu0
  %v1815 = vadd.f32 %v1670, %v1814
  %v1816 = vpop.f32.mrb[0].mxu0
  %1817 = vmatprep.mubr.f32.mxu0 %v1535
  %1818 = vmatmul.mubr.f32.gmra.mrb[0].mxu0 %v1485
  %v1819 = vpop.f32.mrb[0].mxu0
  %v1820 = vadd.f32 %v1675, %v1819
  %v1821 = vpop.f32.mrb[0].mxu0
  %1822 = vmatprep.mubr.f32.mxu0 %v1538
  %1823 = vmatmul.mubr.f32.gmra.mrb[0].mxu0 %v1489
  %v1824 = vpop.f32.mrb[0].mxu0
  %v1825 = vadd.f32 %v1680, %v1824
  %v1826 = vpop.f32.mrb[0].mxu0
  %1827 = vmatprep.mubr.f32.mxu0 %v1541
  %1828 = vmatmul.mubr.f32.gmra.mrb[0].mxu0 %v1493
  %v1829 = vpop.f32.mrb[0].mxu0
  %v1830 = vadd.f32 %v1685, %v1829
  %v1831 = vpop.f32.mrb[0].mxu0
  %1832 = vdwg.mxu0
  %v1833 = vld [vmem:[%s1 + $0x20] sm:$0xff]
  %v1834 = vld [vmem:[%s1 + $0x28] sm:$0xff]
  %vm1835 = vcmask 130048
  %v1837 = vsel %vm1835, %v1755, 0
  %v1840 = vsel %vm1835, %v1760, 0
  %v1843 = vsel %vm1835, %v1765, 0
  %v1846 = vsel %vm1835, %v1770, 0
  %v1849 = vsel %vm1835, %v1775, 0
  %v1852 = vsel %vm1835, %v1780, 0
  %v1855 = vsel %vm1835, %v1785, 0
  %v1858 = vsel %vm1835, %v1790, 0
  %v1861 = vsel %vm1835, %v1795, 0
  %v1864 = vsel %vm1835, %v1800, 0
  %v1867 = vsel %vm1835, %v1805, 0
  %v1870 = vsel %vm1835, %v1810, 0
  %v1873 = vsel %vm1835, %v1815, 0
  %v1876 = vsel %vm1835, %v1820, 0
  %v1879 = vsel %vm1835, %v1825, 0
  %v1882 = vsel %vm1835, %v1830, 0
  %1884 = vmatprep.subr.mxu0 0.0
  %1885 = vmatpush1.msra.mxu0 %v1833
  %1886 = vmatprep.subr.mxu0 0.0
  %1887 = vmatpush1.msra.mxu0 %v1834
  %1888 = vmatprep.subr.mxu0 0.0
  %1889 = vmatpush1.msra.mxu0 0.0
  %1890 = vmatprep.subr.mxu0 0.0
  %1891 = vmatpush1.msra.mxu0 0.0
  %1892 = vmatprep.subr.mxu0 0.0
  %1893 = vmatpush1.msra.mxu0 0.0
  %1894 = vmatprep.subr.mxu0 0.0
  %1895 = vmatpush1.msra.mxu0 0.0
  %1896 = vmatprep.subr.mxu0 0.0
  %1897 = vmatpush1.msra.mxu0 0.0
  %1898 = vmatprep.subr.mxu0 0.0
  %1899 = vmatpush1.msra.mxu0 0.0
  %1900 = vmatprep.subr.mxu0 0.0
  %1901 = vmatpush1.msra.mxu0 0.0
  %1902 = vmatprep.subr.mxu0 0.0
  %1903 = vmatpush1.msra.mxu0 0.0
  %1904 = vmatprep.subr.mxu0 0.0
  %1905 = vmatpush1.msra.mxu0 0.0
  %1906 = vmatprep.subr.mxu0 0.0
  %1907 = vmatpush1.msra.mxu0 0.0
  %1908 = vmatprep.subr.mxu0 0.0
  %1909 = vmatpush1.msra.mxu0 0.0
  %1910 = vmatprep.subr.mxu0 0.0
  %1911 = vmatpush1.msra.mxu0 0.0
  %1912 = vmatprep.subr.mxu0 0.0
  %1913 = vmatpush1.msra.mxu0 0.0
  %1914 = vmatprep.subr.mxu0 0.0
  %1915 = vmatpush1.msra.mxu0 0.0
  %1916 = vmatprep.subr.mxu0 0.0
  %1917 = vmatpush1.msra.mxu0 0.0
  %1918 = vmatprep.subr.mxu0 0.0
  %1919 = vmatpush1.msra.mxu0 0.0
  %1920 = vmatprep.subr.mxu0 0.0
  %1921 = vmatpush1.msra.mxu0 0.0
  %1922 = vmatprep.subr.mxu0 0.0
  %1923 = vmatpush1.msra.mxu0 0.0
  %1924 = vmatprep.subr.mxu0 0.0
  %1925 = vmatpush1.msra.mxu0 0.0
  %1926 = vmatprep.subr.mxu0 0.0
  %1927 = vmatpush1.msra.mxu0 0.0
  %1928 = vmatprep.subr.mxu0 0.0
  %1929 = vmatpush1.msra.mxu0 0.0
  %1930 = vmatprep.subr.mxu0 0.0
  %1931 = vmatpush1.msra.mxu0 0.0
  %1932 = vmatprep.subr.mxu0 0.0
  %1933 = vmatpush1.msra.mxu0 0.0
  %1934 = vmatprep.subr.mxu0 0.0
  %1935 = vmatpush1.msra.mxu0 0.0
  %1936 = vmatprep.subr.mxu0 0.0
  %1937 = vmatpush1.msra.mxu0 0.0
  %1938 = vmatprep.subr.mxu0 0.0
  %1939 = vmatpush1.msra.mxu0 0.0
  %1940 = vmatprep.subr.mxu0 0.0
  %1941 = vmatpush1.msra.mxu0 0.0
  %1942 = vmatprep.subr.mxu0 0.0
  %1943 = vmatpush1.msra.mxu0 0.0
  %1944 = vmatprep.subr.mxu0 0.0
  %1945 = vmatpush1.msra.mxu0 0.0
  %1946 = vmatprep.subr.mxu0 0.0
  %1947 = vmatpush1.msra.mxu0 0.0
  %1948 = vmatprep.mubr.f32.mxu0 0.0
  %1949 = vmatmul.mubr.f32.gmra.mrb[0].mxu0 %v1837
  %v1950 = vpop.f32.mrb[0].mxu0
  %v1951 = vadd.f32 0.0, %v1950
  %v1952 = vpop.f32.mrb[0].mxu0
  %1953 = vmatprep.mubr.f32.mxu0 0.0
  %1954 = vmatmul.mubr.f32.gmra.mrb[0].mxu0 %v1840
  %v1955 = vpop.f32.mrb[0].mxu0
  %v1956 = vadd.f32 0.0, %v1955
  %v1957 = vpop.f32.mrb[0].mxu0
  %1958 = vmatprep.mubr.f32.mxu0 0.0
  %1959 = vmatmul.mubr.f32.gmra.mrb[0].mxu0 %v1843
  %v1960 = vpop.f32.mrb[0].mxu0
  %v1961 = vadd.f32 0.0, %v1960
  %v1962 = vpop.f32.mrb[0].mxu0
  %1963 = vmatprep.mubr.f32.mxu0 0.0
  %1964 = vmatmul.mubr.f32.gmra.mrb[0].mxu0 %v1846
  %v1965 = vpop.f32.mrb[0].mxu0
  %v1966 = vadd.f32 0.0, %v1965
  %v1967 = vpop.f32.mrb[0].mxu0
  %1968 = vmatprep.mubr.f32.mxu0 0.0
  %1969 = vmatmul.mubr.f32.gmra.mrb[0].mxu0 %v1849
  %v1970 = vpop.f32.mrb[0].mxu0
  %v1971 = vadd.f32 0.0, %v1970
  %v1972 = vpop.f32.mrb[0].mxu0
  %1973 = vmatprep.mubr.f32.mxu0 0.0
  %1974 = vmatmul.mubr.f32.gmra.mrb[0].mxu0 %v1852
  %v1975 = vpop.f32.mrb[0].mxu0
  %v1976 = vadd.f32 0.0, %v1975
  %v1977 = vpop.f32.mrb[0].mxu0
  %1978 = vmatprep.mubr.f32.mxu0 0.0
  %1979 = vmatmul.mubr.f32.gmra.mrb[0].mxu0 %v1855
  %v1980 = vpop.f32.mrb[0].mxu0
  %v1981 = vadd.f32 0.0, %v1980
  %v1982 = vpop.f32.mrb[0].mxu0
  %1983 = vmatprep.mubr.f32.mxu0 0.0
  %1984 = vmatmul.mubr.f32.gmra.mrb[0].mxu0 %v1858
  %v1985 = vpop.f32.mrb[0].mxu0
  %v1986 = vadd.f32 0.0, %v1985
  %v1987 = vpop.f32.mrb[0].mxu0
  %1988 = vmatprep.mubr.f32.mxu0 0.0
  %1989 = vmatmul.mubr.f32.gmra.mrb[0].mxu0 %v1861
  %v1990 = vpop.f32.mrb[0].mxu0
  %v1991 = vadd.f32 0.0, %v1990
  %v1992 = vpop.f32.mrb[0].mxu0
  %1993 = vmatprep.mubr.f32.mxu0 0.0
  %1994 = vmatmul.mubr.f32.gmra.mrb[0].mxu0 %v1864
  %v1995 = vpop.f32.mrb[0].mxu0
  %v1996 = vadd.f32 0.0, %v1995
  %v1997 = vpop.f32.mrb[0].mxu0
  %1998 = vmatprep.mubr.f32.mxu0 0.0
  %1999 = vmatmul.mubr.f32.gmra.mrb[0].mxu0 %v1867
  %v2000 = vpop.f32.mrb[0].mxu0
  %v2001 = vadd.f32 0.0, %v2000
  %v2002 = vpop.f32.mrb[0].mxu0
  %2003 = vmatprep.mubr.f32.mxu0 0.0
  %2004 = vmatmul.mubr.f32.gmra.mrb[0].mxu0 %v1870
  %v2005 = vpop.f32.mrb[0].mxu0
  %v2006 = vadd.f32 0.0, %v2005
  %v2007 = vpop.f32.mrb[0].mxu0
  %2008 = vmatprep.mubr.f32.mxu0 0.0
  %2009 = vmatmul.mubr.f32.gmra.mrb[0].mxu0 %v1873
  %v2010 = vpop.f32.mrb[0].mxu0
  %v2011 = vadd.f32 0.0, %v2010
  %v2012 = vpop.f32.mrb[0].mxu0
  %2013 = vmatprep.mubr.f32.mxu0 0.0
  %2014 = vmatmul.mubr.f32.gmra.mrb[0].mxu0 %v1876
  %v2015 = vpop.f32.mrb[0].mxu0
  %v2016 = vadd.f32 0.0, %v2015
  %v2017 = vpop.f32.mrb[0].mxu0
  %2018 = vmatprep.mubr.f32.mxu0 0.0
  %2019 = vmatmul.mubr.f32.gmra.mrb[0].mxu0 %v1879
  %v2020 = vpop.f32.mrb[0].mxu0
  %v2021 = vadd.f32 0.0, %v2020
  %v2022 = vpop.f32.mrb[0].mxu0
  %2023 = vmatprep.mubr.f32.mxu0 0.0
  %2024 = vmatmul.mubr.f32.gmra.mrb[0].mxu0 %v1882
  %v2025 = vpop.f32.mrb[0].mxu0
  %v2026 = vadd.f32 0.0, %v2025
  %v2027 = vpop.f32.mrb[0].mxu0
  %2028 = vdwg.mxu0
  %v2030 = vsel %vm1835, %v1205, 0
  %v2033 = vsel %vm1835, %v1210, 0
  %v2036 = vsel %vm1835, %v1215, 0
  %v2039 = vsel %vm1835, %v1220, 0
  %v2042 = vsel %vm1835, %v1225, 0
  %v2045 = vsel %vm1835, %v1230, 0
  %v2048 = vsel %vm1835, %v1235, 0
  %v2051 = vsel %vm1835, %v1240, 0
  %v2054 = vsel %vm1835, %v1245, 0
  %v2057 = vsel %vm1835, %v1250, 0
  %v2060 = vsel %vm1835, %v1255, 0
  %v2063 = vsel %vm1835, %v1260, 0
  %v2066 = vsel %vm1835, %v1265, 0
  %v2069 = vsel %vm1835, %v1270, 0
  %v2072 = vsel %vm1835, %v1275, 0
  %v2075 = vsel %vm1835, %v1280, 0
  %2077 = vmatprep.subr.mxu0 0.0
  %2078 = vmatpush1.msra.mxu0 %v1283
  %2079 = vmatprep.subr.mxu0 0.0
  %2080 = vmatpush1.msra.mxu0 %v1284
  %2081 = vmatprep.subr.mxu0 0.0
  %2082 = vmatpush1.msra.mxu0 0.0
  %2083 = vmatprep.subr.mxu0 0.0
  %2084 = vmatpush1.msra.mxu0 0.0
  %2085 = vmatprep.subr.mxu0 0.0
  %2086 = vmatpush1.msra.mxu0 0.0
  %2087 = vmatprep.subr.mxu0 0.0
  %2088 = vmatpush1.msra.mxu0 0.0
  %2089 = vmatprep.subr.mxu0 0.0
  %2090 = vmatpush1.msra.mxu0 0.0
  %2091 = vmatprep.subr.mxu0 0.0
  %2092 = vmatpush1.msra.mxu0 0.0
  %2093 = vmatprep.subr.mxu0 0.0
  %2094 = vmatpush1.msra.mxu0 0.0
  %2095 = vmatprep.subr.mxu0 0.0
  %2096 = vmatpush1.msra.mxu0 0.0
  %2097 = vmatprep.subr.mxu0 0.0
  %2098 = vmatpush1.msra.mxu0 0.0
  %2099 = vmatprep.subr.mxu0 0.0
  %2100 = vmatpush1.msra.mxu0 0.0
  %2101 = vmatprep.subr.mxu0 0.0
  %2102 = vmatpush1.msra.mxu0 0.0
  %2103 = vmatprep.subr.mxu0 0.0
  %2104 = vmatpush1.msra.mxu0 0.0
  %2105 = vmatprep.subr.mxu0 0.0
  %2106 = vmatpush1.msra.mxu0 0.0
  %2107 = vmatprep.subr.mxu0 0.0
  %2108 = vmatpush1.msra.mxu0 0.0
  %2109 = vmatprep.subr.mxu0 0.0
  %2110 = vmatpush1.msra.mxu0 0.0
  %2111 = vmatprep.subr.mxu0 0.0
  %2112 = vmatpush1.msra.mxu0 0.0
  %2113 = vmatprep.subr.mxu0 0.0
  %2114 = vmatpush1.msra.mxu0 0.0
  %2115 = vmatprep.subr.mxu0 0.0
  %2116 = vmatpush1.msra.mxu0 0.0
  %2117 = vmatprep.subr.mxu0 0.0
  %2118 = vmatpush1.msra.mxu0 0.0
  %2119 = vmatprep.subr.mxu0 0.0
  %2120 = vmatpush1.msra.mxu0 0.0
  %2121 = vmatprep.subr.mxu0 0.0
  %2122 = vmatpush1.msra.mxu0 0.0
  %2123 = vmatprep.subr.mxu0 0.0
  %2124 = vmatpush1.msra.mxu0 0.0
  %2125 = vmatprep.subr.mxu0 0.0
  %2126 = vmatpush1.msra.mxu0 0.0
  %2127 = vmatprep.subr.mxu0 0.0
  %2128 = vmatpush1.msra.mxu0 0.0
  %2129 = vmatprep.subr.mxu0 0.0
  %2130 = vmatpush1.msra.mxu0 0.0
  %2131 = vmatprep.subr.mxu0 0.0
  %2132 = vmatpush1.msra.mxu0 0.0
  %2133 = vmatprep.subr.mxu0 0.0
  %2134 = vmatpush1.msra.mxu0 0.0
  %2135 = vmatprep.subr.mxu0 0.0
  %2136 = vmatpush1.msra.mxu0 0.0
  %2137 = vmatprep.subr.mxu0 0.0
  %2138 = vmatpush1.msra.mxu0 0.0
  %2139 = vmatprep.subr.mxu0 0.0
  %2140 = vmatpush1.msra.mxu0 0.0
  %2141 = vmatprep.mubr.f32.mxu0 0.0
  %2142 = vmatmul.mubr.f32.gmra.mrb[0].mxu0 %v2030
  %v2143 = vpop.f32.mrb[0].mxu0
  %v2144 = vadd.f32 %v1951, %v2143
  %v2145 = vpop.f32.mrb[0].mxu0
  %2146 = vmatprep.mubr.f32.mxu0 0.0
  %2147 = vmatmul.mubr.f32.gmra.mrb[0].mxu0 %v2033
  %v2148 = vpop.f32.mrb[0].mxu0
  %v2149 = vadd.f32 %v1956, %v2148
  %v2150 = vpop.f32.mrb[0].mxu0
  %2151 = vmatprep.mubr.f32.mxu0 0.0
  %2152 = vmatmul.mubr.f32.gmra.mrb[0].mxu0 %v2036
  %v2153 = vpop.f32.mrb[0].mxu0
  %v2154 = vadd.f32 %v1961, %v2153
  %v2155 = vpop.f32.mrb[0].mxu0
  %2156 = vmatprep.mubr.f32.mxu0 0.0
  %2157 = vmatmul.mubr.f32.gmra.mrb[0].mxu0 %v2039
  %v2158 = vpop.f32.mrb[0].mxu0
  %v2159 = vadd.f32 %v1966, %v2158
  %v2160 = vpop.f32.mrb[0].mxu0
  %2161 = vmatprep.mubr.f32.mxu0 0.0
  %2162 = vmatmul.mubr.f32.gmra.mrb[0].mxu0 %v2042
  %v2163 = vpop.f32.mrb[0].mxu0
  %v2164 = vadd.f32 %v1971, %v2163
  %v2165 = vpop.f32.mrb[0].mxu0
  %2166 = vmatprep.mubr.f32.mxu0 0.0
  %2167 = vmatmul.mubr.f32.gmra.mrb[0].mxu0 %v2045
  %v2168 = vpop.f32.mrb[0].mxu0
  %v2169 = vadd.f32 %v1976, %v2168
  %v2170 = vpop.f32.mrb[0].mxu0
  %2171 = vmatprep.mubr.f32.mxu0 0.0
  %2172 = vmatmul.mubr.f32.gmra.mrb[0].mxu0 %v2048
  %v2173 = vpop.f32.mrb[0].mxu0
  %v2174 = vadd.f32 %v1981, %v2173
  %v2175 = vpop.f32.mrb[0].mxu0
  %2176 = vmatprep.mubr.f32.mxu0 0.0
  %2177 = vmatmul.mubr.f32.gmra.mrb[0].mxu0 %v2051
  %v2178 = vpop.f32.mrb[0].mxu0
  %v2179 = vadd.f32 %v1986, %v2178
  %v2180 = vpop.f32.mrb[0].mxu0
  %2181 = vmatprep.mubr.f32.mxu0 0.0
  %2182 = vmatmul.mubr.f32.gmra.mrb[0].mxu0 %v2054
  %v2183 = vpop.f32.mrb[0].mxu0
  %v2184 = vadd.f32 %v1991, %v2183
  %v2185 = vpop.f32.mrb[0].mxu0
  %2186 = vmatprep.mubr.f32.mxu0 0.0
  %2187 = vmatmul.mubr.f32.gmra.mrb[0].mxu0 %v2057
  %v2188 = vpop.f32.mrb[0].mxu0
  %v2189 = vadd.f32 %v1996, %v2188
  %v2190 = vpop.f32.mrb[0].mxu0
  %2191 = vmatprep.mubr.f32.mxu0 0.0
  %2192 = vmatmul.mubr.f32.gmra.mrb[0].mxu0 %v2060
  %v2193 = vpop.f32.mrb[0].mxu0
  %v2194 = vadd.f32 %v2001, %v2193
  %v2195 = vpop.f32.mrb[0].mxu0
  %2196 = vmatprep.mubr.f32.mxu0 0.0
  %2197 = vmatmul.mubr.f32.gmra.mrb[0].mxu0 %v2063
  %v2198 = vpop.f32.mrb[0].mxu0
  %v2199 = vadd.f32 %v2006, %v2198
  %v2200 = vpop.f32.mrb[0].mxu0
  %2201 = vmatprep.mubr.f32.mxu0 0.0
  %2202 = vmatmul.mubr.f32.gmra.mrb[0].mxu0 %v2066
  %v2203 = vpop.f32.mrb[0].mxu0
  %v2204 = vadd.f32 %v2011, %v2203
  %v2205 = vpop.f32.mrb[0].mxu0
  %2206 = vmatprep.mubr.f32.mxu0 0.0
  %2207 = vmatmul.mubr.f32.gmra.mrb[0].mxu0 %v2069
  %v2208 = vpop.f32.mrb[0].mxu0
  %v2209 = vadd.f32 %v2016, %v2208
  %v2210 = vpop.f32.mrb[0].mxu0
  %2211 = vmatprep.mubr.f32.mxu0 0.0
  %2212 = vmatmul.mubr.f32.gmra.mrb[0].mxu0 %v2072
  %v2213 = vpop.f32.mrb[0].mxu0
  %v2214 = vadd.f32 %v2021, %v2213
  %v2215 = vpop.f32.mrb[0].mxu0
  %2216 = vmatprep.mubr.f32.mxu0 0.0
  %2217 = vmatmul.mubr.f32.gmra.mrb[0].mxu0 %v2075
  %v2218 = vpop.f32.mrb[0].mxu0
  %v2219 = vadd.f32 %v2026, %v2218
  %v2220 = vpop.f32.mrb[0].mxu0
  %2221 = vdwg.mxu0
  %s2222 = scalar_lea.vmem %s2, 2
  %v2223 = vld [vmem:[%s2222] ss:$4 sm:$0xf]
  %v2224 = vlaneseq
  %v2225 = vshrl.u32 %v2224, 7
  %v2226 = vsub.s32 0, %v2225
  %v2227 = vrot.slane %v2223, %v2226
  %v2228 = vlaneseq
  %v2229 = vshrl.u32 %v2228, 7
  %v2230 = vsub.s32 1, %v2229
  %v2231 = vrot.slane %v2223, %v2230
  %v2232 = vlaneseq
  %v2233 = vshrl.u32 %v2232, 7
  %v2234 = vsub.s32 2, %v2233
  %v2235 = vrot.slane %v2223, %v2234
  %v2236 = vlaneseq
  %v2237 = vshrl.u32 %v2236, 7
  %v2238 = vsub.s32 3, %v2237
  %v2239 = vrot.slane %v2223, %v2238
  %vm2240 = vcmp.eq.s32.totalorder %v719, %v2227
  %vm2241 = vcmp.eq.s32.totalorder %v719, %v2231
  %vm2242 = vcmp.eq.s32.totalorder %v719, %v2235
  %vm2243 = vcmp.eq.s32.totalorder %v719, %v2239
  %vm2244 = vcmp.eq.s32.totalorder %v720, %v2227
  %vm2245 = vcmp.eq.s32.totalorder %v720, %v2231
  %vm2246 = vcmp.eq.s32.totalorder %v720, %v2235
  %vm2247 = vcmp.eq.s32.totalorder %v720, %v2239
  %vm2248 = vcmp.eq.s32.totalorder %v721, %v2227
  %vm2249 = vcmp.eq.s32.totalorder %v721, %v2231
  %vm2250 = vcmp.eq.s32.totalorder %v721, %v2235
  %vm2251 = vcmp.eq.s32.totalorder %v721, %v2239
  %vm2252 = vcmp.eq.s32.totalorder %v722, %v2227
  %vm2253 = vcmp.eq.s32.totalorder %v722, %v2231
  %vm2254 = vcmp.eq.s32.totalorder %v722, %v2235
  %vm2255 = vcmp.eq.s32.totalorder %v722, %v2239
  %vm2256 = vcmp.eq.s32.totalorder %v723, %v2227
  %vm2257 = vcmp.eq.s32.totalorder %v723, %v2231
  %vm2258 = vcmp.eq.s32.totalorder %v723, %v2235
  %vm2259 = vcmp.eq.s32.totalorder %v723, %v2239
  %vm2260 = vcmp.eq.s32.totalorder %v724, %v2227
  %vm2261 = vcmp.eq.s32.totalorder %v724, %v2231
  %vm2262 = vcmp.eq.s32.totalorder %v724, %v2235
  %vm2263 = vcmp.eq.s32.totalorder %v724, %v2239
  %vm2264 = vcmp.eq.s32.totalorder %v725, %v2227
  %vm2265 = vcmp.eq.s32.totalorder %v725, %v2231
  %vm2266 = vcmp.eq.s32.totalorder %v725, %v2235
  %vm2267 = vcmp.eq.s32.totalorder %v725, %v2239
  %vm2268 = vcmp.eq.s32.totalorder %v726, %v2227
  %vm2269 = vcmp.eq.s32.totalorder %v726, %v2231
  %vm2270 = vcmp.eq.s32.totalorder %v726, %v2235
  %vm2271 = vcmp.eq.s32.totalorder %v726, %v2239
  %vm2272 = vcmp.eq.s32.totalorder %v727, %v2227
  %vm2273 = vcmp.eq.s32.totalorder %v727, %v2231
  %vm2274 = vcmp.eq.s32.totalorder %v727, %v2235
  %vm2275 = vcmp.eq.s32.totalorder %v727, %v2239
  %vm2276 = vcmp.eq.s32.totalorder %v728, %v2227
  %vm2277 = vcmp.eq.s32.totalorder %v728, %v2231
  %vm2278 = vcmp.eq.s32.totalorder %v728, %v2235
  %vm2279 = vcmp.eq.s32.totalorder %v728, %v2239
  %vm2280 = vcmp.eq.s32.totalorder %v729, %v2227
  %vm2281 = vcmp.eq.s32.totalorder %v729, %v2231
  %vm2282 = vcmp.eq.s32.totalorder %v729, %v2235
  %vm2283 = vcmp.eq.s32.totalorder %v729, %v2239
  %vm2284 = vcmp.eq.s32.totalorder %v730, %v2227
  %vm2285 = vcmp.eq.s32.totalorder %v730, %v2231
  %vm2286 = vcmp.eq.s32.totalorder %v730, %v2235
  %vm2287 = vcmp.eq.s32.totalorder %v730, %v2239
  %vm2288 = vcmp.eq.s32.totalorder %v731, %v2227
  %vm2289 = vcmp.eq.s32.totalorder %v731, %v2231
  %vm2290 = vcmp.eq.s32.totalorder %v731, %v2235
  %vm2291 = vcmp.eq.s32.totalorder %v731, %v2239
  %vm2292 = vcmp.eq.s32.totalorder %v732, %v2227
  %vm2293 = vcmp.eq.s32.totalorder %v732, %v2231
  %vm2294 = vcmp.eq.s32.totalorder %v732, %v2235
  %vm2295 = vcmp.eq.s32.totalorder %v732, %v2239
  %vm2296 = vcmp.eq.s32.totalorder %v733, %v2227
  %vm2297 = vcmp.eq.s32.totalorder %v733, %v2231
  %vm2298 = vcmp.eq.s32.totalorder %v733, %v2235
  %vm2299 = vcmp.eq.s32.totalorder %v733, %v2239
  %vm2300 = vcmp.eq.s32.totalorder %v734, %v2227
  %vm2301 = vcmp.eq.s32.totalorder %v734, %v2231
  %vm2302 = vcmp.eq.s32.totalorder %v734, %v2235
  %vm2303 = vcmp.eq.s32.totalorder %v734, %v2239
  %v2304 = vsel %vm2240, 1, 0
  %v2305 = vsel %vm2241, 1, 0
  %v2306 = vsel %vm2242, 1, 0
  %v2307 = vsel %vm2243, 1, 0
  %v2308 = vsel %vm2244, 1, 0
  %v2309 = vsel %vm2245, 1, 0
  %v2310 = vsel %vm2246, 1, 0
  %v2311 = vsel %vm2247, 1, 0
  %v2312 = vsel %vm2248, 1, 0
  %v2313 = vsel %vm2249, 1, 0
  %v2314 = vsel %vm2250, 1, 0
  %v2315 = vsel %vm2251, 1, 0
  %v2316 = vsel %vm2252, 1, 0
  %v2317 = vsel %vm2253, 1, 0
  %v2318 = vsel %vm2254, 1, 0
  %v2319 = vsel %vm2255, 1, 0
  %v2320 = vsel %vm2256, 1, 0
  %v2321 = vsel %vm2257, 1, 0
  %v2322 = vsel %vm2258, 1, 0
  %v2323 = vsel %vm2259, 1, 0
  %v2324 = vsel %vm2260, 1, 0
  %v2325 = vsel %vm2261, 1, 0
  %v2326 = vsel %vm2262, 1, 0
  %v2327 = vsel %vm2263, 1, 0
  %v2328 = vsel %vm2264, 1, 0
  %v2329 = vsel %vm2265, 1, 0
  %v2330 = vsel %vm2266, 1, 0
  %v2331 = vsel %vm2267, 1, 0
  %v2332 = vsel %vm2268, 1, 0
  %v2333 = vsel %vm2269, 1, 0
  %v2334 = vsel %vm2270, 1, 0
  %v2335 = vsel %vm2271, 1, 0
  %v2336 = vsel %vm2272, 1, 0
  %v2337 = vsel %vm2273, 1, 0
  %v2338 = vsel %vm2274, 1, 0
  %v2339 = vsel %vm2275, 1, 0
  %v2340 = vsel %vm2276, 1, 0
  %v2341 = vsel %vm2277, 1, 0
  %v2342 = vsel %vm2278, 1, 0
  %v2343 = vsel %vm2279, 1, 0
  %v2344 = vsel %vm2280, 1, 0
  %v2345 = vsel %vm2281, 1, 0
  %v2346 = vsel %vm2282, 1, 0
  %v2347 = vsel %vm2283, 1, 0
  %v2348 = vsel %vm2284, 1, 0
  %v2349 = vsel %vm2285, 1, 0
  %v2350 = vsel %vm2286, 1, 0
  %v2351 = vsel %vm2287, 1, 0
  %v2352 = vsel %vm2288, 1, 0
  %v2353 = vsel %vm2289, 1, 0
  %v2354 = vsel %vm2290, 1, 0
  %v2355 = vsel %vm2291, 1, 0
  %v2356 = vsel %vm2292, 1, 0
  %v2357 = vsel %vm2293, 1, 0
  %v2358 = vsel %vm2294, 1, 0
  %v2359 = vsel %vm2295, 1, 0
  %v2360 = vsel %vm2296, 1, 0
  %v2361 = vsel %vm2297, 1, 0
  %v2362 = vsel %vm2298, 1, 0
  %v2363 = vsel %vm2299, 1, 0
  %v2364 = vsel %vm2300, 1, 0
  %v2365 = vsel %vm2301, 1, 0
  %v2366 = vsel %vm2302, 1, 0
  %v2367 = vsel %vm2303, 1, 0
  %v2368 = vcvt.s32.f32 %v2304
  %v2369 = vcvt.s32.f32 %v2305
  %v2370 = vcvt.s32.f32 %v2306
  %v2371 = vcvt.s32.f32 %v2307
  %v2372 = vcvt.s32.f32 %v2308
  %v2373 = vcvt.s32.f32 %v2309
  %v2374 = vcvt.s32.f32 %v2310
  %v2375 = vcvt.s32.f32 %v2311
  %v2376 = vcvt.s32.f32 %v2312
  %v2377 = vcvt.s32.f32 %v2313
  %v2378 = vcvt.s32.f32 %v2314
  %v2379 = vcvt.s32.f32 %v2315
  %v2380 = vcvt.s32.f32 %v2316
  %v2381 = vcvt.s32.f32 %v2317
  %v2382 = vcvt.s32.f32 %v2318
  %v2383 = vcvt.s32.f32 %v2319
  %v2384 = vcvt.s32.f32 %v2320
  %v2385 = vcvt.s32.f32 %v2321
  %v2386 = vcvt.s32.f32 %v2322
  %v2387 = vcvt.s32.f32 %v2323
  %v2388 = vcvt.s32.f32 %v2324
  %v2389 = vcvt.s32.f32 %v2325
  %v2390 = vcvt.s32.f32 %v2326
  %v2391 = vcvt.s32.f32 %v2327
  %v2392 = vcvt.s32.f32 %v2328
  %v2393 = vcvt.s32.f32 %v2329
  %v2394 = vcvt.s32.f32 %v2330
  %v2395 = vcvt.s32.f32 %v2331
  %v2396 = vcvt.s32.f32 %v2332
  %v2397 = vcvt.s32.f32 %v2333
  %v2398 = vcvt.s32.f32 %v2334
  %v2399 = vcvt.s32.f32 %v2335
  %v2400 = vcvt.s32.f32 %v2336
  %v2401 = vcvt.s32.f32 %v2337
  %v2402 = vcvt.s32.f32 %v2338
  %v2403 = vcvt.s32.f32 %v2339
  %v2404 = vcvt.s32.f32 %v2340
  %v2405 = vcvt.s32.f32 %v2341
  %v2406 = vcvt.s32.f32 %v2342
  %v2407 = vcvt.s32.f32 %v2343
  %v2408 = vcvt.s32.f32 %v2344
  %v2409 = vcvt.s32.f32 %v2345
  %v2410 = vcvt.s32.f32 %v2346
  %v2411 = vcvt.s32.f32 %v2347
  %v2412 = vcvt.s32.f32 %v2348
  %v2413 = vcvt.s32.f32 %v2349
  %v2414 = vcvt.s32.f32 %v2350
  %v2415 = vcvt.s32.f32 %v2351
  %v2416 = vcvt.s32.f32 %v2352
  %v2417 = vcvt.s32.f32 %v2353
  %v2418 = vcvt.s32.f32 %v2354
  %v2419 = vcvt.s32.f32 %v2355
  %v2420 = vcvt.s32.f32 %v2356
  %v2421 = vcvt.s32.f32 %v2357
  %v2422 = vcvt.s32.f32 %v2358
  %v2423 = vcvt.s32.f32 %v2359
  %v2424 = vcvt.s32.f32 %v2360
  %v2425 = vcvt.s32.f32 %v2361
  %v2426 = vcvt.s32.f32 %v2362
  %v2427 = vcvt.s32.f32 %v2363
  %v2428 = vcvt.s32.f32 %v2364
  %v2429 = vcvt.s32.f32 %v2365
  %v2430 = vcvt.s32.f32 %v2366
  %v2431 = vcvt.s32.f32 %v2367
  %v2433 = vsel %vm944, %v2371, 0
  %v2436 = vsel %vm944, %v2375, 0
  %v2439 = vsel %vm944, %v2379, 0
  %v2442 = vsel %vm944, %v2383, 0
  %v2445 = vsel %vm944, %v2387, 0
  %v2448 = vsel %vm944, %v2391, 0
  %v2451 = vsel %vm944, %v2395, 0
  %v2454 = vsel %vm944, %v2399, 0
  %v2457 = vsel %vm944, %v2403, 0
  %v2460 = vsel %vm944, %v2407, 0
  %v2463 = vsel %vm944, %v2411, 0
  %v2466 = vsel %vm944, %v2415, 0
  %v2469 = vsel %vm944, %v2419, 0
  %v2472 = vsel %vm944, %v2423, 0
  %v2475 = vsel %vm944, %v2427, 0
  %v2478 = vsel %vm944, %v2431, 0
  %2480 = vmatprep.subr.mxu0 0.0
  %2481 = vmatpush1.msra.mxu0 %v661
  %2482 = vmatprep.subr.mxu0 0.0
  %2483 = vmatpush1.msra.mxu0 %v662
  %2484 = vmatprep.subr.mxu0 0.0
  %2485 = vmatpush1.msra.mxu0 %v663
  %2486 = vmatprep.subr.mxu0 0.0
  %2487 = vmatpush1.msra.mxu0 %v664
  %2488 = vmatprep.subr.mxu0 0.0
  %2489 = vmatpush1.msra.mxu0 %v665
  %2490 = vmatprep.subr.mxu0 0.0
  %2491 = vmatpush1.msra.mxu0 %v666
  %2492 = vmatprep.subr.mxu0 0.0
  %2493 = vmatpush1.msra.mxu0 %v667
  %2494 = vmatprep.subr.mxu0 0.0
  %2495 = vmatpush1.msra.mxu0 %v668
  %2496 = vmatprep.subr.mxu0 0.0
  %2497 = vmatpush1.msra.mxu0 %v669
  %2498 = vmatprep.subr.mxu0 0.0
  %2499 = vmatpush1.msra.mxu0 %v670
  %2500 = vmatprep.subr.mxu0 0.0
  %2501 = vmatpush1.msra.mxu0 %v671
  %2502 = vmatprep.subr.mxu0 0.0
  %2503 = vmatpush1.msra.mxu0 %v672
  %2504 = vmatprep.subr.mxu0 0.0
  %2505 = vmatpush1.msra.mxu0 %v673
  %2506 = vmatprep.subr.mxu0 0.0
  %2507 = vmatpush1.msra.mxu0 %v674
  %2508 = vmatprep.subr.mxu0 0.0
  %2509 = vmatpush1.msra.mxu0 %v675
  %2510 = vmatprep.subr.mxu0 0.0
  %2511 = vmatpush1.msra.mxu0 %v676
  %2512 = vmatprep.subr.mxu0 0.0
  %2513 = vmatpush1.msra.mxu0 %v677
  %2514 = vmatprep.subr.mxu0 0.0
  %2515 = vmatpush1.msra.mxu0 %v678
  %2516 = vmatprep.subr.mxu0 0.0
  %2517 = vmatpush1.msra.mxu0 %v679
  %2518 = vmatprep.subr.mxu0 0.0
  %2519 = vmatpush1.msra.mxu0 %v680
  %2520 = vmatprep.subr.mxu0 0.0
  %2521 = vmatpush1.msra.mxu0 %v681
  %2522 = vmatprep.subr.mxu0 0.0
  %2523 = vmatpush1.msra.mxu0 %v682
  %2524 = vmatprep.subr.mxu0 0.0
  %2525 = vmatpush1.msra.mxu0 %v683
  %2526 = vmatprep.subr.mxu0 0.0
  %2527 = vmatpush1.msra.mxu0 %v684
  %2528 = vmatprep.subr.mxu0 0.0
  %2529 = vmatpush1.msra.mxu0 %v685
  %2530 = vmatprep.subr.mxu0 0.0
  %2531 = vmatpush1.msra.mxu0 %v686
  %2532 = vmatprep.subr.mxu0 0.0
  %2533 = vmatpush1.msra.mxu0 %v687
  %2534 = vmatprep.subr.mxu0 0.0
  %2535 = vmatpush1.msra.mxu0 %v688
  %2536 = vmatprep.subr.mxu0 0.0
  %2537 = vmatpush1.msra.mxu0 %v689
  %2538 = vmatprep.subr.mxu0 0.0
  %2539 = vmatpush1.msra.mxu0 %v690
  %2540 = vmatprep.subr.mxu0 0.0
  %2541 = vmatpush1.msra.mxu0 %v691
  %2542 = vmatprep.subr.mxu0 0.0
  %2543 = vmatpush1.msra.mxu0 %v692
  %2544 = vmatprep.mubr.f32.mxu0 %v2369
  %2545 = vmatmul.mubr.f32.gmra.mrb[0].mxu0 %v2368
  %v2546 = vpop.f32.mrb[0].mxu0
  %v2547 = vadd.f32 0.0, %v2546
  %v2548 = vpop.f32.mrb[0].mxu0
  %2549 = vmatprep.mubr.f32.mxu0 %v2373
  %2550 = vmatmul.mubr.f32.gmra.mrb[0].mxu0 %v2372
  %v2551 = vpop.f32.mrb[0].mxu0
  %v2552 = vadd.f32 0.0, %v2551
  %v2553 = vpop.f32.mrb[0].mxu0
  %2554 = vmatprep.mubr.f32.mxu0 %v2377
  %2555 = vmatmul.mubr.f32.gmra.mrb[0].mxu0 %v2376
  %v2556 = vpop.f32.mrb[0].mxu0
  %v2557 = vadd.f32 0.0, %v2556
  %v2558 = vpop.f32.mrb[0].mxu0
  %2559 = vmatprep.mubr.f32.mxu0 %v2381
  %2560 = vmatmul.mubr.f32.gmra.mrb[0].mxu0 %v2380
  %v2561 = vpop.f32.mrb[0].mxu0
  %v2562 = vadd.f32 0.0, %v2561
  %v2563 = vpop.f32.mrb[0].mxu0
  %2564 = vmatprep.mubr.f32.mxu0 %v2385
  %2565 = vmatmul.mubr.f32.gmra.mrb[0].mxu0 %v2384
  %v2566 = vpop.f32.mrb[0].mxu0
  %v2567 = vadd.f32 0.0, %v2566
  %v2568 = vpop.f32.mrb[0].mxu0
  %2569 = vmatprep.mubr.f32.mxu0 %v2389
  %2570 = vmatmul.mubr.f32.gmra.mrb[0].mxu0 %v2388
  %v2571 = vpop.f32.mrb[0].mxu0
  %v2572 = vadd.f32 0.0, %v2571
  %v2573 = vpop.f32.mrb[0].mxu0
  %2574 = vmatprep.mubr.f32.mxu0 %v2393
  %2575 = vmatmul.mubr.f32.gmra.mrb[0].mxu0 %v2392
  %v2576 = vpop.f32.mrb[0].mxu0
  %v2577 = vadd.f32 0.0, %v2576
  %v2578 = vpop.f32.mrb[0].mxu0
  %2579 = vmatprep.mubr.f32.mxu0 %v2397
  %2580 = vmatmul.mubr.f32.gmra.mrb[0].mxu0 %v2396
  %v2581 = vpop.f32.mrb[0].mxu0
  %v2582 = vadd.f32 0.0, %v2581
  %v2583 = vpop.f32.mrb[0].mxu0
  %2584 = vmatprep.mubr.f32.mxu0 %v2401
  %2585 = vmatmul.mubr.f32.gmra.mrb[0].mxu0 %v2400
  %v2586 = vpop.f32.mrb[0].mxu0
  %v2587 = vadd.f32 0.0, %v2586
  %v2588 = vpop.f32.mrb[0].mxu0
  %2589 = vmatprep.mubr.f32.mxu0 %v2405
  %2590 = vmatmul.mubr.f32.gmra.mrb[0].mxu0 %v2404
  %v2591 = vpop.f32.mrb[0].mxu0
  %v2592 = vadd.f32 0.0, %v2591
  %v2593 = vpop.f32.mrb[0].mxu0
  %2594 = vmatprep.mubr.f32.mxu0 %v2409
  %2595 = vmatmul.mubr.f32.gmra.mrb[0].mxu0 %v2408
  %v2596 = vpop.f32.mrb[0].mxu0
  %v2597 = vadd.f32 0.0, %v2596
  %v2598 = vpop.f32.mrb[0].mxu0
  %2599 = vmatprep.mubr.f32.mxu0 %v2413
  %2600 = vmatmul.mubr.f32.gmra.mrb[0].mxu0 %v2412
  %v2601 = vpop.f32.mrb[0].mxu0
  %v2602 = vadd.f32 0.0, %v2601
  %v2603 = vpop.f32.mrb[0].mxu0
  %2604 = vmatprep.mubr.f32.mxu0 %v2417
  %2605 = vmatmul.mubr.f32.gmra.mrb[0].mxu0 %v2416
  %v2606 = vpop.f32.mrb[0].mxu0
  %v2607 = vadd.f32 0.0, %v2606
  %v2608 = vpop.f32.mrb[0].mxu0
  %2609 = vmatprep.mubr.f32.mxu0 %v2421
  %2610 = vmatmul.mubr.f32.gmra.mrb[0].mxu0 %v2420
  %v2611 = vpop.f32.mrb[0].mxu0
  %v2612 = vadd.f32 0.0, %v2611
  %v2613 = vpop.f32.mrb[0].mxu0
  %2614 = vmatprep.mubr.f32.mxu0 %v2425
  %2615 = vmatmul.mubr.f32.gmra.mrb[0].mxu0 %v2424
  %v2616 = vpop.f32.mrb[0].mxu0
  %v2617 = vadd.f32 0.0, %v2616
  %v2618 = vpop.f32.mrb[0].mxu0
  %2619 = vmatprep.mubr.f32.mxu0 %v2429
  %2620 = vmatmul.mubr.f32.gmra.mrb[0].mxu0 %v2428
  %v2621 = vpop.f32.mrb[0].mxu0
  %v2622 = vadd.f32 0.0, %v2621
  %v2623 = vpop.f32.mrb[0].mxu0
  %2624 = vdwg.mxu0
  %2625 = vmatprep.subr.mxu0 0.0
  %2626 = vmatpush1.msra.mxu0 %v693
  %2627 = vmatprep.subr.mxu0 0.0
  %2628 = vmatpush1.msra.mxu0 %v694
  %2629 = vmatprep.subr.mxu0 0.0
  %2630 = vmatpush1.msra.mxu0 %v695
  %2631 = vmatprep.subr.mxu0 0.0
  %2632 = vmatpush1.msra.mxu0 %v696
  %2633 = vmatprep.subr.mxu0 0.0
  %2634 = vmatpush1.msra.mxu0 %v697
  %2635 = vmatprep.subr.mxu0 0.0
  %2636 = vmatpush1.msra.mxu0 %v698
  %2637 = vmatprep.subr.mxu0 0.0
  %2638 = vmatpush1.msra.mxu0 %v699
  %2639 = vmatprep.subr.mxu0 0.0
  %2640 = vmatpush1.msra.mxu0 %v700
  %2641 = vmatprep.subr.mxu0 0.0
  %2642 = vmatpush1.msra.mxu0 %v701
  %2643 = vmatprep.subr.mxu0 0.0
  %2644 = vmatpush1.msra.mxu0 %v702
  %2645 = vmatprep.subr.mxu0 0.0
  %2646 = vmatpush1.msra.mxu0 %v703
  %2647 = vmatprep.subr.mxu0 0.0
  %2648 = vmatpush1.msra.mxu0 %v704
  %2649 = vmatprep.subr.mxu0 0.0
  %2650 = vmatpush1.msra.mxu0 %v705
  %2651 = vmatprep.subr.mxu0 0.0
  %2652 = vmatpush1.msra.mxu0 %v706
  %2653 = vmatprep.subr.mxu0 0.0
  %2654 = vmatpush1.msra.mxu0 %v707
  %2655 = vmatprep.subr.mxu0 0.0
  %2656 = vmatpush1.msra.mxu0 %v708
  %2657 = vmatprep.subr.mxu0 0.0
  %2658 = vmatpush1.msra.mxu0 %v709
  %2659 = vmatprep.subr.mxu0 0.0
  %2660 = vmatpush1.msra.mxu0 %v710
  %2661 = vmatprep.subr.mxu0 0.0
  %2662 = vmatpush1.msra.mxu0 %v711
  %2663 = vmatprep.subr.mxu0 0.0
  %2664 = vmatpush1.msra.mxu0 %v712
  %2665 = vmatprep.subr.mxu0 0.0
  %2666 = vmatpush1.msra.mxu0 %v713
  %2667 = vmatprep.subr.mxu0 0.0
  %2668 = vmatpush1.msra.mxu0 %v714
  %2669 = vmatprep.subr.mxu0 0.0
  %2670 = vmatpush1.msra.mxu0 %v715
  %2671 = vmatprep.subr.mxu0 0.0
  %2672 = vmatpush1.msra.mxu0 %v716
  %2673 = vmatprep.subr.mxu0 0.0
  %2674 = vmatpush1.msra.mxu0 %v717
  %2675 = vmatprep.subr.mxu0 0.0
  %2676 = vmatpush1.msra.mxu0 0.0
  %2677 = vmatprep.subr.mxu0 0.0
  %2678 = vmatpush1.msra.mxu0 0.0
  %2679 = vmatprep.subr.mxu0 0.0
  %2680 = vmatpush1.msra.mxu0 0.0
  %2681 = vmatprep.subr.mxu0 0.0
  %2682 = vmatpush1.msra.mxu0 0.0
  %2683 = vmatprep.subr.mxu0 0.0
  %2684 = vmatpush1.msra.mxu0 0.0
  %2685 = vmatprep.subr.mxu0 0.0
  %2686 = vmatpush1.msra.mxu0 0.0
  %2687 = vmatprep.subr.mxu0 0.0
  %2688 = vmatpush1.msra.mxu0 0.0
  %2689 = vmatprep.mubr.f32.mxu0 %v2433
  %2690 = vmatmul.mubr.f32.gmra.mrb[0].mxu0 %v2370
  %v2691 = vpop.f32.mrb[0].mxu0
  %v2692 = vadd.f32 %v2547, %v2691
  %v2693 = vpop.f32.mrb[0].mxu0
  %2694 = vmatprep.mubr.f32.mxu0 %v2436
  %2695 = vmatmul.mubr.f32.gmra.mrb[0].mxu0 %v2374
  %v2696 = vpop.f32.mrb[0].mxu0
  %v2697 = vadd.f32 %v2552, %v2696
  %v2698 = vpop.f32.mrb[0].mxu0
  %2699 = vmatprep.mubr.f32.mxu0 %v2439
  %2700 = vmatmul.mubr.f32.gmra.mrb[0].mxu0 %v2378
  %v2701 = vpop.f32.mrb[0].mxu0
  %v2702 = vadd.f32 %v2557, %v2701
  %v2703 = vpop.f32.mrb[0].mxu0
  %2704 = vmatprep.mubr.f32.mxu0 %v2442
  %2705 = vmatmul.mubr.f32.gmra.mrb[0].mxu0 %v2382
  %v2706 = vpop.f32.mrb[0].mxu0
  %v2707 = vadd.f32 %v2562, %v2706
  %v2708 = vpop.f32.mrb[0].mxu0
  %2709 = vmatprep.mubr.f32.mxu0 %v2445
  %2710 = vmatmul.mubr.f32.gmra.mrb[0].mxu0 %v2386
  %v2711 = vpop.f32.mrb[0].mxu0
  %v2712 = vadd.f32 %v2567, %v2711
  %v2713 = vpop.f32.mrb[0].mxu0
  %2714 = vmatprep.mubr.f32.mxu0 %v2448
  %2715 = vmatmul.mubr.f32.gmra.mrb[0].mxu0 %v2390
  %v2716 = vpop.f32.mrb[0].mxu0
  %v2717 = vadd.f32 %v2572, %v2716
  %v2718 = vpop.f32.mrb[0].mxu0
  %2719 = vmatprep.mubr.f32.mxu0 %v2451
  %2720 = vmatmul.mubr.f32.gmra.mrb[0].mxu0 %v2394
  %v2721 = vpop.f32.mrb[0].mxu0
  %v2722 = vadd.f32 %v2577, %v2721
  %v2723 = vpop.f32.mrb[0].mxu0
  %2724 = vmatprep.mubr.f32.mxu0 %v2454
  %2725 = vmatmul.mubr.f32.gmra.mrb[0].mxu0 %v2398
  %v2726 = vpop.f32.mrb[0].mxu0
  %v2727 = vadd.f32 %v2582, %v2726
  %v2728 = vpop.f32.mrb[0].mxu0
  %2729 = vmatprep.mubr.f32.mxu0 %v2457
  %2730 = vmatmul.mubr.f32.gmra.mrb[0].mxu0 %v2402
  %v2731 = vpop.f32.mrb[0].mxu0
  %v2732 = vadd.f32 %v2587, %v2731
  %v2733 = vpop.f32.mrb[0].mxu0
  %2734 = vmatprep.mubr.f32.mxu0 %v2460
  %2735 = vmatmul.mubr.f32.gmra.mrb[0].mxu0 %v2406
  %v2736 = vpop.f32.mrb[0].mxu0
  %v2737 = vadd.f32 %v2592, %v2736
  %v2738 = vpop.f32.mrb[0].mxu0
  %2739 = vmatprep.mubr.f32.mxu0 %v2463
  %2740 = vmatmul.mubr.f32.gmra.mrb[0].mxu0 %v2410
  %v2741 = vpop.f32.mrb[0].mxu0
  %v2742 = vadd.f32 %v2597, %v2741
  %v2743 = vpop.f32.mrb[0].mxu0
  %2744 = vmatprep.mubr.f32.mxu0 %v2466
  %2745 = vmatmul.mubr.f32.gmra.mrb[0].mxu0 %v2414
  %v2746 = vpop.f32.mrb[0].mxu0
  %v2747 = vadd.f32 %v2602, %v2746
  %v2748 = vpop.f32.mrb[0].mxu0
  %2749 = vmatprep.mubr.f32.mxu0 %v2469
  %2750 = vmatmul.mubr.f32.gmra.mrb[0].mxu0 %v2418
  %v2751 = vpop.f32.mrb[0].mxu0
  %v2752 = vadd.f32 %v2607, %v2751
  %v2753 = vpop.f32.mrb[0].mxu0
  %2754 = vmatprep.mubr.f32.mxu0 %v2472
  %2755 = vmatmul.mubr.f32.gmra.mrb[0].mxu0 %v2422
  %v2756 = vpop.f32.mrb[0].mxu0
  %v2757 = vadd.f32 %v2612, %v2756
  %v2758 = vpop.f32.mrb[0].mxu0
  %2759 = vmatprep.mubr.f32.mxu0 %v2475
  %2760 = vmatmul.mubr.f32.gmra.mrb[0].mxu0 %v2426
  %v2761 = vpop.f32.mrb[0].mxu0
  %v2762 = vadd.f32 %v2617, %v2761
  %v2763 = vpop.f32.mrb[0].mxu0
  %2764 = vmatprep.mubr.f32.mxu0 %v2478
  %2765 = vmatmul.mubr.f32.gmra.mrb[0].mxu0 %v2430
  %v2766 = vpop.f32.mrb[0].mxu0
  %v2767 = vadd.f32 %v2622, %v2766
  %v2768 = vpop.f32.mrb[0].mxu0
  %2769 = vdwg.mxu0
  %v2770 = vld [vmem:[%s1 + $0x30] sm:$0xff]
  %v2771 = vld [vmem:[%s1 + $0x38] sm:$0xff]
  %v2773 = vsel %vm1835, %v2692, 0
  %v2776 = vsel %vm1835, %v2697, 0
  %v2779 = vsel %vm1835, %v2702, 0
  %v2782 = vsel %vm1835, %v2707, 0
  %v2785 = vsel %vm1835, %v2712, 0
  %v2788 = vsel %vm1835, %v2717, 0
  %v2791 = vsel %vm1835, %v2722, 0
  %v2794 = vsel %vm1835, %v2727, 0
  %v2797 = vsel %vm1835, %v2732, 0
  %v2800 = vsel %vm1835, %v2737, 0
  %v2803 = vsel %vm1835, %v2742, 0
  %v2806 = vsel %vm1835, %v2747, 0
  %v2809 = vsel %vm1835, %v2752, 0
  %v2812 = vsel %vm1835, %v2757, 0
  %v2815 = vsel %vm1835, %v2762, 0
  %v2818 = vsel %vm1835, %v2767, 0
  %2820 = vmatprep.subr.mxu0 0.0
  %2821 = vmatpush1.msra.mxu0 %v2770
  %2822 = vmatprep.subr.mxu0 0.0
  %2823 = vmatpush1.msra.mxu0 %v2771
  %2824 = vmatprep.subr.mxu0 0.0
  %2825 = vmatpush1.msra.mxu0 0.0
  %2826 = vmatprep.subr.mxu0 0.0
  %2827 = vmatpush1.msra.mxu0 0.0
  %2828 = vmatprep.subr.mxu0 0.0
  %2829 = vmatpush1.msra.mxu0 0.0
  %2830 = vmatprep.subr.mxu0 0.0
  %2831 = vmatpush1.msra.mxu0 0.0
  %2832 = vmatprep.subr.mxu0 0.0
  %2833 = vmatpush1.msra.mxu0 0.0
  %2834 = vmatprep.subr.mxu0 0.0
  %2835 = vmatpush1.msra.mxu0 0.0
  %2836 = vmatprep.subr.mxu0 0.0
  %2837 = vmatpush1.msra.mxu0 0.0
  %2838 = vmatprep.subr.mxu0 0.0
  %2839 = vmatpush1.msra.mxu0 0.0
  %2840 = vmatprep.subr.mxu0 0.0
  %2841 = vmatpush1.msra.mxu0 0.0
  %2842 = vmatprep.subr.mxu0 0.0
  %2843 = vmatpush1.msra.mxu0 0.0
  %2844 = vmatprep.subr.mxu0 0.0
  %2845 = vmatpush1.msra.mxu0 0.0
  %2846 = vmatprep.subr.mxu0 0.0
  %2847 = vmatpush1.msra.mxu0 0.0
  %2848 = vmatprep.subr.mxu0 0.0
  %2849 = vmatpush1.msra.mxu0 0.0
  %2850 = vmatprep.subr.mxu0 0.0
  %2851 = vmatpush1.msra.mxu0 0.0
  %2852 = vmatprep.subr.mxu0 0.0
  %2853 = vmatpush1.msra.mxu0 0.0
  %2854 = vmatprep.subr.mxu0 0.0
  %2855 = vmatpush1.msra.mxu0 0.0
  %2856 = vmatprep.subr.mxu0 0.0
  %2857 = vmatpush1.msra.mxu0 0.0
  %2858 = vmatprep.subr.mxu0 0.0
  %2859 = vmatpush1.msra.mxu0 0.0
  %2860 = vmatprep.subr.mxu0 0.0
  %2861 = vmatpush1.msra.mxu0 0.0
  %2862 = vmatprep.subr.mxu0 0.0
  %2863 = vmatpush1.msra.mxu0 0.0
  %2864 = vmatprep.subr.mxu0 0.0
  %2865 = vmatpush1.msra.mxu0 0.0
  %2866 = vmatprep.subr.mxu0 0.0
  %2867 = vmatpush1.msra.mxu0 0.0
  %2868 = vmatprep.subr.mxu0 0.0
  %2869 = vmatpush1.msra.mxu0 0.0
  %2870 = vmatprep.subr.mxu0 0.0
  %2871 = vmatpush1.msra.mxu0 0.0
  %2872 = vmatprep.subr.mxu0 0.0
  %2873 = vmatpush1.msra.mxu0 0.0
  %2874 = vmatprep.subr.mxu0 0.0
  %2875 = vmatpush1.msra.mxu0 0.0
  %2876 = vmatprep.subr.mxu0 0.0
  %2877 = vmatpush1.msra.mxu0 0.0
  %2878 = vmatprep.subr.mxu0 0.0
  %2879 = vmatpush1.msra.mxu0 0.0
  %2880 = vmatprep.subr.mxu0 0.0
  %2881 = vmatpush1.msra.mxu0 0.0
  %2882 = vmatprep.subr.mxu0 0.0
  %2883 = vmatpush1.msra.mxu0 0.0
  %2884 = vmatprep.mubr.f32.mxu0 0.0
  %2885 = vmatmul.mubr.f32.gmra.mrb[0].mxu0 %v2773
  %v2886 = vpop.f32.mrb[0].mxu0
  %v2887 = vadd.f32 0.0, %v2886
  %v2888 = vpop.f32.mrb[0].mxu0
  %2889 = vmatprep.mubr.f32.mxu0 0.0
  %2890 = vmatmul.mubr.f32.gmra.mrb[0].mxu0 %v2776
  %v2891 = vpop.f32.mrb[0].mxu0
  %v2892 = vadd.f32 0.0, %v2891
  %v2893 = vpop.f32.mrb[0].mxu0
  %2894 = vmatprep.mubr.f32.mxu0 0.0
  %2895 = vmatmul.mubr.f32.gmra.mrb[0].mxu0 %v2779
  %v2896 = vpop.f32.mrb[0].mxu0
  %v2897 = vadd.f32 0.0, %v2896
  %v2898 = vpop.f32.mrb[0].mxu0
  %2899 = vmatprep.mubr.f32.mxu0 0.0
  %2900 = vmatmul.mubr.f32.gmra.mrb[0].mxu0 %v2782
  %v2901 = vpop.f32.mrb[0].mxu0
  %v2902 = vadd.f32 0.0, %v2901
  %v2903 = vpop.f32.mrb[0].mxu0
  %2904 = vmatprep.mubr.f32.mxu0 0.0
  %2905 = vmatmul.mubr.f32.gmra.mrb[0].mxu0 %v2785
  %v2906 = vpop.f32.mrb[0].mxu0
  %v2907 = vadd.f32 0.0, %v2906
  %v2908 = vpop.f32.mrb[0].mxu0
  %2909 = vmatprep.mubr.f32.mxu0 0.0
  %2910 = vmatmul.mubr.f32.gmra.mrb[0].mxu0 %v2788
  %v2911 = vpop.f32.mrb[0].mxu0
  %v2912 = vadd.f32 0.0, %v2911
  %v2913 = vpop.f32.mrb[0].mxu0
  %2914 = vmatprep.mubr.f32.mxu0 0.0
  %2915 = vmatmul.mubr.f32.gmra.mrb[0].mxu0 %v2791
  %v2916 = vpop.f32.mrb[0].mxu0
  %v2917 = vadd.f32 0.0, %v2916
  %v2918 = vpop.f32.mrb[0].mxu0
  %2919 = vmatprep.mubr.f32.mxu0 0.0
  %2920 = vmatmul.mubr.f32.gmra.mrb[0].mxu0 %v2794
  %v2921 = vpop.f32.mrb[0].mxu0
  %v2922 = vadd.f32 0.0, %v2921
  %v2923 = vpop.f32.mrb[0].mxu0
  %2924 = vmatprep.mubr.f32.mxu0 0.0
  %2925 = vmatmul.mubr.f32.gmra.mrb[0].mxu0 %v2797
  %v2926 = vpop.f32.mrb[0].mxu0
  %v2927 = vadd.f32 0.0, %v2926
  %v2928 = vpop.f32.mrb[0].mxu0
  %2929 = vmatprep.mubr.f32.mxu0 0.0
  %2930 = vmatmul.mubr.f32.gmra.mrb[0].mxu0 %v2800
  %v2931 = vpop.f32.mrb[0].mxu0
  %v2932 = vadd.f32 0.0, %v2931
  %v2933 = vpop.f32.mrb[0].mxu0
  %2934 = vmatprep.mubr.f32.mxu0 0.0
  %2935 = vmatmul.mubr.f32.gmra.mrb[0].mxu0 %v2803
  %v2936 = vpop.f32.mrb[0].mxu0
  %v2937 = vadd.f32 0.0, %v2936
  %v2938 = vpop.f32.mrb[0].mxu0
  %2939 = vmatprep.mubr.f32.mxu0 0.0
  %2940 = vmatmul.mubr.f32.gmra.mrb[0].mxu0 %v2806
  %v2941 = vpop.f32.mrb[0].mxu0
  %v2942 = vadd.f32 0.0, %v2941
  %v2943 = vpop.f32.mrb[0].mxu0
  %2944 = vmatprep.mubr.f32.mxu0 0.0
  %2945 = vmatmul.mubr.f32.gmra.mrb[0].mxu0 %v2809
  %v2946 = vpop.f32.mrb[0].mxu0
  %v2947 = vadd.f32 0.0, %v2946
  %v2948 = vpop.f32.mrb[0].mxu0
  %2949 = vmatprep.mubr.f32.mxu0 0.0
  %2950 = vmatmul.mubr.f32.gmra.mrb[0].mxu0 %v2812
  %v2951 = vpop.f32.mrb[0].mxu0
  %v2952 = vadd.f32 0.0, %v2951
  %v2953 = vpop.f32.mrb[0].mxu0
  %2954 = vmatprep.mubr.f32.mxu0 0.0
  %2955 = vmatmul.mubr.f32.gmra.mrb[0].mxu0 %v2815
  %v2956 = vpop.f32.mrb[0].mxu0
  %v2957 = vadd.f32 0.0, %v2956
  %v2958 = vpop.f32.mrb[0].mxu0
  %2959 = vmatprep.mubr.f32.mxu0 0.0
  %2960 = vmatmul.mubr.f32.gmra.mrb[0].mxu0 %v2818
  %v2961 = vpop.f32.mrb[0].mxu0
  %v2962 = vadd.f32 0.0, %v2961
  %v2963 = vpop.f32.mrb[0].mxu0
  %2964 = vdwg.mxu0
  %v2965 = vadd.f32 %v2144, %v2887
  %v2966 = vadd.f32 %v2149, %v2892
  %v2967 = vadd.f32 %v2154, %v2897
  %v2968 = vadd.f32 %v2159, %v2902
  %v2969 = vadd.f32 %v2164, %v2907
  %v2970 = vadd.f32 %v2169, %v2912
  %v2971 = vadd.f32 %v2174, %v2917
  %v2972 = vadd.f32 %v2179, %v2922
  %v2973 = vadd.f32 %v2184, %v2927
  %v2974 = vadd.f32 %v2189, %v2932
  %v2975 = vadd.f32 %v2194, %v2937
  %v2976 = vadd.f32 %v2199, %v2942
  %v2977 = vadd.f32 %v2204, %v2947
  %v2978 = vadd.f32 %v2209, %v2952
  %v2979 = vadd.f32 %v2214, %v2957
  %v2980 = vadd.f32 %v2219, %v2962
  %s2981 = scalar_lea.vmem %s2, 3
  %v2982 = vld [vmem:[%s2981] ss:$4 sm:$0xf]
  %v2983 = vlaneseq
  %v2984 = vshrl.u32 %v2983, 7
  %v2985 = vsub.s32 0, %v2984
  %v2986 = vrot.slane %v2982, %v2985
  %v2987 = vlaneseq
  %v2988 = vshrl.u32 %v2987, 7
  %v2989 = vsub.s32 1, %v2988
  %v2990 = vrot.slane %v2982, %v2989
  %v2991 = vlaneseq
  %v2992 = vshrl.u32 %v2991, 7
  %v2993 = vsub.s32 2, %v2992
  %v2994 = vrot.slane %v2982, %v2993
  %v2995 = vlaneseq
  %v2996 = vshrl.u32 %v2995, 7
  %v2997 = vsub.s32 3, %v2996
  %v2998 = vrot.slane %v2982, %v2997
  %vm2999 = vcmp.eq.s32.totalorder %v719, %v2986
  %vm3000 = vcmp.eq.s32.totalorder %v719, %v2990
  %vm3001 = vcmp.eq.s32.totalorder %v719, %v2994
  %vm3002 = vcmp.eq.s32.totalorder %v719, %v2998
  %vm3003 = vcmp.eq.s32.totalorder %v720, %v2986
  %vm3004 = vcmp.eq.s32.totalorder %v720, %v2990
  %vm3005 = vcmp.eq.s32.totalorder %v720, %v2994
  %vm3006 = vcmp.eq.s32.totalorder %v720, %v2998
  %vm3007 = vcmp.eq.s32.totalorder %v721, %v2986
  %vm3008 = vcmp.eq.s32.totalorder %v721, %v2990
  %vm3009 = vcmp.eq.s32.totalorder %v721, %v2994
  %vm3010 = vcmp.eq.s32.totalorder %v721, %v2998
  %vm3011 = vcmp.eq.s32.totalorder %v722, %v2986
  %vm3012 = vcmp.eq.s32.totalorder %v722, %v2990
  %vm3013 = vcmp.eq.s32.totalorder %v722, %v2994
  %vm3014 = vcmp.eq.s32.totalorder %v722, %v2998
  %vm3015 = vcmp.eq.s32.totalorder %v723, %v2986
  %vm3016 = vcmp.eq.s32.totalorder %v723, %v2990
  %vm3017 = vcmp.eq.s32.totalorder %v723, %v2994
  %vm3018 = vcmp.eq.s32.totalorder %v723, %v2998
  %vm3019 = vcmp.eq.s32.totalorder %v724, %v2986
  %vm3020 = vcmp.eq.s32.totalorder %v724, %v2990
  %vm3021 = vcmp.eq.s32.totalorder %v724, %v2994
  %vm3022 = vcmp.eq.s32.totalorder %v724, %v2998
  %vm3023 = vcmp.eq.s32.totalorder %v725, %v2986
  %vm3024 = vcmp.eq.s32.totalorder %v725, %v2990
  %vm3025 = vcmp.eq.s32.totalorder %v725, %v2994
  %vm3026 = vcmp.eq.s32.totalorder %v725, %v2998
  %vm3027 = vcmp.eq.s32.totalorder %v726, %v2986
  %vm3028 = vcmp.eq.s32.totalorder %v726, %v2990
  %vm3029 = vcmp.eq.s32.totalorder %v726, %v2994
  %vm3030 = vcmp.eq.s32.totalorder %v726, %v2998
  %vm3031 = vcmp.eq.s32.totalorder %v727, %v2986
  %vm3032 = vcmp.eq.s32.totalorder %v727, %v2990
  %vm3033 = vcmp.eq.s32.totalorder %v727, %v2994
  %vm3034 = vcmp.eq.s32.totalorder %v727, %v2998
  %vm3035 = vcmp.eq.s32.totalorder %v728, %v2986
  %vm3036 = vcmp.eq.s32.totalorder %v728, %v2990
  %vm3037 = vcmp.eq.s32.totalorder %v728, %v2994
  %vm3038 = vcmp.eq.s32.totalorder %v728, %v2998
  %vm3039 = vcmp.eq.s32.totalorder %v729, %v2986
  %vm3040 = vcmp.eq.s32.totalorder %v729, %v2990
  %vm3041 = vcmp.eq.s32.totalorder %v729, %v2994
  %vm3042 = vcmp.eq.s32.totalorder %v729, %v2998
  %vm3043 = vcmp.eq.s32.totalorder %v730, %v2986
  %vm3044 = vcmp.eq.s32.totalorder %v730, %v2990
  %vm3045 = vcmp.eq.s32.totalorder %v730, %v2994
  %vm3046 = vcmp.eq.s32.totalorder %v730, %v2998
  %vm3047 = vcmp.eq.s32.totalorder %v731, %v2986
  %vm3048 = vcmp.eq.s32.totalorder %v731, %v2990
  %vm3049 = vcmp.eq.s32.totalorder %v731, %v2994
  %vm3050 = vcmp.eq.s32.totalorder %v731, %v2998
  %vm3051 = vcmp.eq.s32.totalorder %v732, %v2986
  %vm3052 = vcmp.eq.s32.totalorder %v732, %v2990
  %vm3053 = vcmp.eq.s32.totalorder %v732, %v2994
  %vm3054 = vcmp.eq.s32.totalorder %v732, %v2998
  %vm3055 = vcmp.eq.s32.totalorder %v733, %v2986
  %vm3056 = vcmp.eq.s32.totalorder %v733, %v2990
  %vm3057 = vcmp.eq.s32.totalorder %v733, %v2994
  %vm3058 = vcmp.eq.s32.totalorder %v733, %v2998
  %vm3059 = vcmp.eq.s32.totalorder %v734, %v2986
  %vm3060 = vcmp.eq.s32.totalorder %v734, %v2990
  %vm3061 = vcmp.eq.s32.totalorder %v734, %v2994
  %vm3062 = vcmp.eq.s32.totalorder %v734, %v2998
  %v3063 = vsel %vm2999, 1, 0
  %v3064 = vsel %vm3000, 1, 0
  %v3065 = vsel %vm3001, 1, 0
  %v3066 = vsel %vm3002, 1, 0
  %v3067 = vsel %vm3003, 1, 0
  %v3068 = vsel %vm3004, 1, 0
  %v3069 = vsel %vm3005, 1, 0
  %v3070 = vsel %vm3006, 1, 0
  %v3071 = vsel %vm3007, 1, 0
  %v3072 = vsel %vm3008, 1, 0
  %v3073 = vsel %vm3009, 1, 0
  %v3074 = vsel %vm3010, 1, 0
  %v3075 = vsel %vm3011, 1, 0
  %v3076 = vsel %vm3012, 1, 0
  %v3077 = vsel %vm3013, 1, 0
  %v3078 = vsel %vm3014, 1, 0
  %v3079 = vsel %vm3015, 1, 0
  %v3080 = vsel %vm3016, 1, 0
  %v3081 = vsel %vm3017, 1, 0
  %v3082 = vsel %vm3018, 1, 0
  %v3083 = vsel %vm3019, 1, 0
  %v3084 = vsel %vm3020, 1, 0
  %v3085 = vsel %vm3021, 1, 0
  %v3086 = vsel %vm3022, 1, 0
  %v3087 = vsel %vm3023, 1, 0
  %v3088 = vsel %vm3024, 1, 0
  %v3089 = vsel %vm3025, 1, 0
  %v3090 = vsel %vm3026, 1, 0
  %v3091 = vsel %vm3027, 1, 0
  %v3092 = vsel %vm3028, 1, 0
  %v3093 = vsel %vm3029, 1, 0
  %v3094 = vsel %vm3030, 1, 0
  %v3095 = vsel %vm3031, 1, 0
  %v3096 = vsel %vm3032, 1, 0
  %v3097 = vsel %vm3033, 1, 0
  %v3098 = vsel %vm3034, 1, 0
  %v3099 = vsel %vm3035, 1, 0
  %v3100 = vsel %vm3036, 1, 0
  %v3101 = vsel %vm3037, 1, 0
  %v3102 = vsel %vm3038, 1, 0
  %v3103 = vsel %vm3039, 1, 0
  %v3104 = vsel %vm3040, 1, 0
  %v3105 = vsel %vm3041, 1, 0
  %v3106 = vsel %vm3042, 1, 0
  %v3107 = vsel %vm3043, 1, 0
  %v3108 = vsel %vm3044, 1, 0
  %v3109 = vsel %vm3045, 1, 0
  %v3110 = vsel %vm3046, 1, 0
  %v3111 = vsel %vm3047, 1, 0
  %v3112 = vsel %vm3048, 1, 0
  %v3113 = vsel %vm3049, 1, 0
  %v3114 = vsel %vm3050, 1, 0
  %v3115 = vsel %vm3051, 1, 0
  %v3116 = vsel %vm3052, 1, 0
  %v3117 = vsel %vm3053, 1, 0
  %v3118 = vsel %vm3054, 1, 0
  %v3119 = vsel %vm3055, 1, 0
  %v3120 = vsel %vm3056, 1, 0
  %v3121 = vsel %vm3057, 1, 0
  %v3122 = vsel %vm3058, 1, 0
  %v3123 = vsel %vm3059, 1, 0
  %v3124 = vsel %vm3060, 1, 0
  %v3125 = vsel %vm3061, 1, 0
  %v3126 = vsel %vm3062, 1, 0
  %v3127 = vcvt.s32.f32 %v3063
  %v3128 = vcvt.s32.f32 %v3064
  %v3129 = vcvt.s32.f32 %v3065
  %v3130 = vcvt.s32.f32 %v3066
  %v3131 = vcvt.s32.f32 %v3067
  %v3132 = vcvt.s32.f32 %v3068
  %v3133 = vcvt.s32.f32 %v3069
  %v3134 = vcvt.s32.f32 %v3070
  %v3135 = vcvt.s32.f32 %v3071
  %v3136 = vcvt.s32.f32 %v3072
  %v3137 = vcvt.s32.f32 %v3073
  %v3138 = vcvt.s32.f32 %v3074
  %v3139 = vcvt.s32.f32 %v3075
  %v3140 = vcvt.s32.f32 %v3076
  %v3141 = vcvt.s32.f32 %v3077
  %v3142 = vcvt.s32.f32 %v3078
  %v3143 = vcvt.s32.f32 %v3079
  %v3144 = vcvt.s32.f32 %v3080
  %v3145 = vcvt.s32.f32 %v3081
  %v3146 = vcvt.s32.f32 %v3082
  %v3147 = vcvt.s32.f32 %v3083
  %v3148 = vcvt.s32.f32 %v3084
  %v3149 = vcvt.s32.f32 %v3085
  %v3150 = vcvt.s32.f32 %v3086
  %v3151 = vcvt.s32.f32 %v3087
  %v3152 = vcvt.s32.f32 %v3088
  %v3153 = vcvt.s32.f32 %v3089
  %v3154 = vcvt.s32.f32 %v3090
  %v3155 = vcvt.s32.f32 %v3091
  %v3156 = vcvt.s32.f32 %v3092
  %v3157 = vcvt.s32.f32 %v3093
  %v3158 = vcvt.s32.f32 %v3094
  %v3159 = vcvt.s32.f32 %v3095
  %v3160 = vcvt.s32.f32 %v3096
  %v3161 = vcvt.s32.f32 %v3097
  %v3162 = vcvt.s32.f32 %v3098
  %v3163 = vcvt.s32.f32 %v3099
  %v3164 = vcvt.s32.f32 %v3100
  %v3165 = vcvt.s32.f32 %v3101
  %v3166 = vcvt.s32.f32 %v3102
  %v3167 = vcvt.s32.f32 %v3103
  %v3168 = vcvt.s32.f32 %v3104
  %v3169 = vcvt.s32.f32 %v3105
  %v3170 = vcvt.s32.f32 %v3106
  %v3171 = vcvt.s32.f32 %v3107
  %v3172 = vcvt.s32.f32 %v3108
  %v3173 = vcvt.s32.f32 %v3109
  %v3174 = vcvt.s32.f32 %v3110
  %v3175 = vcvt.s32.f32 %v3111
  %v3176 = vcvt.s32.f32 %v3112
  %v3177 = vcvt.s32.f32 %v3113
  %v3178 = vcvt.s32.f32 %v3114
  %v3179 = vcvt.s32.f32 %v3115
  %v3180 = vcvt.s32.f32 %v3116
  %v3181 = vcvt.s32.f32 %v3117
  %v3182 = vcvt.s32.f32 %v3118
  %v3183 = vcvt.s32.f32 %v3119
  %v3184 = vcvt.s32.f32 %v3120
  %v3185 = vcvt.s32.f32 %v3121
  %v3186 = vcvt.s32.f32 %v3122
  %v3187 = vcvt.s32.f32 %v3123
  %v3188 = vcvt.s32.f32 %v3124
  %v3189 = vcvt.s32.f32 %v3125
  %v3190 = vcvt.s32.f32 %v3126
  %v3192 = vsel %vm944, %v3130, 0
  %v3195 = vsel %vm944, %v3134, 0
  %v3198 = vsel %vm944, %v3138, 0
  %v3201 = vsel %vm944, %v3142, 0
  %v3204 = vsel %vm944, %v3146, 0
  %v3207 = vsel %vm944, %v3150, 0
  %v3210 = vsel %vm944, %v3154, 0
  %v3213 = vsel %vm944, %v3158, 0
  %v3216 = vsel %vm944, %v3162, 0
  %v3219 = vsel %vm944, %v3166, 0
  %v3222 = vsel %vm944, %v3170, 0
  %v3225 = vsel %vm944, %v3174, 0
  %v3228 = vsel %vm944, %v3178, 0
  %v3231 = vsel %vm944, %v3182, 0
  %v3234 = vsel %vm944, %v3186, 0
  %v3237 = vsel %vm944, %v3190, 0
  %3239 = vmatprep.subr.mxu0 0.0
  %3240 = vmatpush1.msra.mxu0 %v661
  %3241 = vmatprep.subr.mxu0 0.0
  %3242 = vmatpush1.msra.mxu0 %v662
  %3243 = vmatprep.subr.mxu0 0.0
  %3244 = vmatpush1.msra.mxu0 %v663
  %3245 = vmatprep.subr.mxu0 0.0
  %3246 = vmatpush1.msra.mxu0 %v664
  %3247 = vmatprep.subr.mxu0 0.0
  %3248 = vmatpush1.msra.mxu0 %v665
  %3249 = vmatprep.subr.mxu0 0.0
  %3250 = vmatpush1.msra.mxu0 %v666
  %3251 = vmatprep.subr.mxu0 0.0
  %3252 = vmatpush1.msra.mxu0 %v667
  %3253 = vmatprep.subr.mxu0 0.0
  %3254 = vmatpush1.msra.mxu0 %v668
  %3255 = vmatprep.subr.mxu0 0.0
  %3256 = vmatpush1.msra.mxu0 %v669
  %3257 = vmatprep.subr.mxu0 0.0
  %3258 = vmatpush1.msra.mxu0 %v670
  %3259 = vmatprep.subr.mxu0 0.0
  %3260 = vmatpush1.msra.mxu0 %v671
  %3261 = vmatprep.subr.mxu0 0.0
  %3262 = vmatpush1.msra.mxu0 %v672
  %3263 = vmatprep.subr.mxu0 0.0
  %3264 = vmatpush1.msra.mxu0 %v673
  %3265 = vmatprep.subr.mxu0 0.0
  %3266 = vmatpush1.msra.mxu0 %v674
  %3267 = vmatprep.subr.mxu0 0.0
  %3268 = vmatpush1.msra.mxu0 %v675
  %3269 = vmatprep.subr.mxu0 0.0
  %3270 = vmatpush1.msra.mxu0 %v676
  %3271 = vmatprep.subr.mxu0 0.0
  %3272 = vmatpush1.msra.mxu0 %v677
  %3273 = vmatprep.subr.mxu0 0.0
  %3274 = vmatpush1.msra.mxu0 %v678
  %3275 = vmatprep.subr.mxu0 0.0
  %3276 = vmatpush1.msra.mxu0 %v679
  %3277 = vmatprep.subr.mxu0 0.0
  %3278 = vmatpush1.msra.mxu0 %v680
  %3279 = vmatprep.subr.mxu0 0.0
  %3280 = vmatpush1.msra.mxu0 %v681
  %3281 = vmatprep.subr.mxu0 0.0
  %3282 = vmatpush1.msra.mxu0 %v682
  %3283 = vmatprep.subr.mxu0 0.0
  %3284 = vmatpush1.msra.mxu0 %v683
  %3285 = vmatprep.subr.mxu0 0.0
  %3286 = vmatpush1.msra.mxu0 %v684
  %3287 = vmatprep.subr.mxu0 0.0
  %3288 = vmatpush1.msra.mxu0 %v685
  %3289 = vmatprep.subr.mxu0 0.0
  %3290 = vmatpush1.msra.mxu0 %v686
  %3291 = vmatprep.subr.mxu0 0.0
  %3292 = vmatpush1.msra.mxu0 %v687
  %3293 = vmatprep.subr.mxu0 0.0
  %3294 = vmatpush1.msra.mxu0 %v688
  %3295 = vmatprep.subr.mxu0 0.0
  %3296 = vmatpush1.msra.mxu0 %v689
  %3297 = vmatprep.subr.mxu0 0.0
  %3298 = vmatpush1.msra.mxu0 %v690
  %3299 = vmatprep.subr.mxu0 0.0
  %3300 = vmatpush1.msra.mxu0 %v691
  %3301 = vmatprep.subr.mxu0 0.0
  %3302 = vmatpush1.msra.mxu0 %v692
  %3303 = vmatprep.mubr.f32.mxu0 %v3128
  %3304 = vmatmul.mubr.f32.gmra.mrb[0].mxu0 %v3127
  %v3305 = vpop.f32.mrb[0].mxu0
  %v3306 = vadd.f32 0.0, %v3305
  %v3307 = vpop.f32.mrb[0].mxu0
  %3308 = vmatprep.mubr.f32.mxu0 %v3132
  %3309 = vmatmul.mubr.f32.gmra.mrb[0].mxu0 %v3131
  %v3310 = vpop.f32.mrb[0].mxu0
  %v3311 = vadd.f32 0.0, %v3310
  %v3312 = vpop.f32.mrb[0].mxu0
  %3313 = vmatprep.mubr.f32.mxu0 %v3136
  %3314 = vmatmul.mubr.f32.gmra.mrb[0].mxu0 %v3135
  %v3315 = vpop.f32.mrb[0].mxu0
  %v3316 = vadd.f32 0.0, %v3315
  %v3317 = vpop.f32.mrb[0].mxu0
  %3318 = vmatprep.mubr.f32.mxu0 %v3140
  %3319 = vmatmul.mubr.f32.gmra.mrb[0].mxu0 %v3139
  %v3320 = vpop.f32.mrb[0].mxu0
  %v3321 = vadd.f32 0.0, %v3320
  %v3322 = vpop.f32.mrb[0].mxu0
  %3323 = vmatprep.mubr.f32.mxu0 %v3144
  %3324 = vmatmul.mubr.f32.gmra.mrb[0].mxu0 %v3143
  %v3325 = vpop.f32.mrb[0].mxu0
  %v3326 = vadd.f32 0.0, %v3325
  %v3327 = vpop.f32.mrb[0].mxu0
  %3328 = vmatprep.mubr.f32.mxu0 %v3148
  %3329 = vmatmul.mubr.f32.gmra.mrb[0].mxu0 %v3147
  %v3330 = vpop.f32.mrb[0].mxu0
  %v3331 = vadd.f32 0.0, %v3330
  %v3332 = vpop.f32.mrb[0].mxu0
  %3333 = vmatprep.mubr.f32.mxu0 %v3152
  %3334 = vmatmul.mubr.f32.gmra.mrb[0].mxu0 %v3151
  %v3335 = vpop.f32.mrb[0].mxu0
  %v3336 = vadd.f32 0.0, %v3335
  %v3337 = vpop.f32.mrb[0].mxu0
  %3338 = vmatprep.mubr.f32.mxu0 %v3156
  %3339 = vmatmul.mubr.f32.gmra.mrb[0].mxu0 %v3155
  %v3340 = vpop.f32.mrb[0].mxu0
  %v3341 = vadd.f32 0.0, %v3340
  %v3342 = vpop.f32.mrb[0].mxu0
  %3343 = vmatprep.mubr.f32.mxu0 %v3160
  %3344 = vmatmul.mubr.f32.gmra.mrb[0].mxu0 %v3159
  %v3345 = vpop.f32.mrb[0].mxu0
  %v3346 = vadd.f32 0.0, %v3345
  %v3347 = vpop.f32.mrb[0].mxu0
  %3348 = vmatprep.mubr.f32.mxu0 %v3164
  %3349 = vmatmul.mubr.f32.gmra.mrb[0].mxu0 %v3163
  %v3350 = vpop.f32.mrb[0].mxu0
  %v3351 = vadd.f32 0.0, %v3350
  %v3352 = vpop.f32.mrb[0].mxu0
  %3353 = vmatprep.mubr.f32.mxu0 %v3168
  %3354 = vmatmul.mubr.f32.gmra.mrb[0].mxu0 %v3167
  %v3355 = vpop.f32.mrb[0].mxu0
  %v3356 = vadd.f32 0.0, %v3355
  %v3357 = vpop.f32.mrb[0].mxu0
  %3358 = vmatprep.mubr.f32.mxu0 %v3172
  %3359 = vmatmul.mubr.f32.gmra.mrb[0].mxu0 %v3171
  %v3360 = vpop.f32.mrb[0].mxu0
  %v3361 = vadd.f32 0.0, %v3360
  %v3362 = vpop.f32.mrb[0].mxu0
  %3363 = vmatprep.mubr.f32.mxu0 %v3176
  %3364 = vmatmul.mubr.f32.gmra.mrb[0].mxu0 %v3175
  %v3365 = vpop.f32.mrb[0].mxu0
  %v3366 = vadd.f32 0.0, %v3365
  %v3367 = vpop.f32.mrb[0].mxu0
  %3368 = vmatprep.mubr.f32.mxu0 %v3180
  %3369 = vmatmul.mubr.f32.gmra.mrb[0].mxu0 %v3179
  %v3370 = vpop.f32.mrb[0].mxu0
  %v3371 = vadd.f32 0.0, %v3370
  %v3372 = vpop.f32.mrb[0].mxu0
  %3373 = vmatprep.mubr.f32.mxu0 %v3184
  %3374 = vmatmul.mubr.f32.gmra.mrb[0].mxu0 %v3183
  %v3375 = vpop.f32.mrb[0].mxu0
  %v3376 = vadd.f32 0.0, %v3375
  %v3377 = vpop.f32.mrb[0].mxu0
  %3378 = vmatprep.mubr.f32.mxu0 %v3188
  %3379 = vmatmul.mubr.f32.gmra.mrb[0].mxu0 %v3187
  %v3380 = vpop.f32.mrb[0].mxu0
  %v3381 = vadd.f32 0.0, %v3380
  %v3382 = vpop.f32.mrb[0].mxu0
  %3383 = vdwg.mxu0
  %3384 = vmatprep.subr.mxu0 0.0
  %3385 = vmatpush1.msra.mxu0 %v693
  %3386 = vmatprep.subr.mxu0 0.0
  %3387 = vmatpush1.msra.mxu0 %v694
  %3388 = vmatprep.subr.mxu0 0.0
  %3389 = vmatpush1.msra.mxu0 %v695
  %3390 = vmatprep.subr.mxu0 0.0
  %3391 = vmatpush1.msra.mxu0 %v696
  %3392 = vmatprep.subr.mxu0 0.0
  %3393 = vmatpush1.msra.mxu0 %v697
  %3394 = vmatprep.subr.mxu0 0.0
  %3395 = vmatpush1.msra.mxu0 %v698
  %3396 = vmatprep.subr.mxu0 0.0
  %3397 = vmatpush1.msra.mxu0 %v699
  %3398 = vmatprep.subr.mxu0 0.0
  %3399 = vmatpush1.msra.mxu0 %v700
  %3400 = vmatprep.subr.mxu0 0.0
  %3401 = vmatpush1.msra.mxu0 %v701
  %3402 = vmatprep.subr.mxu0 0.0
  %3403 = vmatpush1.msra.mxu0 %v702
  %3404 = vmatprep.subr.mxu0 0.0
  %3405 = vmatpush1.msra.mxu0 %v703
  %3406 = vmatprep.subr.mxu0 0.0
  %3407 = vmatpush1.msra.mxu0 %v704
  %3408 = vmatprep.subr.mxu0 0.0
  %3409 = vmatpush1.msra.mxu0 %v705
  %3410 = vmatprep.subr.mxu0 0.0
  %3411 = vmatpush1.msra.mxu0 %v706
  %3412 = vmatprep.subr.mxu0 0.0
  %3413 = vmatpush1.msra.mxu0 %v707
  %3414 = vmatprep.subr.mxu0 0.0
  %3415 = vmatpush1.msra.mxu0 %v708
  %3416 = vmatprep.subr.mxu0 0.0
  %3417 = vmatpush1.msra.mxu0 %v709
  %3418 = vmatprep.subr.mxu0 0.0
  %3419 = vmatpush1.msra.mxu0 %v710
  %3420 = vmatprep.subr.mxu0 0.0
  %3421 = vmatpush1.msra.mxu0 %v711
  %3422 = vmatprep.subr.mxu0 0.0
  %3423 = vmatpush1.msra.mxu0 %v712
  %3424 = vmatprep.subr.mxu0 0.0
  %3425 = vmatpush1.msra.mxu0 %v713
  %3426 = vmatprep.subr.mxu0 0.0
  %3427 = vmatpush1.msra.mxu0 %v714
  %3428 = vmatprep.subr.mxu0 0.0
  %3429 = vmatpush1.msra.mxu0 %v715
  %3430 = vmatprep.subr.mxu0 0.0
  %3431 = vmatpush1.msra.mxu0 %v716
  %3432 = vmatprep.subr.mxu0 0.0
  %3433 = vmatpush1.msra.mxu0 %v717
  %3434 = vmatprep.subr.mxu0 0.0
  %3435 = vmatpush1.msra.mxu0 0.0
  %3436 = vmatprep.subr.mxu0 0.0
  %3437 = vmatpush1.msra.mxu0 0.0
  %3438 = vmatprep.subr.mxu0 0.0
  %3439 = vmatpush1.msra.mxu0 0.0
  %3440 = vmatprep.subr.mxu0 0.0
  %3441 = vmatpush1.msra.mxu0 0.0
  %3442 = vmatprep.subr.mxu0 0.0
  %3443 = vmatpush1.msra.mxu0 0.0
  %3444 = vmatprep.subr.mxu0 0.0
  %3445 = vmatpush1.msra.mxu0 0.0
  %3446 = vmatprep.subr.mxu0 0.0
  %3447 = vmatpush1.msra.mxu0 0.0
  %3448 = vmatprep.mubr.f32.mxu0 %v3192
  %3449 = vmatmul.mubr.f32.gmra.mrb[0].mxu0 %v3129
  %v3450 = vpop.f32.mrb[0].mxu0
  %v3451 = vadd.f32 %v3306, %v3450
  %v3452 = vpop.f32.mrb[0].mxu0
  %3453 = vmatprep.mubr.f32.mxu0 %v3195
  %3454 = vmatmul.mubr.f32.gmra.mrb[0].mxu0 %v3133
  %v3455 = vpop.f32.mrb[0].mxu0
  %v3456 = vadd.f32 %v3311, %v3455
  %v3457 = vpop.f32.mrb[0].mxu0
  %3458 = vmatprep.mubr.f32.mxu0 %v3198
  %3459 = vmatmul.mubr.f32.gmra.mrb[0].mxu0 %v3137
  %v3460 = vpop.f32.mrb[0].mxu0
  %v3461 = vadd.f32 %v3316, %v3460
  %v3462 = vpop.f32.mrb[0].mxu0
  %3463 = vmatprep.mubr.f32.mxu0 %v3201
  %3464 = vmatmul.mubr.f32.gmra.mrb[0].mxu0 %v3141
  %v3465 = vpop.f32.mrb[0].mxu0
  %v3466 = vadd.f32 %v3321, %v3465
  %v3467 = vpop.f32.mrb[0].mxu0
  %3468 = vmatprep.mubr.f32.mxu0 %v3204
  %3469 = vmatmul.mubr.f32.gmra.mrb[0].mxu0 %v3145
  %v3470 = vpop.f32.mrb[0].mxu0
  %v3471 = vadd.f32 %v3326, %v3470
  %v3472 = vpop.f32.mrb[0].mxu0
  %3473 = vmatprep.mubr.f32.mxu0 %v3207
  %3474 = vmatmul.mubr.f32.gmra.mrb[0].mxu0 %v3149
  %v3475 = vpop.f32.mrb[0].mxu0
  %v3476 = vadd.f32 %v3331, %v3475
  %v3477 = vpop.f32.mrb[0].mxu0
  %3478 = vmatprep.mubr.f32.mxu0 %v3210
  %3479 = vmatmul.mubr.f32.gmra.mrb[0].mxu0 %v3153
  %v3480 = vpop.f32.mrb[0].mxu0
  %v3481 = vadd.f32 %v3336, %v3480
  %v3482 = vpop.f32.mrb[0].mxu0
  %3483 = vmatprep.mubr.f32.mxu0 %v3213
  %3484 = vmatmul.mubr.f32.gmra.mrb[0].mxu0 %v3157
  %v3485 = vpop.f32.mrb[0].mxu0
  %v3486 = vadd.f32 %v3341, %v3485
  %v3487 = vpop.f32.mrb[0].mxu0
  %3488 = vmatprep.mubr.f32.mxu0 %v3216
  %3489 = vmatmul.mubr.f32.gmra.mrb[0].mxu0 %v3161
  %v3490 = vpop.f32.mrb[0].mxu0
  %v3491 = vadd.f32 %v3346, %v3490
  %v3492 = vpop.f32.mrb[0].mxu0
  %3493 = vmatprep.mubr.f32.mxu0 %v3219
  %3494 = vmatmul.mubr.f32.gmra.mrb[0].mxu0 %v3165
  %v3495 = vpop.f32.mrb[0].mxu0
  %v3496 = vadd.f32 %v3351, %v3495
  %v3497 = vpop.f32.mrb[0].mxu0
  %3498 = vmatprep.mubr.f32.mxu0 %v3222
  %3499 = vmatmul.mubr.f32.gmra.mrb[0].mxu0 %v3169
  %v3500 = vpop.f32.mrb[0].mxu0
  %v3501 = vadd.f32 %v3356, %v3500
  %v3502 = vpop.f32.mrb[0].mxu0
  %3503 = vmatprep.mubr.f32.mxu0 %v3225
  %3504 = vmatmul.mubr.f32.gmra.mrb[0].mxu0 %v3173
  %v3505 = vpop.f32.mrb[0].mxu0
  %v3506 = vadd.f32 %v3361, %v3505
  %v3507 = vpop.f32.mrb[0].mxu0
  %3508 = vmatprep.mubr.f32.mxu0 %v3228
  %3509 = vmatmul.mubr.f32.gmra.mrb[0].mxu0 %v3177
  %v3510 = vpop.f32.mrb[0].mxu0
  %v3511 = vadd.f32 %v3366, %v3510
  %v3512 = vpop.f32.mrb[0].mxu0
  %3513 = vmatprep.mubr.f32.mxu0 %v3231
  %3514 = vmatmul.mubr.f32.gmra.mrb[0].mxu0 %v3181
  %v3515 = vpop.f32.mrb[0].mxu0
  %v3516 = vadd.f32 %v3371, %v3515
  %v3517 = vpop.f32.mrb[0].mxu0
  %3518 = vmatprep.mubr.f32.mxu0 %v3234
  %3519 = vmatmul.mubr.f32.gmra.mrb[0].mxu0 %v3185
  %v3520 = vpop.f32.mrb[0].mxu0
  %v3521 = vadd.f32 %v3376, %v3520
  %v3522 = vpop.f32.mrb[0].mxu0
  %3523 = vmatprep.mubr.f32.mxu0 %v3237
  %3524 = vmatmul.mubr.f32.gmra.mrb[0].mxu0 %v3189
  %v3525 = vpop.f32.mrb[0].mxu0
  %v3526 = vadd.f32 %v3381, %v3525
  %v3527 = vpop.f32.mrb[0].mxu0
  %3528 = vdwg.mxu0
  %v3529 = vld [vmem:[%s1 + $0x40] sm:$0xff]
  %v3530 = vld [vmem:[%s1 + $0x48] sm:$0xff]
  %v3532 = vsel %vm1835, %v3451, 0
  %v3535 = vsel %vm1835, %v3456, 0
  %v3538 = vsel %vm1835, %v3461, 0
  %v3541 = vsel %vm1835, %v3466, 0
  %v3544 = vsel %vm1835, %v3471, 0
  %v3547 = vsel %vm1835, %v3476, 0
  %v3550 = vsel %vm1835, %v3481, 0
  %v3553 = vsel %vm1835, %v3486, 0
  %v3556 = vsel %vm1835, %v3491, 0
  %v3559 = vsel %vm1835, %v3496, 0
  %v3562 = vsel %vm1835, %v3501, 0
  %v3565 = vsel %vm1835, %v3506, 0
  %v3568 = vsel %vm1835, %v3511, 0
  %v3571 = vsel %vm1835, %v3516, 0
  %v3574 = vsel %vm1835, %v3521, 0
  %v3577 = vsel %vm1835, %v3526, 0
  %3579 = vmatprep.subr.mxu0 0.0
  %3580 = vmatpush1.msra.mxu0 %v3529
  %3581 = vmatprep.subr.mxu0 0.0
  %3582 = vmatpush1.msra.mxu0 %v3530
  %3583 = vmatprep.subr.mxu0 0.0
  %3584 = vmatpush1.msra.mxu0 0.0
  %3585 = vmatprep.subr.mxu0 0.0
  %3586 = vmatpush1.msra.mxu0 0.0
  %3587 = vmatprep.subr.mxu0 0.0
  %3588 = vmatpush1.msra.mxu0 0.0
  %3589 = vmatprep.subr.mxu0 0.0
  %3590 = vmatpush1.msra.mxu0 0.0
  %3591 = vmatprep.subr.mxu0 0.0
  %3592 = vmatpush1.msra.mxu0 0.0
  %3593 = vmatprep.subr.mxu0 0.0
  %3594 = vmatpush1.msra.mxu0 0.0
  %3595 = vmatprep.subr.mxu0 0.0
  %3596 = vmatpush1.msra.mxu0 0.0
  %3597 = vmatprep.subr.mxu0 0.0
  %3598 = vmatpush1.msra.mxu0 0.0
  %3599 = vmatprep.subr.mxu0 0.0
  %3600 = vmatpush1.msra.mxu0 0.0
  %3601 = vmatprep.subr.mxu0 0.0
  %3602 = vmatpush1.msra.mxu0 0.0
  %3603 = vmatprep.subr.mxu0 0.0
  %3604 = vmatpush1.msra.mxu0 0.0
  %3605 = vmatprep.subr.mxu0 0.0
  %3606 = vmatpush1.msra.mxu0 0.0
  %3607 = vmatprep.subr.mxu0 0.0
  %3608 = vmatpush1.msra.mxu0 0.0
  %3609 = vmatprep.subr.mxu0 0.0
  %3610 = vmatpush1.msra.mxu0 0.0
  %3611 = vmatprep.subr.mxu0 0.0
  %3612 = vmatpush1.msra.mxu0 0.0
  %3613 = vmatprep.subr.mxu0 0.0
  %3614 = vmatpush1.msra.mxu0 0.0
  %3615 = vmatprep.subr.mxu0 0.0
  %3616 = vmatpush1.msra.mxu0 0.0
  %3617 = vmatprep.subr.mxu0 0.0
  %3618 = vmatpush1.msra.mxu0 0.0
  %3619 = vmatprep.subr.mxu0 0.0
  %3620 = vmatpush1.msra.mxu0 0.0
  %3621 = vmatprep.subr.mxu0 0.0
  %3622 = vmatpush1.msra.mxu0 0.0
  %3623 = vmatprep.subr.mxu0 0.0
  %3624 = vmatpush1.msra.mxu0 0.0
  %3625 = vmatprep.subr.mxu0 0.0
  %3626 = vmatpush1.msra.mxu0 0.0
  %3627 = vmatprep.subr.mxu0 0.0
  %3628 = vmatpush1.msra.mxu0 0.0
  %3629 = vmatprep.subr.mxu0 0.0
  %3630 = vmatpush1.msra.mxu0 0.0
  %3631 = vmatprep.subr.mxu0 0.0
  %3632 = vmatpush1.msra.mxu0 0.0
  %3633 = vmatprep.subr.mxu0 0.0
  %3634 = vmatpush1.msra.mxu0 0.0
  %3635 = vmatprep.subr.mxu0 0.0
  %3636 = vmatpush1.msra.mxu0 0.0
  %3637 = vmatprep.subr.mxu0 0.0
  %3638 = vmatpush1.msra.mxu0 0.0
  %3639 = vmatprep.subr.mxu0 0.0
  %3640 = vmatpush1.msra.mxu0 0.0
  %3641 = vmatprep.subr.mxu0 0.0
  %3642 = vmatpush1.msra.mxu0 0.0
  %3643 = vmatprep.mubr.f32.mxu0 0.0
  %3644 = vmatmul.mubr.f32.gmra.mrb[0].mxu0 %v3532
  %v3645 = vpop.f32.mrb[0].mxu0
  %v3646 = vadd.f32 0.0, %v3645
  %v3647 = vpop.f32.mrb[0].mxu0
  %3648 = vmatprep.mubr.f32.mxu0 0.0
  %3649 = vmatmul.mubr.f32.gmra.mrb[0].mxu0 %v3535
  %v3650 = vpop.f32.mrb[0].mxu0
  %v3651 = vadd.f32 0.0, %v3650
  %v3652 = vpop.f32.mrb[0].mxu0
  %3653 = vmatprep.mubr.f32.mxu0 0.0
  %3654 = vmatmul.mubr.f32.gmra.mrb[0].mxu0 %v3538
  %v3655 = vpop.f32.mrb[0].mxu0
  %v3656 = vadd.f32 0.0, %v3655
  %v3657 = vpop.f32.mrb[0].mxu0
  %3658 = vmatprep.mubr.f32.mxu0 0.0
  %3659 = vmatmul.mubr.f32.gmra.mrb[0].mxu0 %v3541
  %v3660 = vpop.f32.mrb[0].mxu0
  %v3661 = vadd.f32 0.0, %v3660
  %v3662 = vpop.f32.mrb[0].mxu0
  %3663 = vmatprep.mubr.f32.mxu0 0.0
  %3664 = vmatmul.mubr.f32.gmra.mrb[0].mxu0 %v3544
  %v3665 = vpop.f32.mrb[0].mxu0
  %v3666 = vadd.f32 0.0, %v3665
  %v3667 = vpop.f32.mrb[0].mxu0
  %3668 = vmatprep.mubr.f32.mxu0 0.0
  %3669 = vmatmul.mubr.f32.gmra.mrb[0].mxu0 %v3547
  %v3670 = vpop.f32.mrb[0].mxu0
  %v3671 = vadd.f32 0.0, %v3670
  %v3672 = vpop.f32.mrb[0].mxu0
  %3673 = vmatprep.mubr.f32.mxu0 0.0
  %3674 = vmatmul.mubr.f32.gmra.mrb[0].mxu0 %v3550
  %v3675 = vpop.f32.mrb[0].mxu0
  %v3676 = vadd.f32 0.0, %v3675
  %v3677 = vpop.f32.mrb[0].mxu0
  %3678 = vmatprep.mubr.f32.mxu0 0.0
  %3679 = vmatmul.mubr.f32.gmra.mrb[0].mxu0 %v3553
  %v3680 = vpop.f32.mrb[0].mxu0
  %v3681 = vadd.f32 0.0, %v3680
  %v3682 = vpop.f32.mrb[0].mxu0
  %3683 = vmatprep.mubr.f32.mxu0 0.0
  %3684 = vmatmul.mubr.f32.gmra.mrb[0].mxu0 %v3556
  %v3685 = vpop.f32.mrb[0].mxu0
  %v3686 = vadd.f32 0.0, %v3685
  %v3687 = vpop.f32.mrb[0].mxu0
  %3688 = vmatprep.mubr.f32.mxu0 0.0
  %3689 = vmatmul.mubr.f32.gmra.mrb[0].mxu0 %v3559
  %v3690 = vpop.f32.mrb[0].mxu0
  %v3691 = vadd.f32 0.0, %v3690
  %v3692 = vpop.f32.mrb[0].mxu0
  %3693 = vmatprep.mubr.f32.mxu0 0.0
  %3694 = vmatmul.mubr.f32.gmra.mrb[0].mxu0 %v3562
  %v3695 = vpop.f32.mrb[0].mxu0
  %v3696 = vadd.f32 0.0, %v3695
  %v3697 = vpop.f32.mrb[0].mxu0
  %3698 = vmatprep.mubr.f32.mxu0 0.0
  %3699 = vmatmul.mubr.f32.gmra.mrb[0].mxu0 %v3565
  %v3700 = vpop.f32.mrb[0].mxu0
  %v3701 = vadd.f32 0.0, %v3700
  %v3702 = vpop.f32.mrb[0].mxu0
  %3703 = vmatprep.mubr.f32.mxu0 0.0
  %3704 = vmatmul.mubr.f32.gmra.mrb[0].mxu0 %v3568
  %v3705 = vpop.f32.mrb[0].mxu0
  %v3706 = vadd.f32 0.0, %v3705
  %v3707 = vpop.f32.mrb[0].mxu0
  %3708 = vmatprep.mubr.f32.mxu0 0.0
  %3709 = vmatmul.mubr.f32.gmra.mrb[0].mxu0 %v3571
  %v3710 = vpop.f32.mrb[0].mxu0
  %v3711 = vadd.f32 0.0, %v3710
  %v3712 = vpop.f32.mrb[0].mxu0
  %3713 = vmatprep.mubr.f32.mxu0 0.0
  %3714 = vmatmul.mubr.f32.gmra.mrb[0].mxu0 %v3574
  %v3715 = vpop.f32.mrb[0].mxu0
  %v3716 = vadd.f32 0.0, %v3715
  %v3717 = vpop.f32.mrb[0].mxu0
  %3718 = vmatprep.mubr.f32.mxu0 0.0
  %3719 = vmatmul.mubr.f32.gmra.mrb[0].mxu0 %v3577
  %v3720 = vpop.f32.mrb[0].mxu0
  %v3721 = vadd.f32 0.0, %v3720
  %v3722 = vpop.f32.mrb[0].mxu0
  %3723 = vdwg.mxu0
  %v3724 = vadd.f32 %v2965, %v3646
  %v3725 = vadd.f32 %v2966, %v3651
  %v3726 = vadd.f32 %v2967, %v3656
  %v3727 = vadd.f32 %v2968, %v3661
  %v3728 = vadd.f32 %v2969, %v3666
  %v3729 = vadd.f32 %v2970, %v3671
  %v3730 = vadd.f32 %v2971, %v3676
  %v3731 = vadd.f32 %v2972, %v3681
  %v3732 = vadd.f32 %v2973, %v3686
  %v3733 = vadd.f32 %v2974, %v3691
  %v3734 = vadd.f32 %v2975, %v3696
  %v3735 = vadd.f32 %v2976, %v3701
  %v3736 = vadd.f32 %v2977, %v3706
  %v3737 = vadd.f32 %v2978, %v3711
  %v3738 = vadd.f32 %v2979, %v3716
  %v3739 = vadd.f32 %v2980, %v3721
  %v3740 = vld [vmem:[%s1 + $0xd] sm:$0x1]
  %v3741 = vlaneseq
  %v3742 = vshrl.u32 %v3741, 7
  %v3743 = vsub.s32 0, %v3742
  %v3744 = vrot.slane %v3740, %v3743
  %v3745 = vadd.f32 %v3724, %v3744
  %v3746 = vadd.f32 %v3725, %v3744
  %v3747 = vadd.f32 %v3726, %v3744
  %v3748 = vadd.f32 %v3727, %v3744
  %v3749 = vadd.f32 %v3728, %v3744
  %v3750 = vadd.f32 %v3729, %v3744
  %v3751 = vadd.f32 %v3730, %v3744
  %v3752 = vadd.f32 %v3731, %v3744
  %v3753 = vadd.f32 %v3732, %v3744
  %v3754 = vadd.f32 %v3733, %v3744
  %v3755 = vadd.f32 %v3734, %v3744
  %v3756 = vadd.f32 %v3735, %v3744
  %v3757 = vadd.f32 %v3736, %v3744
  %v3758 = vadd.f32 %v3737, %v3744
  %v3759 = vadd.f32 %v3738, %v3744
  %v3760 = vadd.f32 %v3739, %v3744
  %v3761 = vld [vmem:[%s2 + $0x10] sm:$0x1]
  %v3762 = vlaneseq
  %v3763 = vshrl.u32 %v3762, 7
  %v3764 = vsub.s32 0, %v3763
  %v3765 = vrot.slane %v3761, %v3764
  %vm3766 = vcmp.eq.s32.totalorder %v719, %v3765
  %vm3767 = vcmp.eq.s32.totalorder %v720, %v3765
  %vm3768 = vcmp.eq.s32.totalorder %v721, %v3765
  %vm3769 = vcmp.eq.s32.totalorder %v722, %v3765
  %vm3770 = vcmp.eq.s32.totalorder %v723, %v3765
  %vm3771 = vcmp.eq.s32.totalorder %v724, %v3765
  %vm3772 = vcmp.eq.s32.totalorder %v725, %v3765
  %v3773 = vsel %vm3766, 1, 0
  %v3774 = vsel %vm3767, 1, 0
  %v3775 = vsel %vm3768, 1, 0
  %v3776 = vsel %vm3769, 1, 0
  %v3777 = vsel %vm3770, 1, 0
  %v3778 = vsel %vm3771, 1, 0
  %v3779 = vsel %vm3772, 1, 0
  %v3780 = vcvt.s32.f32 %v3773
  %v3781 = vcvt.s32.f32 %v3774
  %v3782 = vcvt.s32.f32 %v3775
  %v3783 = vcvt.s32.f32 %v3776
  %v3784 = vcvt.s32.f32 %v3777
  %v3785 = vcvt.s32.f32 %v3778
  %v3786 = vcvt.s32.f32 %v3779
  %3787 = vmatprep.subr.mxu0 0.0
  %3788 = vmatpush1.msra.mxu0 %v3745
  %3789 = vmatprep.subr.mxu0 0.0
  %3790 = vmatpush1.msra.mxu0 %v3746
  %3791 = vmatprep.subr.mxu0 0.0
  %3792 = vmatpush1.msra.mxu0 %v3747
  %3793 = vmatprep.subr.mxu0 0.0
  %3794 = vmatpush1.msra.mxu0 %v3748
  %3795 = vmatprep.subr.mxu0 0.0
  %3796 = vmatpush1.msra.mxu0 %v3749
  %3797 = vmatprep.subr.mxu0 0.0
  %3798 = vmatpush1.msra.mxu0 %v3750
  %3799 = vmatprep.subr.mxu0 0.0
  %3800 = vmatpush1.msra.mxu0 %v3751
  %3801 = vmatprep.subr.mxu0 0.0
  %3802 = vmatpush1.msra.mxu0 %v3752
  %3803 = vmatprep.subr.mxu0 0.0
  %3804 = vmatpush1.msra.mxu0 %v3753
  %3805 = vmatprep.subr.mxu0 0.0
  %3806 = vmatpush1.msra.mxu0 %v3754
  %3807 = vmatprep.subr.mxu0 0.0
  %3808 = vmatpush1.msra.mxu0 %v3755
  %3809 = vmatprep.subr.mxu0 0.0
  %3810 = vmatpush1.msra.mxu0 %v3756
  %3811 = vmatprep.subr.mxu0 0.0
  %3812 = vmatpush1.msra.mxu0 %v3757
  %3813 = vmatprep.subr.mxu0 0.0
  %3814 = vmatpush1.msra.mxu0 %v3758
  %3815 = vmatprep.subr.mxu0 0.0
  %3816 = vmatpush1.msra.mxu0 %v3759
  %3817 = vmatprep.subr.mxu0 0.0
  %3818 = vmatpush1.msra.mxu0 %v3760
  %3819 = vmatprep.subr.mxu0 0.0
  %3820 = vmatpush1.msra.mxu0 0.0
  %3821 = vmatprep.subr.mxu0 0.0
  %3822 = vmatpush1.msra.mxu0 0.0
  %3823 = vmatprep.subr.mxu0 0.0
  %3824 = vmatpush1.msra.mxu0 0.0
  %3825 = vmatprep.subr.mxu0 0.0
  %3826 = vmatpush1.msra.mxu0 0.0
  %3827 = vmatprep.subr.mxu0 0.0
  %3828 = vmatpush1.msra.mxu0 0.0
  %3829 = vmatprep.subr.mxu0 0.0
  %3830 = vmatpush1.msra.mxu0 0.0
  %3831 = vmatprep.subr.mxu0 0.0
  %3832 = vmatpush1.msra.mxu0 0.0
  %3833 = vmatprep.subr.mxu0 0.0
  %3834 = vmatpush1.msra.mxu0 0.0
  %3835 = vmatprep.subr.mxu0 0.0
  %3836 = vmatpush1.msra.mxu0 0.0
  %3837 = vmatprep.subr.mxu0 0.0
  %3838 = vmatpush1.msra.mxu0 0.0
  %3839 = vmatprep.subr.mxu0 0.0
  %3840 = vmatpush1.msra.mxu0 0.0
  %3841 = vmatprep.subr.mxu0 0.0
  %3842 = vmatpush1.msra.mxu0 0.0
  %3843 = vmatprep.subr.mxu0 0.0
  %3844 = vmatpush1.msra.mxu0 0.0
  %3845 = vmatprep.subr.mxu0 0.0
  %3846 = vmatpush1.msra.mxu0 0.0
  %3847 = vmatprep.subr.mxu0 0.0
  %3848 = vmatpush1.msra.mxu0 0.0
  %3849 = vmatprep.subr.mxu0 0.0
  %3850 = vmatpush1.msra.mxu0 0.0
  %3851 = vmatprep.mubr.f32.mxu0 0.0
  %3852 = vmatmul.mubr.f32.gmra.mrb[0].mxu0 %v3780
  %v3853 = vpop.f32.mrb[0].mxu0
  %v3854 = vadd.f32 0.0, %v3853
  %v3855 = vpop.f32.mrb[0].mxu0
  %3856 = vmatprep.mubr.f32.mxu0 0.0
  %3857 = vmatmul.mubr.f32.gmra.mrb[0].mxu0 %v3781
  %v3858 = vpop.f32.mrb[0].mxu0
  %v3859 = vadd.f32 0.0, %v3858
  %v3860 = vpop.f32.mrb[0].mxu0
  %3861 = vmatprep.mubr.f32.mxu0 0.0
  %3862 = vmatmul.mubr.f32.gmra.mrb[0].mxu0 %v3782
  %v3863 = vpop.f32.mrb[0].mxu0
  %v3864 = vadd.f32 0.0, %v3863
  %v3865 = vpop.f32.mrb[0].mxu0
  %3866 = vmatprep.mubr.f32.mxu0 0.0
  %3867 = vmatmul.mubr.f32.gmra.mrb[0].mxu0 %v3783
  %v3868 = vpop.f32.mrb[0].mxu0
  %v3869 = vadd.f32 0.0, %v3868
  %v3870 = vpop.f32.mrb[0].mxu0
  %3871 = vmatprep.mubr.f32.mxu0 0.0
  %3872 = vmatmul.mubr.f32.gmra.mrb[0].mxu0 %v3784
  %v3873 = vpop.f32.mrb[0].mxu0
  %v3874 = vadd.f32 0.0, %v3873
  %v3875 = vpop.f32.mrb[0].mxu0
  %3876 = vmatprep.mubr.f32.mxu0 0.0
  %3877 = vmatmul.mubr.f32.gmra.mrb[0].mxu0 %v3785
  %v3878 = vpop.f32.mrb[0].mxu0
  %v3879 = vadd.f32 0.0, %v3878
  %v3880 = vpop.f32.mrb[0].mxu0
  %3881 = vmatprep.mubr.f32.mxu0 0.0
  %3882 = vmatmul.mubr.f32.gmra.mrb[0].mxu0 %v3786
  %v3883 = vpop.f32.mrb[0].mxu0
  %v3884 = vadd.f32 0.0, %v3883
  %v3885 = vpop.f32.mrb[0].mxu0
  %3886 = vdwg.mxu0
  %v3887 = vld [vmem:[%s1 + $0x50] sm:$0xff]
  %v3888 = vld [vmem:[%s1 + $0x58] sm:$0xff]
  %v3889 = vld [vmem:[%s2 + $0x11] sm:$0x1]
  %v3890 = vlaneseq
  %v3891 = vshrl.u32 %v3890, 7
  %v3892 = vsub.s32 0, %v3891
  %v3893 = vrot.slane %v3889, %v3892
  %vm3894 = vcmp.eq.s32.totalorder %v719, %v3893
  %vm3895 = vcmp.eq.s32.totalorder %v720, %v3893
  %vm3896 = vcmp.eq.s32.totalorder %v721, %v3893
  %vm3897 = vcmp.eq.s32.totalorder %v722, %v3893
  %vm3898 = vcmp.eq.s32.totalorder %v723, %v3893
  %vm3899 = vcmp.eq.s32.totalorder %v724, %v3893
  %vm3900 = vcmp.eq.s32.totalorder %v725, %v3893
  %v3901 = vsel %vm3894, 1, 0
  %v3902 = vsel %vm3895, 1, 0
  %v3903 = vsel %vm3896, 1, 0
  %v3904 = vsel %vm3897, 1, 0
  %v3905 = vsel %vm3898, 1, 0
  %v3906 = vsel %vm3899, 1, 0
  %v3907 = vsel %vm3900, 1, 0
  %v3908 = vcvt.s32.f32 %v3901
  %v3909 = vcvt.s32.f32 %v3902
  %v3910 = vcvt.s32.f32 %v3903
  %v3911 = vcvt.s32.f32 %v3904
  %v3912 = vcvt.s32.f32 %v3905
  %v3913 = vcvt.s32.f32 %v3906
  %v3914 = vcvt.s32.f32 %v3907
  %3915 = vmatprep.subr.mxu0 0.0
  %3916 = vmatpush1.msra.mxu0 %v3745
  %3917 = vmatprep.subr.mxu0 0.0
  %3918 = vmatpush1.msra.mxu0 %v3746
  %3919 = vmatprep.subr.mxu0 0.0
  %3920 = vmatpush1.msra.mxu0 %v3747
  %3921 = vmatprep.subr.mxu0 0.0
  %3922 = vmatpush1.msra.mxu0 %v3748
  %3923 = vmatprep.subr.mxu0 0.0
  %3924 = vmatpush1.msra.mxu0 %v3749
  %3925 = vmatprep.subr.mxu0 0.0
  %3926 = vmatpush1.msra.mxu0 %v3750
  %3927 = vmatprep.subr.mxu0 0.0
  %3928 = vmatpush1.msra.mxu0 %v3751
  %3929 = vmatprep.subr.mxu0 0.0
  %3930 = vmatpush1.msra.mxu0 %v3752
  %3931 = vmatprep.subr.mxu0 0.0
  %3932 = vmatpush1.msra.mxu0 %v3753
  %3933 = vmatprep.subr.mxu0 0.0
  %3934 = vmatpush1.msra.mxu0 %v3754
  %3935 = vmatprep.subr.mxu0 0.0
  %3936 = vmatpush1.msra.mxu0 %v3755
  %3937 = vmatprep.subr.mxu0 0.0
  %3938 = vmatpush1.msra.mxu0 %v3756
  %3939 = vmatprep.subr.mxu0 0.0
  %3940 = vmatpush1.msra.mxu0 %v3757
  %3941 = vmatprep.subr.mxu0 0.0
  %3942 = vmatpush1.msra.mxu0 %v3758
  %3943 = vmatprep.subr.mxu0 0.0
  %3944 = vmatpush1.msra.mxu0 %v3759
  %3945 = vmatprep.subr.mxu0 0.0
  %3946 = vmatpush1.msra.mxu0 %v3760
  %3947 = vmatprep.subr.mxu0 0.0
  %3948 = vmatpush1.msra.mxu0 0.0
  %3949 = vmatprep.subr.mxu0 0.0
  %3950 = vmatpush1.msra.mxu0 0.0
  %3951 = vmatprep.subr.mxu0 0.0
  %3952 = vmatpush1.msra.mxu0 0.0
  %3953 = vmatprep.subr.mxu0 0.0
  %3954 = vmatpush1.msra.mxu0 0.0
  %3955 = vmatprep.subr.mxu0 0.0
  %3956 = vmatpush1.msra.mxu0 0.0
  %3957 = vmatprep.subr.mxu0 0.0
  %3958 = vmatpush1.msra.mxu0 0.0
  %3959 = vmatprep.subr.mxu0 0.0
  %3960 = vmatpush1.msra.mxu0 0.0
  %3961 = vmatprep.subr.mxu0 0.0
  %3962 = vmatpush1.msra.mxu0 0.0
  %3963 = vmatprep.subr.mxu0 0.0
  %3964 = vmatpush1.msra.mxu0 0.0
  %3965 = vmatprep.subr.mxu0 0.0
  %3966 = vmatpush1.msra.mxu0 0.0
  %3967 = vmatprep.subr.mxu0 0.0
  %3968 = vmatpush1.msra.mxu0 0.0
  %3969 = vmatprep.subr.mxu0 0.0
  %3970 = vmatpush1.msra.mxu0 0.0
  %3971 = vmatprep.subr.mxu0 0.0
  %3972 = vmatpush1.msra.mxu0 0.0
  %3973 = vmatprep.subr.mxu0 0.0
  %3974 = vmatpush1.msra.mxu0 0.0
  %3975 = vmatprep.subr.mxu0 0.0
  %3976 = vmatpush1.msra.mxu0 0.0
  %3977 = vmatprep.subr.mxu0 0.0
  %3978 = vmatpush1.msra.mxu0 0.0
  %3979 = vmatprep.mubr.f32.mxu0 0.0
  %3980 = vmatmul.mubr.f32.gmra.mrb[0].mxu0 %v3908
  %v3981 = vpop.f32.mrb[0].mxu0
  %v3982 = vadd.f32 0.0, %v3981
  %v3983 = vpop.f32.mrb[0].mxu0
  %3984 = vmatprep.mubr.f32.mxu0 0.0
  %3985 = vmatmul.mubr.f32.gmra.mrb[0].mxu0 %v3909
  %v3986 = vpop.f32.mrb[0].mxu0
  %v3987 = vadd.f32 0.0, %v3986
  %v3988 = vpop.f32.mrb[0].mxu0
  %3989 = vmatprep.mubr.f32.mxu0 0.0
  %3990 = vmatmul.mubr.f32.gmra.mrb[0].mxu0 %v3910
  %v3991 = vpop.f32.mrb[0].mxu0
  %v3992 = vadd.f32 0.0, %v3991
  %v3993 = vpop.f32.mrb[0].mxu0
  %3994 = vmatprep.mubr.f32.mxu0 0.0
  %3995 = vmatmul.mubr.f32.gmra.mrb[0].mxu0 %v3911
  %v3996 = vpop.f32.mrb[0].mxu0
  %v3997 = vadd.f32 0.0, %v3996
  %v3998 = vpop.f32.mrb[0].mxu0
  %3999 = vmatprep.mubr.f32.mxu0 0.0
  %4000 = vmatmul.mubr.f32.gmra.mrb[0].mxu0 %v3912
  %v4001 = vpop.f32.mrb[0].mxu0
  %v4002 = vadd.f32 0.0, %v4001
  %v4003 = vpop.f32.mrb[0].mxu0
  %4004 = vmatprep.mubr.f32.mxu0 0.0
  %4005 = vmatmul.mubr.f32.gmra.mrb[0].mxu0 %v3913
  %v4006 = vpop.f32.mrb[0].mxu0
  %v4007 = vadd.f32 0.0, %v4006
  %v4008 = vpop.f32.mrb[0].mxu0
  %4009 = vmatprep.mubr.f32.mxu0 0.0
  %4010 = vmatmul.mubr.f32.gmra.mrb[0].mxu0 %v3914
  %v4011 = vpop.f32.mrb[0].mxu0
  %v4012 = vadd.f32 0.0, %v4011
  %v4013 = vpop.f32.mrb[0].mxu0
  %4014 = vdwg.mxu0
  %v4015 = vld [vmem:[%s1 + $0x60] sm:$0xff]
  %v4016 = vld [vmem:[%s1 + $0x68] sm:$0xff]
  %v4018 = vsel %vm1835, %v3982, 0
  %v4021 = vsel %vm1835, %v3987, 0
  %v4024 = vsel %vm1835, %v3992, 0
  %v4027 = vsel %vm1835, %v3997, 0
  %v4030 = vsel %vm1835, %v4002, 0
  %v4033 = vsel %vm1835, %v4007, 0
  %v4036 = vsel %vm1835, %v4012, 0
  %4038 = vmatprep.subr.mxu0 0.0
  %4039 = vmatpush1.msra.mxu0 %v4015
  %4040 = vmatprep.subr.mxu0 0.0
  %4041 = vmatpush1.msra.mxu0 %v4016
  %4042 = vmatprep.subr.mxu0 0.0
  %4043 = vmatpush1.msra.mxu0 0.0
  %4044 = vmatprep.subr.mxu0 0.0
  %4045 = vmatpush1.msra.mxu0 0.0
  %4046 = vmatprep.subr.mxu0 0.0
  %4047 = vmatpush1.msra.mxu0 0.0
  %4048 = vmatprep.subr.mxu0 0.0
  %4049 = vmatpush1.msra.mxu0 0.0
  %4050 = vmatprep.subr.mxu0 0.0
  %4051 = vmatpush1.msra.mxu0 0.0
  %4052 = vmatprep.subr.mxu0 0.0
  %4053 = vmatpush1.msra.mxu0 0.0
  %4054 = vmatprep.subr.mxu0 0.0
  %4055 = vmatpush1.msra.mxu0 0.0
  %4056 = vmatprep.subr.mxu0 0.0
  %4057 = vmatpush1.msra.mxu0 0.0
  %4058 = vmatprep.subr.mxu0 0.0
  %4059 = vmatpush1.msra.mxu0 0.0
  %4060 = vmatprep.subr.mxu0 0.0
  %4061 = vmatpush1.msra.mxu0 0.0
  %4062 = vmatprep.subr.mxu0 0.0
  %4063 = vmatpush1.msra.mxu0 0.0
  %4064 = vmatprep.subr.mxu0 0.0
  %4065 = vmatpush1.msra.mxu0 0.0
  %4066 = vmatprep.subr.mxu0 0.0
  %4067 = vmatpush1.msra.mxu0 0.0
  %4068 = vmatprep.subr.mxu0 0.0
  %4069 = vmatpush1.msra.mxu0 0.0
  %4070 = vmatprep.subr.mxu0 0.0
  %4071 = vmatpush1.msra.mxu0 0.0
  %4072 = vmatprep.subr.mxu0 0.0
  %4073 = vmatpush1.msra.mxu0 0.0
  %4074 = vmatprep.subr.mxu0 0.0
  %4075 = vmatpush1.msra.mxu0 0.0
  %4076 = vmatprep.subr.mxu0 0.0
  %4077 = vmatpush1.msra.mxu0 0.0
  %4078 = vmatprep.subr.mxu0 0.0
  %4079 = vmatpush1.msra.mxu0 0.0
  %4080 = vmatprep.subr.mxu0 0.0
  %4081 = vmatpush1.msra.mxu0 0.0
  %4082 = vmatprep.subr.mxu0 0.0
  %4083 = vmatpush1.msra.mxu0 0.0
  %4084 = vmatprep.subr.mxu0 0.0
  %4085 = vmatpush1.msra.mxu0 0.0
  %4086 = vmatprep.subr.mxu0 0.0
  %4087 = vmatpush1.msra.mxu0 0.0
  %4088 = vmatprep.subr.mxu0 0.0
  %4089 = vmatpush1.msra.mxu0 0.0
  %4090 = vmatprep.subr.mxu0 0.0
  %4091 = vmatpush1.msra.mxu0 0.0
  %4092 = vmatprep.subr.mxu0 0.0
  %4093 = vmatpush1.msra.mxu0 0.0
  %4094 = vmatprep.subr.mxu0 0.0
  %4095 = vmatpush1.msra.mxu0 0.0
  %4096 = vmatprep.subr.mxu0 0.0
  %4097 = vmatpush1.msra.mxu0 0.0
  %4098 = vmatprep.subr.mxu0 0.0
  %4099 = vmatpush1.msra.mxu0 0.0
  %4100 = vmatprep.subr.mxu0 0.0
  %4101 = vmatpush1.msra.mxu0 0.0
  %4102 = vmatprep.mubr.f32.mxu0 0.0
  %4103 = vmatmul.mubr.f32.gmra.mrb[0].mxu0 %v4018
  %v4104 = vpop.f32.mrb[0].mxu0
  %v4105 = vadd.f32 0.0, %v4104
  %v4106 = vpop.f32.mrb[0].mxu0
  %4107 = vmatprep.mubr.f32.mxu0 0.0
  %4108 = vmatmul.mubr.f32.gmra.mrb[0].mxu0 %v4021
  %v4109 = vpop.f32.mrb[0].mxu0
  %v4110 = vadd.f32 0.0, %v4109
  %v4111 = vpop.f32.mrb[0].mxu0
  %4112 = vmatprep.mubr.f32.mxu0 0.0
  %4113 = vmatmul.mubr.f32.gmra.mrb[0].mxu0 %v4024
  %v4114 = vpop.f32.mrb[0].mxu0
  %v4115 = vadd.f32 0.0, %v4114
  %v4116 = vpop.f32.mrb[0].mxu0
  %4117 = vmatprep.mubr.f32.mxu0 0.0
  %4118 = vmatmul.mubr.f32.gmra.mrb[0].mxu0 %v4027
  %v4119 = vpop.f32.mrb[0].mxu0
  %v4120 = vadd.f32 0.0, %v4119
  %v4121 = vpop.f32.mrb[0].mxu0
  %4122 = vmatprep.mubr.f32.mxu0 0.0
  %4123 = vmatmul.mubr.f32.gmra.mrb[0].mxu0 %v4030
  %v4124 = vpop.f32.mrb[0].mxu0
  %v4125 = vadd.f32 0.0, %v4124
  %v4126 = vpop.f32.mrb[0].mxu0
  %4127 = vmatprep.mubr.f32.mxu0 0.0
  %4128 = vmatmul.mubr.f32.gmra.mrb[0].mxu0 %v4033
  %v4129 = vpop.f32.mrb[0].mxu0
  %v4130 = vadd.f32 0.0, %v4129
  %v4131 = vpop.f32.mrb[0].mxu0
  %4132 = vmatprep.mubr.f32.mxu0 0.0
  %4133 = vmatmul.mubr.f32.gmra.mrb[0].mxu0 %v4036
  %v4134 = vpop.f32.mrb[0].mxu0
  %v4135 = vadd.f32 0.0, %v4134
  %v4136 = vpop.f32.mrb[0].mxu0
  %4137 = vdwg.mxu0
  %v4139 = vsel %vm1835, %v3854, 0
  %v4142 = vsel %vm1835, %v3859, 0
  %v4145 = vsel %vm1835, %v3864, 0
  %v4148 = vsel %vm1835, %v3869, 0
  %v4151 = vsel %vm1835, %v3874, 0
  %v4154 = vsel %vm1835, %v3879, 0
  %v4157 = vsel %vm1835, %v3884, 0
  %4159 = vmatprep.subr.mxu0 0.0
  %4160 = vmatpush1.msra.mxu0 %v3887
  %4161 = vmatprep.subr.mxu0 0.0
  %4162 = vmatpush1.msra.mxu0 %v3888
  %4163 = vmatprep.subr.mxu0 0.0
  %4164 = vmatpush1.msra.mxu0 0.0
  %4165 = vmatprep.subr.mxu0 0.0
  %4166 = vmatpush1.msra.mxu0 0.0
  %4167 = vmatprep.subr.mxu0 0.0
  %4168 = vmatpush1.msra.mxu0 0.0
  %4169 = vmatprep.subr.mxu0 0.0
  %4170 = vmatpush1.msra.mxu0 0.0
  %4171 = vmatprep.subr.mxu0 0.0
  %4172 = vmatpush1.msra.mxu0 0.0
  %4173 = vmatprep.subr.mxu0 0.0
  %4174 = vmatpush1.msra.mxu0 0.0
  %4175 = vmatprep.subr.mxu0 0.0
  %4176 = vmatpush1.msra.mxu0 0.0
  %4177 = vmatprep.subr.mxu0 0.0
  %4178 = vmatpush1.msra.mxu0 0.0
  %4179 = vmatprep.subr.mxu0 0.0
  %4180 = vmatpush1.msra.mxu0 0.0
  %4181 = vmatprep.subr.mxu0 0.0
  %4182 = vmatpush1.msra.mxu0 0.0
  %4183 = vmatprep.subr.mxu0 0.0
  %4184 = vmatpush1.msra.mxu0 0.0
  %4185 = vmatprep.subr.mxu0 0.0
  %4186 = vmatpush1.msra.mxu0 0.0
  %4187 = vmatprep.subr.mxu0 0.0
  %4188 = vmatpush1.msra.mxu0 0.0
  %4189 = vmatprep.subr.mxu0 0.0
  %4190 = vmatpush1.msra.mxu0 0.0
  %4191 = vmatprep.subr.mxu0 0.0
  %4192 = vmatpush1.msra.mxu0 0.0
  %4193 = vmatprep.subr.mxu0 0.0
  %4194 = vmatpush1.msra.mxu0 0.0
  %4195 = vmatprep.subr.mxu0 0.0
  %4196 = vmatpush1.msra.mxu0 0.0
  %4197 = vmatprep.subr.mxu0 0.0
  %4198 = vmatpush1.msra.mxu0 0.0
  %4199 = vmatprep.subr.mxu0 0.0
  %4200 = vmatpush1.msra.mxu0 0.0
  %4201 = vmatprep.subr.mxu0 0.0
  %4202 = vmatpush1.msra.mxu0 0.0
  %4203 = vmatprep.subr.mxu0 0.0
  %4204 = vmatpush1.msra.mxu0 0.0
  %4205 = vmatprep.subr.mxu0 0.0
  %4206 = vmatpush1.msra.mxu0 0.0
  %4207 = vmatprep.subr.mxu0 0.0
  %4208 = vmatpush1.msra.mxu0 0.0
  %4209 = vmatprep.subr.mxu0 0.0
  %4210 = vmatpush1.msra.mxu0 0.0
  %4211 = vmatprep.subr.mxu0 0.0
  %4212 = vmatpush1.msra.mxu0 0.0
  %4213 = vmatprep.subr.mxu0 0.0
  %4214 = vmatpush1.msra.mxu0 0.0
  %4215 = vmatprep.subr.mxu0 0.0
  %4216 = vmatpush1.msra.mxu0 0.0
  %4217 = vmatprep.subr.mxu0 0.0
  %4218 = vmatpush1.msra.mxu0 0.0
  %4219 = vmatprep.subr.mxu0 0.0
  %4220 = vmatpush1.msra.mxu0 0.0
  %4221 = vmatprep.subr.mxu0 0.0
  %4222 = vmatpush1.msra.mxu0 0.0
  %4223 = vmatprep.mubr.f32.mxu0 0.0
  %4224 = vmatmul.mubr.f32.gmra.mrb[0].mxu0 %v4139
  %v4225 = vpop.f32.mrb[0].mxu0
  %v4226 = vadd.f32 %v4105, %v4225
  %v4227 = vpop.f32.mrb[0].mxu0
  %4228 = vmatprep.mubr.f32.mxu0 0.0
  %4229 = vmatmul.mubr.f32.gmra.mrb[0].mxu0 %v4142
  %v4230 = vpop.f32.mrb[0].mxu0
  %v4231 = vadd.f32 %v4110, %v4230
  %v4232 = vpop.f32.mrb[0].mxu0
  %4233 = vmatprep.mubr.f32.mxu0 0.0
  %4234 = vmatmul.mubr.f32.gmra.mrb[0].mxu0 %v4145
  %v4235 = vpop.f32.mrb[0].mxu0
  %v4236 = vadd.f32 %v4115, %v4235
  %v4237 = vpop.f32.mrb[0].mxu0
  %4238 = vmatprep.mubr.f32.mxu0 0.0
  %4239 = vmatmul.mubr.f32.gmra.mrb[0].mxu0 %v4148
  %v4240 = vpop.f32.mrb[0].mxu0
  %v4241 = vadd.f32 %v4120, %v4240
  %v4242 = vpop.f32.mrb[0].mxu0
  %4243 = vmatprep.mubr.f32.mxu0 0.0
  %4244 = vmatmul.mubr.f32.gmra.mrb[0].mxu0 %v4151
  %v4245 = vpop.f32.mrb[0].mxu0
  %v4246 = vadd.f32 %v4125, %v4245
  %v4247 = vpop.f32.mrb[0].mxu0
  %4248 = vmatprep.mubr.f32.mxu0 0.0
  %4249 = vmatmul.mubr.f32.gmra.mrb[0].mxu0 %v4154
  %v4250 = vpop.f32.mrb[0].mxu0
  %v4251 = vadd.f32 %v4130, %v4250
  %v4252 = vpop.f32.mrb[0].mxu0
  %4253 = vmatprep.mubr.f32.mxu0 0.0
  %4254 = vmatmul.mubr.f32.gmra.mrb[0].mxu0 %v4157
  %v4255 = vpop.f32.mrb[0].mxu0
  %v4256 = vadd.f32 %v4135, %v4255
  %v4257 = vpop.f32.mrb[0].mxu0
  %4258 = vdwg.mxu0
  %v4259 = vld [vmem:[%s2 + $0x12] sm:$0x1]
  %v4260 = vlaneseq
  %v4261 = vshrl.u32 %v4260, 7
  %v4262 = vsub.s32 0, %v4261
  %v4263 = vrot.slane %v4259, %v4262
  %vm4264 = vcmp.eq.s32.totalorder %v719, %v4263
  %vm4265 = vcmp.eq.s32.totalorder %v720, %v4263
  %vm4266 = vcmp.eq.s32.totalorder %v721, %v4263
  %vm4267 = vcmp.eq.s32.totalorder %v722, %v4263
  %vm4268 = vcmp.eq.s32.totalorder %v723, %v4263
  %vm4269 = vcmp.eq.s32.totalorder %v724, %v4263
  %vm4270 = vcmp.eq.s32.totalorder %v725, %v4263
  %v4271 = vsel %vm4264, 1, 0
  %v4272 = vsel %vm4265, 1, 0
  %v4273 = vsel %vm4266, 1, 0
  %v4274 = vsel %vm4267, 1, 0
  %v4275 = vsel %vm4268, 1, 0
  %v4276 = vsel %vm4269, 1, 0
  %v4277 = vsel %vm4270, 1, 0
  %v4278 = vcvt.s32.f32 %v4271
  %v4279 = vcvt.s32.f32 %v4272
  %v4280 = vcvt.s32.f32 %v4273
  %v4281 = vcvt.s32.f32 %v4274
  %v4282 = vcvt.s32.f32 %v4275
  %v4283 = vcvt.s32.f32 %v4276
  %v4284 = vcvt.s32.f32 %v4277
  %4285 = vmatprep.subr.mxu0 0.0
  %4286 = vmatpush1.msra.mxu0 %v3745
  %4287 = vmatprep.subr.mxu0 0.0
  %4288 = vmatpush1.msra.mxu0 %v3746
  %4289 = vmatprep.subr.mxu0 0.0
  %4290 = vmatpush1.msra.mxu0 %v3747
  %4291 = vmatprep.subr.mxu0 0.0
  %4292 = vmatpush1.msra.mxu0 %v3748
  %4293 = vmatprep.subr.mxu0 0.0
  %4294 = vmatpush1.msra.mxu0 %v3749
  %4295 = vmatprep.subr.mxu0 0.0
  %4296 = vmatpush1.msra.mxu0 %v3750
  %4297 = vmatprep.subr.mxu0 0.0
  %4298 = vmatpush1.msra.mxu0 %v3751
  %4299 = vmatprep.subr.mxu0 0.0
  %4300 = vmatpush1.msra.mxu0 %v3752
  %4301 = vmatprep.subr.mxu0 0.0
  %4302 = vmatpush1.msra.mxu0 %v3753
  %4303 = vmatprep.subr.mxu0 0.0
  %4304 = vmatpush1.msra.mxu0 %v3754
  %4305 = vmatprep.subr.mxu0 0.0
  %4306 = vmatpush1.msra.mxu0 %v3755
  %4307 = vmatprep.subr.mxu0 0.0
  %4308 = vmatpush1.msra.mxu0 %v3756
  %4309 = vmatprep.subr.mxu0 0.0
  %4310 = vmatpush1.msra.mxu0 %v3757
  %4311 = vmatprep.subr.mxu0 0.0
  %4312 = vmatpush1.msra.mxu0 %v3758
  %4313 = vmatprep.subr.mxu0 0.0
  %4314 = vmatpush1.msra.mxu0 %v3759
  %4315 = vmatprep.subr.mxu0 0.0
  %4316 = vmatpush1.msra.mxu0 %v3760
  %4317 = vmatprep.subr.mxu0 0.0
  %4318 = vmatpush1.msra.mxu0 0.0
  %4319 = vmatprep.subr.mxu0 0.0
  %4320 = vmatpush1.msra.mxu0 0.0
  %4321 = vmatprep.subr.mxu0 0.0
  %4322 = vmatpush1.msra.mxu0 0.0
  %4323 = vmatprep.subr.mxu0 0.0
  %4324 = vmatpush1.msra.mxu0 0.0
  %4325 = vmatprep.subr.mxu0 0.0
  %4326 = vmatpush1.msra.mxu0 0.0
  %4327 = vmatprep.subr.mxu0 0.0
  %4328 = vmatpush1.msra.mxu0 0.0
  %4329 = vmatprep.subr.mxu0 0.0
  %4330 = vmatpush1.msra.mxu0 0.0
  %4331 = vmatprep.subr.mxu0 0.0
  %4332 = vmatpush1.msra.mxu0 0.0
  %4333 = vmatprep.subr.mxu0 0.0
  %4334 = vmatpush1.msra.mxu0 0.0
  %4335 = vmatprep.subr.mxu0 0.0
  %4336 = vmatpush1.msra.mxu0 0.0
  %4337 = vmatprep.subr.mxu0 0.0
  %4338 = vmatpush1.msra.mxu0 0.0
  %4339 = vmatprep.subr.mxu0 0.0
  %4340 = vmatpush1.msra.mxu0 0.0
  %4341 = vmatprep.subr.mxu0 0.0
  %4342 = vmatpush1.msra.mxu0 0.0
  %4343 = vmatprep.subr.mxu0 0.0
  %4344 = vmatpush1.msra.mxu0 0.0
  %4345 = vmatprep.subr.mxu0 0.0
  %4346 = vmatpush1.msra.mxu0 0.0
  %4347 = vmatprep.subr.mxu0 0.0
  %4348 = vmatpush1.msra.mxu0 0.0
  %4349 = vmatprep.mubr.f32.mxu0 0.0
  %4350 = vmatmul.mubr.f32.gmra.mrb[0].mxu0 %v4278
  %v4351 = vpop.f32.mrb[0].mxu0
  %v4352 = vadd.f32 0.0, %v4351
  %v4353 = vpop.f32.mrb[0].mxu0
  %4354 = vmatprep.mubr.f32.mxu0 0.0
  %4355 = vmatmul.mubr.f32.gmra.mrb[0].mxu0 %v4279
  %v4356 = vpop.f32.mrb[0].mxu0
  %v4357 = vadd.f32 0.0, %v4356
  %v4358 = vpop.f32.mrb[0].mxu0
  %4359 = vmatprep.mubr.f32.mxu0 0.0
  %4360 = vmatmul.mubr.f32.gmra.mrb[0].mxu0 %v4280
  %v4361 = vpop.f32.mrb[0].mxu0
  %v4362 = vadd.f32 0.0, %v4361
  %v4363 = vpop.f32.mrb[0].mxu0
  %4364 = vmatprep.mubr.f32.mxu0 0.0
  %4365 = vmatmul.mubr.f32.gmra.mrb[0].mxu0 %v4281
  %v4366 = vpop.f32.mrb[0].mxu0
  %v4367 = vadd.f32 0.0, %v4366
  %v4368 = vpop.f32.mrb[0].mxu0
  %4369 = vmatprep.mubr.f32.mxu0 0.0
  %4370 = vmatmul.mubr.f32.gmra.mrb[0].mxu0 %v4282
  %v4371 = vpop.f32.mrb[0].mxu0
  %v4372 = vadd.f32 0.0, %v4371
  %v4373 = vpop.f32.mrb[0].mxu0
  %4374 = vmatprep.mubr.f32.mxu0 0.0
  %4375 = vmatmul.mubr.f32.gmra.mrb[0].mxu0 %v4283
  %v4376 = vpop.f32.mrb[0].mxu0
  %v4377 = vadd.f32 0.0, %v4376
  %v4378 = vpop.f32.mrb[0].mxu0
  %4379 = vmatprep.mubr.f32.mxu0 0.0
  %4380 = vmatmul.mubr.f32.gmra.mrb[0].mxu0 %v4284
  %v4381 = vpop.f32.mrb[0].mxu0
  %v4382 = vadd.f32 0.0, %v4381
  %v4383 = vpop.f32.mrb[0].mxu0
  %4384 = vdwg.mxu0
  %v4385 = vld [vmem:[%s1 + $0x70] sm:$0xff]
  %v4386 = vld [vmem:[%s1 + $0x78] sm:$0xff]
  %v4388 = vsel %vm1835, %v4352, 0
  %v4391 = vsel %vm1835, %v4357, 0
  %v4394 = vsel %vm1835, %v4362, 0
  %v4397 = vsel %vm1835, %v4367, 0
  %v4400 = vsel %vm1835, %v4372, 0
  %v4403 = vsel %vm1835, %v4377, 0
  %v4406 = vsel %vm1835, %v4382, 0
  %4408 = vmatprep.subr.mxu0 0.0
  %4409 = vmatpush1.msra.mxu0 %v4385
  %4410 = vmatprep.subr.mxu0 0.0
  %4411 = vmatpush1.msra.mxu0 %v4386
  %4412 = vmatprep.subr.mxu0 0.0
  %4413 = vmatpush1.msra.mxu0 0.0
  %4414 = vmatprep.subr.mxu0 0.0
  %4415 = vmatpush1.msra.mxu0 0.0
  %4416 = vmatprep.subr.mxu0 0.0
  %4417 = vmatpush1.msra.mxu0 0.0
  %4418 = vmatprep.subr.mxu0 0.0
  %4419 = vmatpush1.msra.mxu0 0.0
  %4420 = vmatprep.subr.mxu0 0.0
  %4421 = vmatpush1.msra.mxu0 0.0
  %4422 = vmatprep.subr.mxu0 0.0
  %4423 = vmatpush1.msra.mxu0 0.0
  %4424 = vmatprep.subr.mxu0 0.0
  %4425 = vmatpush1.msra.mxu0 0.0
  %4426 = vmatprep.subr.mxu0 0.0
  %4427 = vmatpush1.msra.mxu0 0.0
  %4428 = vmatprep.subr.mxu0 0.0
  %4429 = vmatpush1.msra.mxu0 0.0
  %4430 = vmatprep.subr.mxu0 0.0
  %4431 = vmatpush1.msra.mxu0 0.0
  %4432 = vmatprep.subr.mxu0 0.0
  %4433 = vmatpush1.msra.mxu0 0.0
  %4434 = vmatprep.subr.mxu0 0.0
  %4435 = vmatpush1.msra.mxu0 0.0
  %4436 = vmatprep.subr.mxu0 0.0
  %4437 = vmatpush1.msra.mxu0 0.0
  %4438 = vmatprep.subr.mxu0 0.0
  %4439 = vmatpush1.msra.mxu0 0.0
  %4440 = vmatprep.subr.mxu0 0.0
  %4441 = vmatpush1.msra.mxu0 0.0
  %4442 = vmatprep.subr.mxu0 0.0
  %4443 = vmatpush1.msra.mxu0 0.0
  %4444 = vmatprep.subr.mxu0 0.0
  %4445 = vmatpush1.msra.mxu0 0.0
  %4446 = vmatprep.subr.mxu0 0.0
  %4447 = vmatpush1.msra.mxu0 0.0
  %4448 = vmatprep.subr.mxu0 0.0
  %4449 = vmatpush1.msra.mxu0 0.0
  %4450 = vmatprep.subr.mxu0 0.0
  %4451 = vmatpush1.msra.mxu0 0.0
  %4452 = vmatprep.subr.mxu0 0.0
  %4453 = vmatpush1.msra.mxu0 0.0
  %4454 = vmatprep.subr.mxu0 0.0
  %4455 = vmatpush1.msra.mxu0 0.0
  %4456 = vmatprep.subr.mxu0 0.0
  %4457 = vmatpush1.msra.mxu0 0.0
  %4458 = vmatprep.subr.mxu0 0.0
  %4459 = vmatpush1.msra.mxu0 0.0
  %4460 = vmatprep.subr.mxu0 0.0
  %4461 = vmatpush1.msra.mxu0 0.0
  %4462 = vmatprep.subr.mxu0 0.0
  %4463 = vmatpush1.msra.mxu0 0.0
  %4464 = vmatprep.subr.mxu0 0.0
  %4465 = vmatpush1.msra.mxu0 0.0
  %4466 = vmatprep.subr.mxu0 0.0
  %4467 = vmatpush1.msra.mxu0 0.0
  %4468 = vmatprep.subr.mxu0 0.0
  %4469 = vmatpush1.msra.mxu0 0.0
  %4470 = vmatprep.subr.mxu0 0.0
  %4471 = vmatpush1.msra.mxu0 0.0
  %4472 = vmatprep.mubr.f32.mxu0 0.0
  %4473 = vmatmul.mubr.f32.gmra.mrb[0].mxu0 %v4388
  %v4474 = vpop.f32.mrb[0].mxu0
  %v4475 = vadd.f32 0.0, %v4474
  %v4476 = vpop.f32.mrb[0].mxu0
  %4477 = vmatprep.mubr.f32.mxu0 0.0
  %4478 = vmatmul.mubr.f32.gmra.mrb[0].mxu0 %v4391
  %v4479 = vpop.f32.mrb[0].mxu0
  %v4480 = vadd.f32 0.0, %v4479
  %v4481 = vpop.f32.mrb[0].mxu0
  %4482 = vmatprep.mubr.f32.mxu0 0.0
  %4483 = vmatmul.mubr.f32.gmra.mrb[0].mxu0 %v4394
  %v4484 = vpop.f32.mrb[0].mxu0
  %v4485 = vadd.f32 0.0, %v4484
  %v4486 = vpop.f32.mrb[0].mxu0
  %4487 = vmatprep.mubr.f32.mxu0 0.0
  %4488 = vmatmul.mubr.f32.gmra.mrb[0].mxu0 %v4397
  %v4489 = vpop.f32.mrb[0].mxu0
  %v4490 = vadd.f32 0.0, %v4489
  %v4491 = vpop.f32.mrb[0].mxu0
  %4492 = vmatprep.mubr.f32.mxu0 0.0
  %4493 = vmatmul.mubr.f32.gmra.mrb[0].mxu0 %v4400
  %v4494 = vpop.f32.mrb[0].mxu0
  %v4495 = vadd.f32 0.0, %v4494
  %v4496 = vpop.f32.mrb[0].mxu0
  %4497 = vmatprep.mubr.f32.mxu0 0.0
  %4498 = vmatmul.mubr.f32.gmra.mrb[0].mxu0 %v4403
  %v4499 = vpop.f32.mrb[0].mxu0
  %v4500 = vadd.f32 0.0, %v4499
  %v4501 = vpop.f32.mrb[0].mxu0
  %4502 = vmatprep.mubr.f32.mxu0 0.0
  %4503 = vmatmul.mubr.f32.gmra.mrb[0].mxu0 %v4406
  %v4504 = vpop.f32.mrb[0].mxu0
  %v4505 = vadd.f32 0.0, %v4504
  %v4506 = vpop.f32.mrb[0].mxu0
  %4507 = vdwg.mxu0
  %v4508 = vadd.f32 %v4226, %v4475
  %v4509 = vadd.f32 %v4231, %v4480
  %v4510 = vadd.f32 %v4236, %v4485
  %v4511 = vadd.f32 %v4241, %v4490
  %v4512 = vadd.f32 %v4246, %v4495
  %v4513 = vadd.f32 %v4251, %v4500
  %v4514 = vadd.f32 %v4256, %v4505
  %v4515 = vld [vmem:[%s2 + $0x13] sm:$0x1]
  %v4516 = vlaneseq
  %v4517 = vshrl.u32 %v4516, 7
  %v4518 = vsub.s32 0, %v4517
  %v4519 = vrot.slane %v4515, %v4518
  %vm4520 = vcmp.eq.s32.totalorder %v719, %v4519
  %vm4521 = vcmp.eq.s32.totalorder %v720, %v4519
  %vm4522 = vcmp.eq.s32.totalorder %v721, %v4519
  %vm4523 = vcmp.eq.s32.totalorder %v722, %v4519
  %vm4524 = vcmp.eq.s32.totalorder %v723, %v4519
  %vm4525 = vcmp.eq.s32.totalorder %v724, %v4519
  %vm4526 = vcmp.eq.s32.totalorder %v725, %v4519
  %v4527 = vsel %vm4520, 1, 0
  %v4528 = vsel %vm4521, 1, 0
  %v4529 = vsel %vm4522, 1, 0
  %v4530 = vsel %vm4523, 1, 0
  %v4531 = vsel %vm4524, 1, 0
  %v4532 = vsel %vm4525, 1, 0
  %v4533 = vsel %vm4526, 1, 0
  %v4534 = vcvt.s32.f32 %v4527
  %v4535 = vcvt.s32.f32 %v4528
  %v4536 = vcvt.s32.f32 %v4529
  %v4537 = vcvt.s32.f32 %v4530
  %v4538 = vcvt.s32.f32 %v4531
  %v4539 = vcvt.s32.f32 %v4532
  %v4540 = vcvt.s32.f32 %v4533
  %4541 = vmatprep.subr.mxu0 0.0
  %4542 = vmatpush1.msra.mxu0 %v3745
  %4543 = vmatprep.subr.mxu0 0.0
  %4544 = vmatpush1.msra.mxu0 %v3746
  %4545 = vmatprep.subr.mxu0 0.0
  %4546 = vmatpush1.msra.mxu0 %v3747
  %4547 = vmatprep.subr.mxu0 0.0
  %4548 = vmatpush1.msra.mxu0 %v3748
  %4549 = vmatprep.subr.mxu0 0.0
  %4550 = vmatpush1.msra.mxu0 %v3749
  %4551 = vmatprep.subr.mxu0 0.0
  %4552 = vmatpush1.msra.mxu0 %v3750
  %4553 = vmatprep.subr.mxu0 0.0
  %4554 = vmatpush1.msra.mxu0 %v3751
  %4555 = vmatprep.subr.mxu0 0.0
  %4556 = vmatpush1.msra.mxu0 %v3752
  %4557 = vmatprep.subr.mxu0 0.0
  %4558 = vmatpush1.msra.mxu0 %v3753
  %4559 = vmatprep.subr.mxu0 0.0
  %4560 = vmatpush1.msra.mxu0 %v3754
  %4561 = vmatprep.subr.mxu0 0.0
  %4562 = vmatpush1.msra.mxu0 %v3755
  %4563 = vmatprep.subr.mxu0 0.0
  %4564 = vmatpush1.msra.mxu0 %v3756
  %4565 = vmatprep.subr.mxu0 0.0
  %4566 = vmatpush1.msra.mxu0 %v3757
  %4567 = vmatprep.subr.mxu0 0.0
  %4568 = vmatpush1.msra.mxu0 %v3758
  %4569 = vmatprep.subr.mxu0 0.0
  %4570 = vmatpush1.msra.mxu0 %v3759
  %4571 = vmatprep.subr.mxu0 0.0
  %4572 = vmatpush1.msra.mxu0 %v3760
  %4573 = vmatprep.subr.mxu0 0.0
  %4574 = vmatpush1.msra.mxu0 0.0
  %4575 = vmatprep.subr.mxu0 0.0
  %4576 = vmatpush1.msra.mxu0 0.0
  %4577 = vmatprep.subr.mxu0 0.0
  %4578 = vmatpush1.msra.mxu0 0.0
  %4579 = vmatprep.subr.mxu0 0.0
  %4580 = vmatpush1.msra.mxu0 0.0
  %4581 = vmatprep.subr.mxu0 0.0
  %4582 = vmatpush1.msra.mxu0 0.0
  %4583 = vmatprep.subr.mxu0 0.0
  %4584 = vmatpush1.msra.mxu0 0.0
  %4585 = vmatprep.subr.mxu0 0.0
  %4586 = vmatpush1.msra.mxu0 0.0
  %4587 = vmatprep.subr.mxu0 0.0
  %4588 = vmatpush1.msra.mxu0 0.0
  %4589 = vmatprep.subr.mxu0 0.0
  %4590 = vmatpush1.msra.mxu0 0.0
  %4591 = vmatprep.subr.mxu0 0.0
  %4592 = vmatpush1.msra.mxu0 0.0
  %4593 = vmatprep.subr.mxu0 0.0
  %4594 = vmatpush1.msra.mxu0 0.0
  %4595 = vmatprep.subr.mxu0 0.0
  %4596 = vmatpush1.msra.mxu0 0.0
  %4597 = vmatprep.subr.mxu0 0.0
  %4598 = vmatpush1.msra.mxu0 0.0
  %4599 = vmatprep.subr.mxu0 0.0
  %4600 = vmatpush1.msra.mxu0 0.0
  %4601 = vmatprep.subr.mxu0 0.0
  %4602 = vmatpush1.msra.mxu0 0.0
  %4603 = vmatprep.subr.mxu0 0.0
  %4604 = vmatpush1.msra.mxu0 0.0
  %4605 = vmatprep.mubr.f32.mxu0 0.0
  %4606 = vmatmul.mubr.f32.gmra.mrb[0].mxu0 %v4534
  %v4607 = vpop.f32.mrb[0].mxu0
  %v4608 = vadd.f32 0.0, %v4607
  %v4609 = vpop.f32.mrb[0].mxu0
  %4610 = vmatprep.mubr.f32.mxu0 0.0
  %4611 = vmatmul.mubr.f32.gmra.mrb[0].mxu0 %v4535
  %v4612 = vpop.f32.mrb[0].mxu0
  %v4613 = vadd.f32 0.0, %v4612
  %v4614 = vpop.f32.mrb[0].mxu0
  %4615 = vmatprep.mubr.f32.mxu0 0.0
  %4616 = vmatmul.mubr.f32.gmra.mrb[0].mxu0 %v4536
  %v4617 = vpop.f32.mrb[0].mxu0
  %v4618 = vadd.f32 0.0, %v4617
  %v4619 = vpop.f32.mrb[0].mxu0
  %4620 = vmatprep.mubr.f32.mxu0 0.0
  %4621 = vmatmul.mubr.f32.gmra.mrb[0].mxu0 %v4537
  %v4622 = vpop.f32.mrb[0].mxu0
  %v4623 = vadd.f32 0.0, %v4622
  %v4624 = vpop.f32.mrb[0].mxu0
  %4625 = vmatprep.mubr.f32.mxu0 0.0
  %4626 = vmatmul.mubr.f32.gmra.mrb[0].mxu0 %v4538
  %v4627 = vpop.f32.mrb[0].mxu0
  %v4628 = vadd.f32 0.0, %v4627
  %v4629 = vpop.f32.mrb[0].mxu0
  %4630 = vmatprep.mubr.f32.mxu0 0.0
  %4631 = vmatmul.mubr.f32.gmra.mrb[0].mxu0 %v4539
  %v4632 = vpop.f32.mrb[0].mxu0
  %v4633 = vadd.f32 0.0, %v4632
  %v4634 = vpop.f32.mrb[0].mxu0
  %4635 = vmatprep.mubr.f32.mxu0 0.0
  %4636 = vmatmul.mubr.f32.gmra.mrb[0].mxu0 %v4540
  %v4637 = vpop.f32.mrb[0].mxu0
  %v4638 = vadd.f32 0.0, %v4637
  %v4639 = vpop.f32.mrb[0].mxu0
  %4640 = vdwg.mxu0
  %v4641 = vld [vmem:[%s1 + $0x80] sm:$0xff]
  %v4642 = vld [vmem:[%s1 + $0x88] sm:$0xff]
  %v4644 = vsel %vm1835, %v4608, 0
  %v4647 = vsel %vm1835, %v4613, 0
  %v4650 = vsel %vm1835, %v4618, 0
  %v4653 = vsel %vm1835, %v4623, 0
  %v4656 = vsel %vm1835, %v4628, 0
  %v4659 = vsel %vm1835, %v4633, 0
  %v4662 = vsel %vm1835, %v4638, 0
  %4664 = vmatprep.subr.mxu0 0.0
  %4665 = vmatpush1.msra.mxu0 %v4641
  %4666 = vmatprep.subr.mxu0 0.0
  %4667 = vmatpush1.msra.mxu0 %v4642
  %4668 = vmatprep.subr.mxu0 0.0
  %4669 = vmatpush1.msra.mxu0 0.0
  %4670 = vmatprep.subr.mxu0 0.0
  %4671 = vmatpush1.msra.mxu0 0.0
  %4672 = vmatprep.subr.mxu0 0.0
  %4673 = vmatpush1.msra.mxu0 0.0
  %4674 = vmatprep.subr.mxu0 0.0
  %4675 = vmatpush1.msra.mxu0 0.0
  %4676 = vmatprep.subr.mxu0 0.0
  %4677 = vmatpush1.msra.mxu0 0.0
  %4678 = vmatprep.subr.mxu0 0.0
  %4679 = vmatpush1.msra.mxu0 0.0
  %4680 = vmatprep.subr.mxu0 0.0
  %4681 = vmatpush1.msra.mxu0 0.0
  %4682 = vmatprep.subr.mxu0 0.0
  %4683 = vmatpush1.msra.mxu0 0.0
  %4684 = vmatprep.subr.mxu0 0.0
  %4685 = vmatpush1.msra.mxu0 0.0
  %4686 = vmatprep.subr.mxu0 0.0
  %4687 = vmatpush1.msra.mxu0 0.0
  %4688 = vmatprep.subr.mxu0 0.0
  %4689 = vmatpush1.msra.mxu0 0.0
  %4690 = vmatprep.subr.mxu0 0.0
  %4691 = vmatpush1.msra.mxu0 0.0
  %4692 = vmatprep.subr.mxu0 0.0
  %4693 = vmatpush1.msra.mxu0 0.0
  %4694 = vmatprep.subr.mxu0 0.0
  %4695 = vmatpush1.msra.mxu0 0.0
  %4696 = vmatprep.subr.mxu0 0.0
  %4697 = vmatpush1.msra.mxu0 0.0
  %4698 = vmatprep.subr.mxu0 0.0
  %4699 = vmatpush1.msra.mxu0 0.0
  %4700 = vmatprep.subr.mxu0 0.0
  %4701 = vmatpush1.msra.mxu0 0.0
  %4702 = vmatprep.subr.mxu0 0.0
  %4703 = vmatpush1.msra.mxu0 0.0
  %4704 = vmatprep.subr.mxu0 0.0
  %4705 = vmatpush1.msra.mxu0 0.0
  %4706 = vmatprep.subr.mxu0 0.0
  %4707 = vmatpush1.msra.mxu0 0.0
  %4708 = vmatprep.subr.mxu0 0.0
  %4709 = vmatpush1.msra.mxu0 0.0
  %4710 = vmatprep.subr.mxu0 0.0
  %4711 = vmatpush1.msra.mxu0 0.0
  %4712 = vmatprep.subr.mxu0 0.0
  %4713 = vmatpush1.msra.mxu0 0.0
  %4714 = vmatprep.subr.mxu0 0.0
  %4715 = vmatpush1.msra.mxu0 0.0
  %4716 = vmatprep.subr.mxu0 0.0
  %4717 = vmatpush1.msra.mxu0 0.0
  %4718 = vmatprep.subr.mxu0 0.0
  %4719 = vmatpush1.msra.mxu0 0.0
  %4720 = vmatprep.subr.mxu0 0.0
  %4721 = vmatpush1.msra.mxu0 0.0
  %4722 = vmatprep.subr.mxu0 0.0
  %4723 = vmatpush1.msra.mxu0 0.0
  %4724 = vmatprep.subr.mxu0 0.0
  %4725 = vmatpush1.msra.mxu0 0.0
  %4726 = vmatprep.subr.mxu0 0.0
  %4727 = vmatpush1.msra.mxu0 0.0
  %4728 = vmatprep.mubr.f32.mxu0 0.0
  %4729 = vmatmul.mubr.f32.gmra.mrb[0].mxu0 %v4644
  %v4730 = vpop.f32.mrb[0].mxu0
  %v4731 = vadd.f32 0.0, %v4730
  %v4732 = vpop.f32.mrb[0].mxu0
  %4733 = vmatprep.mubr.f32.mxu0 0.0
  %4734 = vmatmul.mubr.f32.gmra.mrb[0].mxu0 %v4647
  %v4735 = vpop.f32.mrb[0].mxu0
  %v4736 = vadd.f32 0.0, %v4735
  %v4737 = vpop.f32.mrb[0].mxu0
  %4738 = vmatprep.mubr.f32.mxu0 0.0
  %4739 = vmatmul.mubr.f32.gmra.mrb[0].mxu0 %v4650
  %v4740 = vpop.f32.mrb[0].mxu0
  %v4741 = vadd.f32 0.0, %v4740
  %v4742 = vpop.f32.mrb[0].mxu0
  %4743 = vmatprep.mubr.f32.mxu0 0.0
  %4744 = vmatmul.mubr.f32.gmra.mrb[0].mxu0 %v4653
  %v4745 = vpop.f32.mrb[0].mxu0
  %v4746 = vadd.f32 0.0, %v4745
  %v4747 = vpop.f32.mrb[0].mxu0
  %4748 = vmatprep.mubr.f32.mxu0 0.0
  %4749 = vmatmul.mubr.f32.gmra.mrb[0].mxu0 %v4656
  %v4750 = vpop.f32.mrb[0].mxu0
  %v4751 = vadd.f32 0.0, %v4750
  %v4752 = vpop.f32.mrb[0].mxu0
  %4753 = vmatprep.mubr.f32.mxu0 0.0
  %4754 = vmatmul.mubr.f32.gmra.mrb[0].mxu0 %v4659
  %v4755 = vpop.f32.mrb[0].mxu0
  %v4756 = vadd.f32 0.0, %v4755
  %v4757 = vpop.f32.mrb[0].mxu0
  %4758 = vmatprep.mubr.f32.mxu0 0.0
  %4759 = vmatmul.mubr.f32.gmra.mrb[0].mxu0 %v4662
  %v4760 = vpop.f32.mrb[0].mxu0
  %v4761 = vadd.f32 0.0, %v4760
  %v4762 = vpop.f32.mrb[0].mxu0
  %4763 = vdwg.mxu0
  %v4764 = vadd.f32 %v4508, %v4731
  %v4765 = vadd.f32 %v4509, %v4736
  %v4766 = vadd.f32 %v4510, %v4741
  %v4767 = vadd.f32 %v4511, %v4746
  %v4768 = vadd.f32 %v4512, %v4751
  %v4769 = vadd.f32 %v4513, %v4756
  %v4770 = vadd.f32 %v4514, %v4761
  %v4771 = vld [vmem:[%s1 + $0xe] sm:$0x1]
  %v4772 = vlaneseq
  %v4773 = vshrl.u32 %v4772, 7
  %v4774 = vsub.s32 0, %v4773
  %v4775 = vrot.slane %v4771, %v4774
  %v4776 = vadd.f32 %v4764, %v4775
  %v4777 = vadd.f32 %v4765, %v4775
  %v4778 = vadd.f32 %v4766, %v4775
  %v4779 = vadd.f32 %v4767, %v4775
  %v4780 = vadd.f32 %v4768, %v4775
  %v4781 = vadd.f32 %v4769, %v4775
  %v4782 = vadd.f32 %v4770, %v4775
  %v4783 = vld [vmem:[%s2 + $0x14] sm:$0x1]
  %v4784 = vlaneseq
  %v4785 = vshrl.u32 %v4784, 7
  %v4786 = vsub.s32 0, %v4785
  %v4787 = vrot.slane %v4783, %v4786
  %vm4788 = vcmp.eq.s32.totalorder %v719, %v4787
  %vm4789 = vcmp.eq.s32.totalorder %v720, %v4787
  %vm4790 = vcmp.eq.s32.totalorder %v721, %v4787
  %v4791 = vsel %vm4788, 1, 0
  %v4792 = vsel %vm4789, 1, 0
  %v4793 = vsel %vm4790, 1, 0
  %v4794 = vcvt.s32.f32 %v4791
  %v4795 = vcvt.s32.f32 %v4792
  %v4796 = vcvt.s32.f32 %v4793
  %vm4797 = vcmask 457728
  %v4799 = vsel %vm4797, %v4794, 0
  %v4802 = vsel %vm4797, %v4795, 0
  %v4805 = vsel %vm4797, %v4796, 0
  %4807 = vmatprep.subr.mxu0 0.0
  %4808 = vmatpush1.msra.mxu0 %v4776
  %4809 = vmatprep.subr.mxu0 0.0
  %4810 = vmatpush1.msra.mxu0 %v4777
  %4811 = vmatprep.subr.mxu0 0.0
  %4812 = vmatpush1.msra.mxu0 %v4778
  %4813 = vmatprep.subr.mxu0 0.0
  %4814 = vmatpush1.msra.mxu0 %v4779
  %4815 = vmatprep.subr.mxu0 0.0
  %4816 = vmatpush1.msra.mxu0 %v4780
  %4817 = vmatprep.subr.mxu0 0.0
  %4818 = vmatpush1.msra.mxu0 %v4781
  %4819 = vmatprep.subr.mxu0 0.0
  %4820 = vmatpush1.msra.mxu0 %v4782
  %4821 = vmatprep.subr.mxu0 0.0
  %4822 = vmatpush1.msra.mxu0 0.0
  %4823 = vmatprep.subr.mxu0 0.0
  %4824 = vmatpush1.msra.mxu0 0.0
  %4825 = vmatprep.subr.mxu0 0.0
  %4826 = vmatpush1.msra.mxu0 0.0
  %4827 = vmatprep.subr.mxu0 0.0
  %4828 = vmatpush1.msra.mxu0 0.0
  %4829 = vmatprep.subr.mxu0 0.0
  %4830 = vmatpush1.msra.mxu0 0.0
  %4831 = vmatprep.subr.mxu0 0.0
  %4832 = vmatpush1.msra.mxu0 0.0
  %4833 = vmatprep.subr.mxu0 0.0
  %4834 = vmatpush1.msra.mxu0 0.0
  %4835 = vmatprep.subr.mxu0 0.0
  %4836 = vmatpush1.msra.mxu0 0.0
  %4837 = vmatprep.subr.mxu0 0.0
  %4838 = vmatpush1.msra.mxu0 0.0
  %4839 = vmatprep.subr.mxu0 0.0
  %4840 = vmatpush1.msra.mxu0 0.0
  %4841 = vmatprep.subr.mxu0 0.0
  %4842 = vmatpush1.msra.mxu0 0.0
  %4843 = vmatprep.subr.mxu0 0.0
  %4844 = vmatpush1.msra.mxu0 0.0
  %4845 = vmatprep.subr.mxu0 0.0
  %4846 = vmatpush1.msra.mxu0 0.0
  %4847 = vmatprep.subr.mxu0 0.0
  %4848 = vmatpush1.msra.mxu0 0.0
  %4849 = vmatprep.subr.mxu0 0.0
  %4850 = vmatpush1.msra.mxu0 0.0
  %4851 = vmatprep.subr.mxu0 0.0
  %4852 = vmatpush1.msra.mxu0 0.0
  %4853 = vmatprep.subr.mxu0 0.0
  %4854 = vmatpush1.msra.mxu0 0.0
  %4855 = vmatprep.subr.mxu0 0.0
  %4856 = vmatpush1.msra.mxu0 0.0
  %4857 = vmatprep.subr.mxu0 0.0
  %4858 = vmatpush1.msra.mxu0 0.0
  %4859 = vmatprep.subr.mxu0 0.0
  %4860 = vmatpush1.msra.mxu0 0.0
  %4861 = vmatprep.subr.mxu0 0.0
  %4862 = vmatpush1.msra.mxu0 0.0
  %4863 = vmatprep.subr.mxu0 0.0
  %4864 = vmatpush1.msra.mxu0 0.0
  %4865 = vmatprep.subr.mxu0 0.0
  %4866 = vmatpush1.msra.mxu0 0.0
  %4867 = vmatprep.subr.mxu0 0.0
  %4868 = vmatpush1.msra.mxu0 0.0
  %4869 = vmatprep.subr.mxu0 0.0
  %4870 = vmatpush1.msra.mxu0 0.0
  %4871 = vmatprep.mubr.f32.mxu0 0.0
  %4872 = vmatmul.mubr.f32.gmra.mrb[0].mxu0 %v4799
  %v4873 = vpop.f32.mrb[0].mxu0
  %v4874 = vadd.f32 0.0, %v4873
  %v4875 = vpop.f32.mrb[0].mxu0
  %4876 = vmatprep.mubr.f32.mxu0 0.0
  %4877 = vmatmul.mubr.f32.gmra.mrb[0].mxu0 %v4802
  %v4878 = vpop.f32.mrb[0].mxu0
  %v4879 = vadd.f32 0.0, %v4878
  %v4880 = vpop.f32.mrb[0].mxu0
  %4881 = vmatprep.mubr.f32.mxu0 0.0
  %4882 = vmatmul.mubr.f32.gmra.mrb[0].mxu0 %v4805
  %v4883 = vpop.f32.mrb[0].mxu0
  %v4884 = vadd.f32 0.0, %v4883
  %v4885 = vpop.f32.mrb[0].mxu0
  %4886 = vdwg.mxu0
  %v4887 = vld [vmem:[%s1 + $0x90] sm:$0xff]
  %v4888 = vld [vmem:[%s1 + $0x98] sm:$0xff]
  %v4889 = vld [vmem:[%s2 + $0x15] sm:$0x1]
  %v4890 = vlaneseq
  %v4891 = vshrl.u32 %v4890, 7
  %v4892 = vsub.s32 0, %v4891
  %v4893 = vrot.slane %v4889, %v4892
  %vm4894 = vcmp.eq.s32.totalorder %v719, %v4893
  %vm4895 = vcmp.eq.s32.totalorder %v720, %v4893
  %vm4896 = vcmp.eq.s32.totalorder %v721, %v4893
  %v4897 = vsel %vm4894, 1, 0
  %v4898 = vsel %vm4895, 1, 0
  %v4899 = vsel %vm4896, 1, 0
  %v4900 = vcvt.s32.f32 %v4897
  %v4901 = vcvt.s32.f32 %v4898
  %v4902 = vcvt.s32.f32 %v4899
  %v4904 = vsel %vm4797, %v4900, 0
  %v4907 = vsel %vm4797, %v4901, 0
  %v4910 = vsel %vm4797, %v4902, 0
  %4912 = vmatprep.subr.mxu0 0.0
  %4913 = vmatpush1.msra.mxu0 %v4776
  %4914 = vmatprep.subr.mxu0 0.0
  %4915 = vmatpush1.msra.mxu0 %v4777
  %4916 = vmatprep.subr.mxu0 0.0
  %4917 = vmatpush1.msra.mxu0 %v4778
  %4918 = vmatprep.subr.mxu0 0.0
  %4919 = vmatpush1.msra.mxu0 %v4779
  %4920 = vmatprep.subr.mxu0 0.0
  %4921 = vmatpush1.msra.mxu0 %v4780
  %4922 = vmatprep.subr.mxu0 0.0
  %4923 = vmatpush1.msra.mxu0 %v4781
  %4924 = vmatprep.subr.mxu0 0.0
  %4925 = vmatpush1.msra.mxu0 %v4782
  %4926 = vmatprep.subr.mxu0 0.0
  %4927 = vmatpush1.msra.mxu0 0.0
  %4928 = vmatprep.subr.mxu0 0.0
  %4929 = vmatpush1.msra.mxu0 0.0
  %4930 = vmatprep.subr.mxu0 0.0
  %4931 = vmatpush1.msra.mxu0 0.0
  %4932 = vmatprep.subr.mxu0 0.0
  %4933 = vmatpush1.msra.mxu0 0.0
  %4934 = vmatprep.subr.mxu0 0.0
  %4935 = vmatpush1.msra.mxu0 0.0
  %4936 = vmatprep.subr.mxu0 0.0
  %4937 = vmatpush1.msra.mxu0 0.0
  %4938 = vmatprep.subr.mxu0 0.0
  %4939 = vmatpush1.msra.mxu0 0.0
  %4940 = vmatprep.subr.mxu0 0.0
  %4941 = vmatpush1.msra.mxu0 0.0
  %4942 = vmatprep.subr.mxu0 0.0
  %4943 = vmatpush1.msra.mxu0 0.0
  %4944 = vmatprep.subr.mxu0 0.0
  %4945 = vmatpush1.msra.mxu0 0.0
  %4946 = vmatprep.subr.mxu0 0.0
  %4947 = vmatpush1.msra.mxu0 0.0
  %4948 = vmatprep.subr.mxu0 0.0
  %4949 = vmatpush1.msra.mxu0 0.0
  %4950 = vmatprep.subr.mxu0 0.0
  %4951 = vmatpush1.msra.mxu0 0.0
  %4952 = vmatprep.subr.mxu0 0.0
  %4953 = vmatpush1.msra.mxu0 0.0
  %4954 = vmatprep.subr.mxu0 0.0
  %4955 = vmatpush1.msra.mxu0 0.0
  %4956 = vmatprep.subr.mxu0 0.0
  %4957 = vmatpush1.msra.mxu0 0.0
  %4958 = vmatprep.subr.mxu0 0.0
  %4959 = vmatpush1.msra.mxu0 0.0
  %4960 = vmatprep.subr.mxu0 0.0
  %4961 = vmatpush1.msra.mxu0 0.0
  %4962 = vmatprep.subr.mxu0 0.0
  %4963 = vmatpush1.msra.mxu0 0.0
  %4964 = vmatprep.subr.mxu0 0.0
  %4965 = vmatpush1.msra.mxu0 0.0
  %4966 = vmatprep.subr.mxu0 0.0
  %4967 = vmatpush1.msra.mxu0 0.0
  %4968 = vmatprep.subr.mxu0 0.0
  %4969 = vmatpush1.msra.mxu0 0.0
  %4970 = vmatprep.subr.mxu0 0.0
  %4971 = vmatpush1.msra.mxu0 0.0
  %4972 = vmatprep.subr.mxu0 0.0
  %4973 = vmatpush1.msra.mxu0 0.0
  %4974 = vmatprep.subr.mxu0 0.0
  %4975 = vmatpush1.msra.mxu0 0.0
  %4976 = vmatprep.mubr.f32.mxu0 0.0
  %4977 = vmatmul.mubr.f32.gmra.mrb[0].mxu0 %v4904
  %v4978 = vpop.f32.mrb[0].mxu0
  %v4979 = vadd.f32 0.0, %v4978
  %v4980 = vpop.f32.mrb[0].mxu0
  %4981 = vmatprep.mubr.f32.mxu0 0.0
  %4982 = vmatmul.mubr.f32.gmra.mrb[0].mxu0 %v4907
  %v4983 = vpop.f32.mrb[0].mxu0
  %v4984 = vadd.f32 0.0, %v4983
  %v4985 = vpop.f32.mrb[0].mxu0
  %4986 = vmatprep.mubr.f32.mxu0 0.0
  %4987 = vmatmul.mubr.f32.gmra.mrb[0].mxu0 %v4910
  %v4988 = vpop.f32.mrb[0].mxu0
  %v4989 = vadd.f32 0.0, %v4988
  %v4990 = vpop.f32.mrb[0].mxu0
  %4991 = vdwg.mxu0
  %v4992 = vld [vmem:[%s1 + $0xa0] sm:$0xff]
  %v4993 = vld [vmem:[%s1 + $0xa8] sm:$0xff]
  %v4995 = vsel %vm1835, %v4979, 0
  %v4998 = vsel %vm1835, %v4984, 0
  %v5001 = vsel %vm1835, %v4989, 0
  %5003 = vmatprep.subr.mxu0 0.0
  %5004 = vmatpush1.msra.mxu0 %v4992
  %5005 = vmatprep.subr.mxu0 0.0
  %5006 = vmatpush1.msra.mxu0 %v4993
  %5007 = vmatprep.subr.mxu0 0.0
  %5008 = vmatpush1.msra.mxu0 0.0
  %5009 = vmatprep.subr.mxu0 0.0
  %5010 = vmatpush1.msra.mxu0 0.0
  %5011 = vmatprep.subr.mxu0 0.0
  %5012 = vmatpush1.msra.mxu0 0.0
  %5013 = vmatprep.subr.mxu0 0.0
  %5014 = vmatpush1.msra.mxu0 0.0
  %5015 = vmatprep.subr.mxu0 0.0
  %5016 = vmatpush1.msra.mxu0 0.0
  %5017 = vmatprep.subr.mxu0 0.0
  %5018 = vmatpush1.msra.mxu0 0.0
  %5019 = vmatprep.subr.mxu0 0.0
  %5020 = vmatpush1.msra.mxu0 0.0
  %5021 = vmatprep.subr.mxu0 0.0
  %5022 = vmatpush1.msra.mxu0 0.0
  %5023 = vmatprep.subr.mxu0 0.0
  %5024 = vmatpush1.msra.mxu0 0.0
  %5025 = vmatprep.subr.mxu0 0.0
  %5026 = vmatpush1.msra.mxu0 0.0
  %5027 = vmatprep.subr.mxu0 0.0
  %5028 = vmatpush1.msra.mxu0 0.0
  %5029 = vmatprep.subr.mxu0 0.0
  %5030 = vmatpush1.msra.mxu0 0.0
  %5031 = vmatprep.subr.mxu0 0.0
  %5032 = vmatpush1.msra.mxu0 0.0
  %5033 = vmatprep.subr.mxu0 0.0
  %5034 = vmatpush1.msra.mxu0 0.0
  %5035 = vmatprep.subr.mxu0 0.0
  %5036 = vmatpush1.msra.mxu0 0.0
  %5037 = vmatprep.subr.mxu0 0.0
  %5038 = vmatpush1.msra.mxu0 0.0
  %5039 = vmatprep.subr.mxu0 0.0
  %5040 = vmatpush1.msra.mxu0 0.0
  %5041 = vmatprep.subr.mxu0 0.0
  %5042 = vmatpush1.msra.mxu0 0.0
  %5043 = vmatprep.subr.mxu0 0.0
  %5044 = vmatpush1.msra.mxu0 0.0
  %5045 = vmatprep.subr.mxu0 0.0
  %5046 = vmatpush1.msra.mxu0 0.0
  %5047 = vmatprep.subr.mxu0 0.0
  %5048 = vmatpush1.msra.mxu0 0.0
  %5049 = vmatprep.subr.mxu0 0.0
  %5050 = vmatpush1.msra.mxu0 0.0
  %5051 = vmatprep.subr.mxu0 0.0
  %5052 = vmatpush1.msra.mxu0 0.0
  %5053 = vmatprep.subr.mxu0 0.0
  %5054 = vmatpush1.msra.mxu0 0.0
  %5055 = vmatprep.subr.mxu0 0.0
  %5056 = vmatpush1.msra.mxu0 0.0
  %5057 = vmatprep.subr.mxu0 0.0
  %5058 = vmatpush1.msra.mxu0 0.0
  %5059 = vmatprep.subr.mxu0 0.0
  %5060 = vmatpush1.msra.mxu0 0.0
  %5061 = vmatprep.subr.mxu0 0.0
  %5062 = vmatpush1.msra.mxu0 0.0
  %5063 = vmatprep.subr.mxu0 0.0
  %5064 = vmatpush1.msra.mxu0 0.0
  %5065 = vmatprep.subr.mxu0 0.0
  %5066 = vmatpush1.msra.mxu0 0.0
  %5067 = vmatprep.mubr.f32.mxu0 0.0
  %5068 = vmatmul.mubr.f32.gmra.mrb[0].mxu0 %v4995
  %v5069 = vpop.f32.mrb[0].mxu0
  %v5070 = vadd.f32 0.0, %v5069
  %v5071 = vpop.f32.mrb[0].mxu0
  %5072 = vmatprep.mubr.f32.mxu0 0.0
  %5073 = vmatmul.mubr.f32.gmra.mrb[0].mxu0 %v4998
  %v5074 = vpop.f32.mrb[0].mxu0
  %v5075 = vadd.f32 0.0, %v5074
  %v5076 = vpop.f32.mrb[0].mxu0
  %5077 = vmatprep.mubr.f32.mxu0 0.0
  %5078 = vmatmul.mubr.f32.gmra.mrb[0].mxu0 %v5001
  %v5079 = vpop.f32.mrb[0].mxu0
  %v5080 = vadd.f32 0.0, %v5079
  %v5081 = vpop.f32.mrb[0].mxu0
  %5082 = vdwg.mxu0
  %v5084 = vsel %vm1835, %v4874, 0
  %v5087 = vsel %vm1835, %v4879, 0
  %v5090 = vsel %vm1835, %v4884, 0
  %5092 = vmatprep.subr.mxu0 0.0
  %5093 = vmatpush1.msra.mxu0 %v4887
  %5094 = vmatprep.subr.mxu0 0.0
  %5095 = vmatpush1.msra.mxu0 %v4888
  %5096 = vmatprep.subr.mxu0 0.0
  %5097 = vmatpush1.msra.mxu0 0.0
  %5098 = vmatprep.subr.mxu0 0.0
  %5099 = vmatpush1.msra.mxu0 0.0
  %5100 = vmatprep.subr.mxu0 0.0
  %5101 = vmatpush1.msra.mxu0 0.0
  %5102 = vmatprep.subr.mxu0 0.0
  %5103 = vmatpush1.msra.mxu0 0.0
  %5104 = vmatprep.subr.mxu0 0.0
  %5105 = vmatpush1.msra.mxu0 0.0
  %5106 = vmatprep.subr.mxu0 0.0
  %5107 = vmatpush1.msra.mxu0 0.0
  %5108 = vmatprep.subr.mxu0 0.0
  %5109 = vmatpush1.msra.mxu0 0.0
  %5110 = vmatprep.subr.mxu0 0.0
  %5111 = vmatpush1.msra.mxu0 0.0
  %5112 = vmatprep.subr.mxu0 0.0
  %5113 = vmatpush1.msra.mxu0 0.0
  %5114 = vmatprep.subr.mxu0 0.0
  %5115 = vmatpush1.msra.mxu0 0.0
  %5116 = vmatprep.subr.mxu0 0.0
  %5117 = vmatpush1.msra.mxu0 0.0
  %5118 = vmatprep.subr.mxu0 0.0
  %5119 = vmatpush1.msra.mxu0 0.0
  %5120 = vmatprep.subr.mxu0 0.0
  %5121 = vmatpush1.msra.mxu0 0.0
  %5122 = vmatprep.subr.mxu0 0.0
  %5123 = vmatpush1.msra.mxu0 0.0
  %5124 = vmatprep.subr.mxu0 0.0
  %5125 = vmatpush1.msra.mxu0 0.0
  %5126 = vmatprep.subr.mxu0 0.0
  %5127 = vmatpush1.msra.mxu0 0.0
  %5128 = vmatprep.subr.mxu0 0.0
  %5129 = vmatpush1.msra.mxu0 0.0
  %5130 = vmatprep.subr.mxu0 0.0
  %5131 = vmatpush1.msra.mxu0 0.0
  %5132 = vmatprep.subr.mxu0 0.0
  %5133 = vmatpush1.msra.mxu0 0.0
  %5134 = vmatprep.subr.mxu0 0.0
  %5135 = vmatpush1.msra.mxu0 0.0
  %5136 = vmatprep.subr.mxu0 0.0
  %5137 = vmatpush1.msra.mxu0 0.0
  %5138 = vmatprep.subr.mxu0 0.0
  %5139 = vmatpush1.msra.mxu0 0.0
  %5140 = vmatprep.subr.mxu0 0.0
  %5141 = vmatpush1.msra.mxu0 0.0
  %5142 = vmatprep.subr.mxu0 0.0
  %5143 = vmatpush1.msra.mxu0 0.0
  %5144 = vmatprep.subr.mxu0 0.0
  %5145 = vmatpush1.msra.mxu0 0.0
  %5146 = vmatprep.subr.mxu0 0.0
  %5147 = vmatpush1.msra.mxu0 0.0
  %5148 = vmatprep.subr.mxu0 0.0
  %5149 = vmatpush1.msra.mxu0 0.0
  %5150 = vmatprep.subr.mxu0 0.0
  %5151 = vmatpush1.msra.mxu0 0.0
  %5152 = vmatprep.subr.mxu0 0.0
  %5153 = vmatpush1.msra.mxu0 0.0
  %5154 = vmatprep.subr.mxu0 0.0
  %5155 = vmatpush1.msra.mxu0 0.0
  %5156 = vmatprep.mubr.f32.mxu0 0.0
  %5157 = vmatmul.mubr.f32.gmra.mrb[0].mxu0 %v5084
  %v5158 = vpop.f32.mrb[0].mxu0
  %v5159 = vadd.f32 %v5070, %v5158
  %v5160 = vpop.f32.mrb[0].mxu0
  %5161 = vmatprep.mubr.f32.mxu0 0.0
  %5162 = vmatmul.mubr.f32.gmra.mrb[0].mxu0 %v5087
  %v5163 = vpop.f32.mrb[0].mxu0
  %v5164 = vadd.f32 %v5075, %v5163
  %v5165 = vpop.f32.mrb[0].mxu0
  %5166 = vmatprep.mubr.f32.mxu0 0.0
  %5167 = vmatmul.mubr.f32.gmra.mrb[0].mxu0 %v5090
  %v5168 = vpop.f32.mrb[0].mxu0
  %v5169 = vadd.f32 %v5080, %v5168
  %v5170 = vpop.f32.mrb[0].mxu0
  %5171 = vdwg.mxu0
  %v5172 = vld [vmem:[%s2 + $0x16] sm:$0x1]
  %v5173 = vlaneseq
  %v5174 = vshrl.u32 %v5173, 7
  %v5175 = vsub.s32 0, %v5174
  %v5176 = vrot.slane %v5172, %v5175
  %vm5177 = vcmp.eq.s32.totalorder %v719, %v5176
  %vm5178 = vcmp.eq.s32.totalorder %v720, %v5176
  %vm5179 = vcmp.eq.s32.totalorder %v721, %v5176
  %v5180 = vsel %vm5177, 1, 0
  %v5181 = vsel %vm5178, 1, 0
  %v5182 = vsel %vm5179, 1, 0
  %v5183 = vcvt.s32.f32 %v5180
  %v5184 = vcvt.s32.f32 %v5181
  %v5185 = vcvt.s32.f32 %v5182
  %v5187 = vsel %vm4797, %v5183, 0
  %v5190 = vsel %vm4797, %v5184, 0
  %v5193 = vsel %vm4797, %v5185, 0
  %5195 = vmatprep.subr.mxu0 0.0
  %5196 = vmatpush1.msra.mxu0 %v4776
  %5197 = vmatprep.subr.mxu0 0.0
  %5198 = vmatpush1.msra.mxu0 %v4777
  %5199 = vmatprep.subr.mxu0 0.0
  %5200 = vmatpush1.msra.mxu0 %v4778
  %5201 = vmatprep.subr.mxu0 0.0
  %5202 = vmatpush1.msra.mxu0 %v4779
  %5203 = vmatprep.subr.mxu0 0.0
  %5204 = vmatpush1.msra.mxu0 %v4780
  %5205 = vmatprep.subr.mxu0 0.0
  %5206 = vmatpush1.msra.mxu0 %v4781
  %5207 = vmatprep.subr.mxu0 0.0
  %5208 = vmatpush1.msra.mxu0 %v4782
  %5209 = vmatprep.subr.mxu0 0.0
  %5210 = vmatpush1.msra.mxu0 0.0
  %5211 = vmatprep.subr.mxu0 0.0
  %5212 = vmatpush1.msra.mxu0 0.0
  %5213 = vmatprep.subr.mxu0 0.0
  %5214 = vmatpush1.msra.mxu0 0.0
  %5215 = vmatprep.subr.mxu0 0.0
  %5216 = vmatpush1.msra.mxu0 0.0
  %5217 = vmatprep.subr.mxu0 0.0
  %5218 = vmatpush1.msra.mxu0 0.0
  %5219 = vmatprep.subr.mxu0 0.0
  %5220 = vmatpush1.msra.mxu0 0.0
  %5221 = vmatprep.subr.mxu0 0.0
  %5222 = vmatpush1.msra.mxu0 0.0
  %5223 = vmatprep.subr.mxu0 0.0
  %5224 = vmatpush1.msra.mxu0 0.0
  %5225 = vmatprep.subr.mxu0 0.0
  %5226 = vmatpush1.msra.mxu0 0.0
  %5227 = vmatprep.subr.mxu0 0.0
  %5228 = vmatpush1.msra.mxu0 0.0
  %5229 = vmatprep.subr.mxu0 0.0
  %5230 = vmatpush1.msra.mxu0 0.0
  %5231 = vmatprep.subr.mxu0 0.0
  %5232 = vmatpush1.msra.mxu0 0.0
  %5233 = vmatprep.subr.mxu0 0.0
  %5234 = vmatpush1.msra.mxu0 0.0
  %5235 = vmatprep.subr.mxu0 0.0
  %5236 = vmatpush1.msra.mxu0 0.0
  %5237 = vmatprep.subr.mxu0 0.0
  %5238 = vmatpush1.msra.mxu0 0.0
  %5239 = vmatprep.subr.mxu0 0.0
  %5240 = vmatpush1.msra.mxu0 0.0
  %5241 = vmatprep.subr.mxu0 0.0
  %5242 = vmatpush1.msra.mxu0 0.0
  %5243 = vmatprep.subr.mxu0 0.0
  %5244 = vmatpush1.msra.mxu0 0.0
  %5245 = vmatprep.subr.mxu0 0.0
  %5246 = vmatpush1.msra.mxu0 0.0
  %5247 = vmatprep.subr.mxu0 0.0
  %5248 = vmatpush1.msra.mxu0 0.0
  %5249 = vmatprep.subr.mxu0 0.0
  %5250 = vmatpush1.msra.mxu0 0.0
  %5251 = vmatprep.subr.mxu0 0.0
  %5252 = vmatpush1.msra.mxu0 0.0
  %5253 = vmatprep.subr.mxu0 0.0
  %5254 = vmatpush1.msra.mxu0 0.0
  %5255 = vmatprep.subr.mxu0 0.0
  %5256 = vmatpush1.msra.mxu0 0.0
  %5257 = vmatprep.subr.mxu0 0.0
  %5258 = vmatpush1.msra.mxu0 0.0
  %5259 = vmatprep.mubr.f32.mxu0 0.0
  %5260 = vmatmul.mubr.f32.gmra.mrb[0].mxu0 %v5187
  %v5261 = vpop.f32.mrb[0].mxu0
  %v5262 = vadd.f32 0.0, %v5261
  %v5263 = vpop.f32.mrb[0].mxu0
  %5264 = vmatprep.mubr.f32.mxu0 0.0
  %5265 = vmatmul.mubr.f32.gmra.mrb[0].mxu0 %v5190
  %v5266 = vpop.f32.mrb[0].mxu0
  %v5267 = vadd.f32 0.0, %v5266
  %v5268 = vpop.f32.mrb[0].mxu0
  %5269 = vmatprep.mubr.f32.mxu0 0.0
  %5270 = vmatmul.mubr.f32.gmra.mrb[0].mxu0 %v5193
  %v5271 = vpop.f32.mrb[0].mxu0
  %v5272 = vadd.f32 0.0, %v5271
  %v5273 = vpop.f32.mrb[0].mxu0
  %5274 = vdwg.mxu0
  %v5275 = vld [vmem:[%s1 + $0xb0] sm:$0xff]
  %v5276 = vld [vmem:[%s1 + $0xb8] sm:$0xff]
  %v5278 = vsel %vm1835, %v5262, 0
  %v5281 = vsel %vm1835, %v5267, 0
  %v5284 = vsel %vm1835, %v5272, 0
  %5286 = vmatprep.subr.mxu0 0.0
  %5287 = vmatpush1.msra.mxu0 %v5275
  %5288 = vmatprep.subr.mxu0 0.0
  %5289 = vmatpush1.msra.mxu0 %v5276
  %5290 = vmatprep.subr.mxu0 0.0
  %5291 = vmatpush1.msra.mxu0 0.0
  %5292 = vmatprep.subr.mxu0 0.0
  %5293 = vmatpush1.msra.mxu0 0.0
  %5294 = vmatprep.subr.mxu0 0.0
  %5295 = vmatpush1.msra.mxu0 0.0
  %5296 = vmatprep.subr.mxu0 0.0
  %5297 = vmatpush1.msra.mxu0 0.0
  %5298 = vmatprep.subr.mxu0 0.0
  %5299 = vmatpush1.msra.mxu0 0.0
  %5300 = vmatprep.subr.mxu0 0.0
  %5301 = vmatpush1.msra.mxu0 0.0
  %5302 = vmatprep.subr.mxu0 0.0
  %5303 = vmatpush1.msra.mxu0 0.0
  %5304 = vmatprep.subr.mxu0 0.0
  %5305 = vmatpush1.msra.mxu0 0.0
  %5306 = vmatprep.subr.mxu0 0.0
  %5307 = vmatpush1.msra.mxu0 0.0
  %5308 = vmatprep.subr.mxu0 0.0
  %5309 = vmatpush1.msra.mxu0 0.0
  %5310 = vmatprep.subr.mxu0 0.0
  %5311 = vmatpush1.msra.mxu0 0.0
  %5312 = vmatprep.subr.mxu0 0.0
  %5313 = vmatpush1.msra.mxu0 0.0
  %5314 = vmatprep.subr.mxu0 0.0
  %5315 = vmatpush1.msra.mxu0 0.0
  %5316 = vmatprep.subr.mxu0 0.0
  %5317 = vmatpush1.msra.mxu0 0.0
  %5318 = vmatprep.subr.mxu0 0.0
  %5319 = vmatpush1.msra.mxu0 0.0
  %5320 = vmatprep.subr.mxu0 0.0
  %5321 = vmatpush1.msra.mxu0 0.0
  %5322 = vmatprep.subr.mxu0 0.0
  %5323 = vmatpush1.msra.mxu0 0.0
  %5324 = vmatprep.subr.mxu0 0.0
  %5325 = vmatpush1.msra.mxu0 0.0
  %5326 = vmatprep.subr.mxu0 0.0
  %5327 = vmatpush1.msra.mxu0 0.0
  %5328 = vmatprep.subr.mxu0 0.0
  %5329 = vmatpush1.msra.mxu0 0.0
  %5330 = vmatprep.subr.mxu0 0.0
  %5331 = vmatpush1.msra.mxu0 0.0
  %5332 = vmatprep.subr.mxu0 0.0
  %5333 = vmatpush1.msra.mxu0 0.0
  %5334 = vmatprep.subr.mxu0 0.0
  %5335 = vmatpush1.msra.mxu0 0.0
  %5336 = vmatprep.subr.mxu0 0.0
  %5337 = vmatpush1.msra.mxu0 0.0
  %5338 = vmatprep.subr.mxu0 0.0
  %5339 = vmatpush1.msra.mxu0 0.0
  %5340 = vmatprep.subr.mxu0 0.0
  %5341 = vmatpush1.msra.mxu0 0.0
  %5342 = vmatprep.subr.mxu0 0.0
  %5343 = vmatpush1.msra.mxu0 0.0
  %5344 = vmatprep.subr.mxu0 0.0
  %5345 = vmatpush1.msra.mxu0 0.0
  %5346 = vmatprep.subr.mxu0 0.0
  %5347 = vmatpush1.msra.mxu0 0.0
  %5348 = vmatprep.subr.mxu0 0.0
  %5349 = vmatpush1.msra.mxu0 0.0
  %5350 = vmatprep.mubr.f32.mxu0 0.0
  %5351 = vmatmul.mubr.f32.gmra.mrb[0].mxu0 %v5278
  %v5352 = vpop.f32.mrb[0].mxu0
  %v5353 = vadd.f32 0.0, %v5352
  %v5354 = vpop.f32.mrb[0].mxu0
  %5355 = vmatprep.mubr.f32.mxu0 0.0
  %5356 = vmatmul.mubr.f32.gmra.mrb[0].mxu0 %v5281
  %v5357 = vpop.f32.mrb[0].mxu0
  %v5358 = vadd.f32 0.0, %v5357
  %v5359 = vpop.f32.mrb[0].mxu0
  %5360 = vmatprep.mubr.f32.mxu0 0.0
  %5361 = vmatmul.mubr.f32.gmra.mrb[0].mxu0 %v5284
  %v5362 = vpop.f32.mrb[0].mxu0
  %v5363 = vadd.f32 0.0, %v5362
  %v5364 = vpop.f32.mrb[0].mxu0
  %5365 = vdwg.mxu0
  %v5366 = vadd.f32 %v5159, %v5353
  %v5367 = vadd.f32 %v5164, %v5358
  %v5368 = vadd.f32 %v5169, %v5363
  %v5369 = vld [vmem:[%s2 + $0x17] sm:$0x1]
  %v5370 = vlaneseq
  %v5371 = vshrl.u32 %v5370, 7
  %v5372 = vsub.s32 0, %v5371
  %v5373 = vrot.slane %v5369, %v5372
  %vm5374 = vcmp.eq.s32.totalorder %v719, %v5373
  %vm5375 = vcmp.eq.s32.totalorder %v720, %v5373
  %vm5376 = vcmp.eq.s32.totalorder %v721, %v5373
  %v5377 = vsel %vm5374, 1, 0
  %v5378 = vsel %vm5375, 1, 0
  %v5379 = vsel %vm5376, 1, 0
  %v5380 = vcvt.s32.f32 %v5377
  %v5381 = vcvt.s32.f32 %v5378
  %v5382 = vcvt.s32.f32 %v5379
  %v5384 = vsel %vm4797, %v5380, 0
  %v5387 = vsel %vm4797, %v5381, 0
  %v5390 = vsel %vm4797, %v5382, 0
  %5392 = vmatprep.subr.mxu0 0.0
  %5393 = vmatpush1.msra.mxu0 %v4776
  %5394 = vmatprep.subr.mxu0 0.0
  %5395 = vmatpush1.msra.mxu0 %v4777
  %5396 = vmatprep.subr.mxu0 0.0
  %5397 = vmatpush1.msra.mxu0 %v4778
  %5398 = vmatprep.subr.mxu0 0.0
  %5399 = vmatpush1.msra.mxu0 %v4779
  %5400 = vmatprep.subr.mxu0 0.0
  %5401 = vmatpush1.msra.mxu0 %v4780
  %5402 = vmatprep.subr.mxu0 0.0
  %5403 = vmatpush1.msra.mxu0 %v4781
  %5404 = vmatprep.subr.mxu0 0.0
  %5405 = vmatpush1.msra.mxu0 %v4782
  %5406 = vmatprep.subr.mxu0 0.0
  %5407 = vmatpush1.msra.mxu0 0.0
  %5408 = vmatprep.subr.mxu0 0.0
  %5409 = vmatpush1.msra.mxu0 0.0
  %5410 = vmatprep.subr.mxu0 0.0
  %5411 = vmatpush1.msra.mxu0 0.0
  %5412 = vmatprep.subr.mxu0 0.0
  %5413 = vmatpush1.msra.mxu0 0.0
  %5414 = vmatprep.subr.mxu0 0.0
  %5415 = vmatpush1.msra.mxu0 0.0
  %5416 = vmatprep.subr.mxu0 0.0
  %5417 = vmatpush1.msra.mxu0 0.0
  %5418 = vmatprep.subr.mxu0 0.0
  %5419 = vmatpush1.msra.mxu0 0.0
  %5420 = vmatprep.subr.mxu0 0.0
  %5421 = vmatpush1.msra.mxu0 0.0
  %5422 = vmatprep.subr.mxu0 0.0
  %5423 = vmatpush1.msra.mxu0 0.0
  %5424 = vmatprep.subr.mxu0 0.0
  %5425 = vmatpush1.msra.mxu0 0.0
  %5426 = vmatprep.subr.mxu0 0.0
  %5427 = vmatpush1.msra.mxu0 0.0
  %5428 = vmatprep.subr.mxu0 0.0
  %5429 = vmatpush1.msra.mxu0 0.0
  %5430 = vmatprep.subr.mxu0 0.0
  %5431 = vmatpush1.msra.mxu0 0.0
  %5432 = vmatprep.subr.mxu0 0.0
  %5433 = vmatpush1.msra.mxu0 0.0
  %5434 = vmatprep.subr.mxu0 0.0
  %5435 = vmatpush1.msra.mxu0 0.0
  %5436 = vmatprep.subr.mxu0 0.0
  %5437 = vmatpush1.msra.mxu0 0.0
  %5438 = vmatprep.subr.mxu0 0.0
  %5439 = vmatpush1.msra.mxu0 0.0
  %5440 = vmatprep.subr.mxu0 0.0
  %5441 = vmatpush1.msra.mxu0 0.0
  %5442 = vmatprep.subr.mxu0 0.0
  %5443 = vmatpush1.msra.mxu0 0.0
  %5444 = vmatprep.subr.mxu0 0.0
  %5445 = vmatpush1.msra.mxu0 0.0
  %5446 = vmatprep.subr.mxu0 0.0
  %5447 = vmatpush1.msra.mxu0 0.0
  %5448 = vmatprep.subr.mxu0 0.0
  %5449 = vmatpush1.msra.mxu0 0.0
  %5450 = vmatprep.subr.mxu0 0.0
  %5451 = vmatpush1.msra.mxu0 0.0
  %5452 = vmatprep.subr.mxu0 0.0
  %5453 = vmatpush1.msra.mxu0 0.0
  %5454 = vmatprep.subr.mxu0 0.0
  %5455 = vmatpush1.msra.mxu0 0.0
  %5456 = vmatprep.mubr.f32.mxu0 0.0
  %5457 = vmatmul.mubr.f32.gmra.mrb[0].mxu0 %v5384
  %v5458 = vpop.f32.mrb[0].mxu0
  %v5459 = vadd.f32 0.0, %v5458
  %v5460 = vpop.f32.mrb[0].mxu0
  %5461 = vmatprep.mubr.f32.mxu0 0.0
  %5462 = vmatmul.mubr.f32.gmra.mrb[0].mxu0 %v5387
  %v5463 = vpop.f32.mrb[0].mxu0
  %v5464 = vadd.f32 0.0, %v5463
  %v5465 = vpop.f32.mrb[0].mxu0
  %5466 = vmatprep.mubr.f32.mxu0 0.0
  %5467 = vmatmul.mubr.f32.gmra.mrb[0].mxu0 %v5390
  %v5468 = vpop.f32.mrb[0].mxu0
  %v5469 = vadd.f32 0.0, %v5468
  %v5470 = vpop.f32.mrb[0].mxu0
  %5471 = vdwg.mxu0
  %v5472 = vld [vmem:[%s1 + $0xc0] sm:$0xff]
  %v5473 = vld [vmem:[%s1 + $0xc8] sm:$0xff]
  %v5475 = vsel %vm1835, %v5459, 0
  %v5478 = vsel %vm1835, %v5464, 0
  %v5481 = vsel %vm1835, %v5469, 0
  %5483 = vmatprep.subr.mxu0 0.0
  %5484 = vmatpush1.msra.mxu0 %v5472
  %5485 = vmatprep.subr.mxu0 0.0
  %5486 = vmatpush1.msra.mxu0 %v5473
  %5487 = vmatprep.subr.mxu0 0.0
  %5488 = vmatpush1.msra.mxu0 0.0
  %5489 = vmatprep.subr.mxu0 0.0
  %5490 = vmatpush1.msra.mxu0 0.0
  %5491 = vmatprep.subr.mxu0 0.0
  %5492 = vmatpush1.msra.mxu0 0.0
  %5493 = vmatprep.subr.mxu0 0.0
  %5494 = vmatpush1.msra.mxu0 0.0
  %5495 = vmatprep.subr.mxu0 0.0
  %5496 = vmatpush1.msra.mxu0 0.0
  %5497 = vmatprep.subr.mxu0 0.0
  %5498 = vmatpush1.msra.mxu0 0.0
  %5499 = vmatprep.subr.mxu0 0.0
  %5500 = vmatpush1.msra.mxu0 0.0
  %5501 = vmatprep.subr.mxu0 0.0
  %5502 = vmatpush1.msra.mxu0 0.0
  %5503 = vmatprep.subr.mxu0 0.0
  %5504 = vmatpush1.msra.mxu0 0.0
  %5505 = vmatprep.subr.mxu0 0.0
  %5506 = vmatpush1.msra.mxu0 0.0
  %5507 = vmatprep.subr.mxu0 0.0
  %5508 = vmatpush1.msra.mxu0 0.0
  %5509 = vmatprep.subr.mxu0 0.0
  %5510 = vmatpush1.msra.mxu0 0.0
  %5511 = vmatprep.subr.mxu0 0.0
  %5512 = vmatpush1.msra.mxu0 0.0
  %5513 = vmatprep.subr.mxu0 0.0
  %5514 = vmatpush1.msra.mxu0 0.0
  %5515 = vmatprep.subr.mxu0 0.0
  %5516 = vmatpush1.msra.mxu0 0.0
  %5517 = vmatprep.subr.mxu0 0.0
  %5518 = vmatpush1.msra.mxu0 0.0
  %5519 = vmatprep.subr.mxu0 0.0
  %5520 = vmatpush1.msra.mxu0 0.0
  %5521 = vmatprep.subr.mxu0 0.0
  %5522 = vmatpush1.msra.mxu0 0.0
  %5523 = vmatprep.subr.mxu0 0.0
  %5524 = vmatpush1.msra.mxu0 0.0
  %5525 = vmatprep.subr.mxu0 0.0
  %5526 = vmatpush1.msra.mxu0 0.0
  %5527 = vmatprep.subr.mxu0 0.0
  %5528 = vmatpush1.msra.mxu0 0.0
  %5529 = vmatprep.subr.mxu0 0.0
  %5530 = vmatpush1.msra.mxu0 0.0
  %5531 = vmatprep.subr.mxu0 0.0
  %5532 = vmatpush1.msra.mxu0 0.0
  %5533 = vmatprep.subr.mxu0 0.0
  %5534 = vmatpush1.msra.mxu0 0.0
  %5535 = vmatprep.subr.mxu0 0.0
  %5536 = vmatpush1.msra.mxu0 0.0
  %5537 = vmatprep.subr.mxu0 0.0
  %5538 = vmatpush1.msra.mxu0 0.0
  %5539 = vmatprep.subr.mxu0 0.0
  %5540 = vmatpush1.msra.mxu0 0.0
  %5541 = vmatprep.subr.mxu0 0.0
  %5542 = vmatpush1.msra.mxu0 0.0
  %5543 = vmatprep.subr.mxu0 0.0
  %5544 = vmatpush1.msra.mxu0 0.0
  %5545 = vmatprep.subr.mxu0 0.0
  %5546 = vmatpush1.msra.mxu0 0.0
  %5547 = vmatprep.mubr.f32.mxu0 0.0
  %5548 = vmatmul.mubr.f32.gmra.mrb[0].mxu0 %v5475
  %v5549 = vpop.f32.mrb[0].mxu0
  %v5550 = vadd.f32 0.0, %v5549
  %v5551 = vpop.f32.mrb[0].mxu0
  %5552 = vmatprep.mubr.f32.mxu0 0.0
  %5553 = vmatmul.mubr.f32.gmra.mrb[0].mxu0 %v5478
  %v5554 = vpop.f32.mrb[0].mxu0
  %v5555 = vadd.f32 0.0, %v5554
  %v5556 = vpop.f32.mrb[0].mxu0
  %5557 = vmatprep.mubr.f32.mxu0 0.0
  %5558 = vmatmul.mubr.f32.gmra.mrb[0].mxu0 %v5481
  %v5559 = vpop.f32.mrb[0].mxu0
  %v5560 = vadd.f32 0.0, %v5559
  %v5561 = vpop.f32.mrb[0].mxu0
  %5562 = vdwg.mxu0
  %v5563 = vadd.f32 %v5366, %v5550
  %v5564 = vadd.f32 %v5367, %v5555
  %v5565 = vadd.f32 %v5368, %v5560
  %v5566 = vld [vmem:[%s1 + $0xf] sm:$0x1]
  %v5567 = vlaneseq
  %v5568 = vshrl.u32 %v5567, 7
  %v5569 = vsub.s32 0, %v5568
  %v5570 = vrot.slane %v5566, %v5569
  %v5571 = vadd.f32 %v5563, %v5570
  %v5572 = vadd.f32 %v5564, %v5570
  %v5573 = vadd.f32 %v5565, %v5570
  %v5574 = vadd.f32 %v5571, 3.0
  %v5575 = vadd.f32 %v5572, 3.0
  %v5576 = vadd.f32 %v5573, 3.0
  %v5577 = vmax.f32 %v5574, 0.0
  %v5578 = vmax.f32 %v5575, 0.0
  %v5579 = vmax.f32 %v5576, 0.0
  %v5580 = vmin.f32 %v5577, 6.0
  %v5581 = vmin.f32 %v5578, 6.0
  %v5582 = vmin.f32 %v5579, 6.0
  %v5583 = vmul.f32 %v5571, %v5580
  %v5584 = vmul.f32 %v5572, %v5581
  %v5585 = vmul.f32 %v5573, %v5582
  %v5586 = vmul.f32 %v5583, 0.16666667
  %v5587 = vmul.f32 %v5584, 0.16666667
  %v5588 = vmul.f32 %v5585, 0.16666667
  %5589 = vst [vmem:[%s3] sm:$0xff] %v5586
  %5590 = vst [vmem:[%s3 + $0x8] sm:$0xff] %v5587
  %5591 = vst [vmem:[%s3 + $0x10] sm:$0xff] %v5588
  // Predicated region
  $region14: #{model_forward.1} parent=0 // pred_check
    _
  $region15: #{model_forward.1} parent=0 // pred_check_branch
    %5593 = sbr.rel (0) target = $region17
  $region16: #{model_forward.1} parent=0 // pred_region
    _
  $region17: #{model_forward.1} parent=0 // pred_fallthru
    _
  // Predicated region
  $region18: #{model_forward.1} parent=0 // pred_check
    _
  $region19: #{model_forward.1} parent=0 // pred_check_branch
    %5595 = sbr.rel (0) target = $region21
  $region20: #{model_forward.1} parent=0 // pred_region
    _
  $region21: #{model_forward.1} parent=0 // pred_fallthru
    _

</llo_original>
